<compile_context>
chip_gen: v7x
topology: tpu7x:2x2x1
jax: 0.10.0
libtpu: 0.0.40
codegen_flags: <defaults>
</compile_context>

<pallas_src>
import functools
import math

import jax
import jax.numpy as jnp
from jax import lax
from jax.experimental import pallas as pl
from jax.experimental.pallas import tpu as pltpu


# ----------------------------- shared math helpers ----------------------------

def _ln(x, w, b, eps=1e-5):
    """LayerNorm over the last axis (PyTorch semantics: biased var, eps=1e-5)."""
    mu = jnp.mean(x, axis=-1, keepdims=True)
    var = jnp.mean((x - mu) ** 2, axis=-1, keepdims=True)
    return (x - mu) * lax.rsqrt(var + eps) * w + b


def _gelu(x):
    """Exact (erf) GELU, matching nn.GELU() default."""
    return 0.5 * x * (1.0 + lax.erf(x * (1.0 / math.sqrt(2.0))))


# --------------------------------- kernel -------------------------------------

def mixer_fused_kernel(patches_ref, emb_w_ref, emb_b_ref,
                       n1w_ref, n1b_ref, t1bd_ref, t2bd_ref,
                       n2w_ref, n2b_ref, c1_ref, c2_ref,
                       nw_ref, nb_ref, pool_ref, cw_ref, cb_ref,
                       out_ref, x_ref):
    """Grid = (batch_block g, layer l).  One layer of one batch block per step.

    patches_ref : (Bt*N, P)  bf16   constant over l (DMAed once per g)
    *bd / c*    : (1, ...)   bf16   per-layer weight slice (streamed over l)
    n*w/n*b     : (1, 1, D)  f32    per-layer LayerNorm params
    pool_ref    : (Bt, Bt*N) bf16   host-built block mean-pool matrix
    out_ref     : (1, Bt, NC_pad)   lane-dense (128) logits slab
    x_ref       : (Bt*N, D)  f32    persistent activation scratch
    """
    f32, bf16 = jnp.float32, jnp.bfloat16
    l = pl.program_id(1)
    n_layers = pl.num_programs(1)

    # ---- patch embedding (first layer step of this batch block only) ----
    @pl.when(l == 0)
    def _embed():
        x_ref[...] = (jnp.dot(patches_ref[...], emb_w_ref[...],
                              preferred_element_type=f32)
                      + emb_b_ref[...])                           # (Bt*N, D)

    # ---- token mixing: LN -> block-diag token MLP (single MXU op per proj) ----
    y = _ln(x_ref[...], n1w_ref[0], n1b_ref[0]).astype(bf16)      # (Bt*N, D)
    # h[(b,t), d] = sum_n t1[n, t] * y[(b,n), d]
    h = lax.dot_general(t1bd_ref[0], y, (((0,), (0,)), ((), ())),
                        preferred_element_type=f32)               # (Bt*T, D)
    h = _gelu(h).astype(bf16)
    # u[(b,n), d] = sum_t t2[t, n] * h[(b,t), d]
    x_ref[...] += lax.dot_general(t2bd_ref[0], h, (((0,), (0,)), ((), ())),
                                  preferred_element_type=f32)     # residual

    # ---- channel mixing: LN -> MLP over channels ----
    z = _ln(x_ref[...], n2w_ref[0], n2b_ref[0]).astype(bf16)      # (Bt*N, D)
    h2 = _gelu(jnp.dot(z, c1_ref[0], preferred_element_type=f32)).astype(bf16)
    x_ref[...] += jnp.dot(h2, c2_ref[0], preferred_element_type=f32)

    # ---- head (last layer step only): LN -> mean pool -> classifier ----
    @pl.when(l == n_layers - 1)
    def _head():
        xf = _ln(x_ref[...], nw_ref[...], nb_ref[...]).astype(bf16)   # (Bt*N, D)
        pooled = jnp.dot(pool_ref[...], xf,
                         preferred_element_type=f32)                  # (Bt, D)
        logits = (jnp.dot(pooled.astype(bf16), cw_ref[...],
                          preferred_element_type=f32)
                  + cb_ref[...])                                      # (Bt, NC_pad)
        out_ref[0] = logits


# ------------------------------- wrapper --------------------------------------

def extract_patches(x, p):
    """torch: x.unfold(2,p,p).unfold(3,p,p).contiguous().view(B, -1, p*p)."""
    B, C, H, W = x.shape
    x = x.reshape(B, C, H // p, p, W // p, p)
    x = x.transpose(0, 1, 2, 4, 3, 5)            # (B, C, H/p, W/p, p, p)
    return x.reshape(B, C * (H // p) * (W // p), p * p)


@functools.partial(jax.jit, static_argnums=(2, 3))
def mlp_mixer_forward(x, params, patch_size, num_batch_blocks=1):
    f32, bf16 = jnp.float32, jnp.bfloat16
    B = x.shape[0]
    patches = extract_patches(x, patch_size)                  # (B, N, P)
    _, N, P = patches.shape
    D = params["emb_w"].shape[1]
    depth = params["t1"].shape[0]
    T = params["t1"].shape[2]
    Cd = params["c1"].shape[2]
    NC = params["cls_w"].shape[1]
    NC_pad = ((NC + 127) // 128) * 128                        # lane-dense output

    G = num_batch_blocks                                      # v7x: 2 (+CORE_PARALLEL)
    assert B % G == 0, "batch must divide num_batch_blocks"
    Bt = B // G

    patches2d = patches.reshape(B * N, P).astype(bf16)

    # Block-diagonal token-MLP weights: one (Bt*N, Bt*T) matmul per projection
    # replaces Bt tiny per-sample matmuls (no transposes, 128-wide contraction).
    eye = jnp.eye(Bt, dtype=f32)
    t1bd = jnp.einsum("ij,lab->liajb", eye, params["t1"]
                      ).reshape(depth, Bt * N, Bt * T).astype(bf16)
    t2bd = jnp.einsum("ij,lab->liajb", eye, params["t2"]
                      ).reshape(depth, Bt * T, Bt * N).astype(bf16)

    # Host-side block mean-pool matrix: pool[b, b*N + n] = 1/N (exact in bf16).
    pool = (jnp.einsum("ij,n->ijn", eye, jnp.ones((N,), f32))
            .reshape(Bt, Bt * N) / N).astype(bf16)

    # Zero-pad classifier to 128 output lanes (sliced back below).
    cls_w_pad = jnp.zeros((D, NC_pad), f32).at[:, :NC].set(params["cls_w"]).astype(bf16)
    cls_b_pad = jnp.zeros((1, NC_pad), f32).at[:, :NC].set(params["cls_b"])

    # ---- advisory cost estimate + explicit VMEM budget ----
    flops = (2 * B * N * P * D
             + depth * (4 * B * N * T * D + 4 * B * N * D * Cd)
             + 2 * B * N * D + 2 * B * D * NC_pad)
    transcendentals = depth * (B * T * D + B * N * Cd) + (2 * depth + 1) * B * N
    bytes_accessed = (B * N * P * 2 + P * D * 2 + D * 4
                      + depth * (2 * (Bt * N) * (Bt * T) * 2 + 2 * D * Cd * 2 + 4 * D * 4)
                      + 2 * D * 4 + Bt * Bt * N * 2 + D * NC_pad * 2 + NC_pad * 4
                      + G * Bt * NC_pad * 4)
    layer_w_bytes = (2 * (Bt * N) * (Bt * T) * 2 + 2 * D * Cd * 2 + 4 * D * 4)
    resident_bytes = (Bt * N * P * 2 + P * D * 2 + D * 4 + 2 * D * 4
                      + Bt * (Bt * N) * 2 + D * NC_pad * 2 + NC_pad * 4
                      + Bt * NC_pad * 4 + Bt * N * D * 4)
    vmem_limit = int(min(max(4 * (2 * layer_w_bytes + resident_bytes),
                             16 * 1024 * 1024), 48 * 1024 * 1024))

    def _full(shape):
        nd = len(shape)
        return pl.BlockSpec(shape, lambda g, l, _nd=nd: (0,) * _nd)

    def _layer(shape):
        nd = len(shape)
        return pl.BlockSpec((1,) + tuple(shape[1:]),
                            lambda g, l, _nd=nd: (l,) + (0,) * (_nd - 1))

    out = pl.pallas_call(
        mixer_fused_kernel,
        out_shape=jax.ShapeDtypeStruct((G, Bt, NC_pad), f32),
        grid=(G, depth),
        in_specs=[
            pl.BlockSpec((Bt * N, P), lambda g, l: (g, 0)),   # patches (per g)
            _full((P, D)), _full((1, D)),                      # embedding
            _layer((depth, 1, D)), _layer((depth, 1, D)),      # norm1
            _layer((depth, Bt * N, Bt * T)),                   # token MLP fc1 (blkdiag)
            _layer((depth, Bt * T, Bt * N)),                   # token MLP fc2 (blkdiag)
            _layer((depth, 1, D)), _layer((depth, 1, D)),      # norm2
            _layer((depth, D, Cd)), _layer((depth, Cd, D)),    # channel MLP
            _full((1, D)), _full((1, D)),                      # final norm
            _full((Bt, Bt * N)),                               # pool matrix
            _full((D, NC_pad)), _full((1, NC_pad)),            # classifier
        ],
        out_specs=pl.BlockSpec((1, Bt, NC_pad), lambda g, l: (g, 0, 0)),
        scratch_shapes=[pltpu.VMEM((Bt * N, D), f32)],          # persistent activations
        compiler_params=pltpu.CompilerParams(
            dimension_semantics=("parallel", "arbitrary"),
            vmem_limit_bytes=vmem_limit),
        cost_estimate=pl.CostEstimate(
            flops=int(flops), transcendentals=int(transcendentals),
            bytes_accessed=int(bytes_accessed)),
    )(patches2d,
      params["emb_w"].astype(bf16), params["emb_b"],
      params["n1w"], params["n1b"], t1bd, t2bd,
      params["n2w"], params["n2b"],
      params["c1"].astype(bf16), params["c2"].astype(bf16),
      params["norm_w"], params["norm_b"],
      pool, cls_w_pad, cls_b_pad)

    return out.reshape(B, NC_pad)[:, :NC]


# ------------------------ deterministic parameter init ------------------------

def init_params(key, patch_dim, num_patches, dim, depth, token_dim,
                channel_dim, num_classes):
    keys = jax.random.split(key, 8)
    s = 0.02

    def w(k, shape):
        return jax.random.normal(k, shape, jnp.float32) * s

    return {
        "emb_w": w(keys[0], (patch_dim, dim)),
        "emb_b": w(keys[1], (1, dim)),
        # per-block weights stacked along a leading depth axis
        "n1w": jnp.ones((depth, 1, dim), jnp.float32),
        "n1b": jnp.zeros((depth, 1, dim), jnp.float32),
        "t1": w(keys[2], (depth, num_patches, token_dim)),
        "t2": w(keys[3], (depth, token_dim, num_patches)),
        "n2w": jnp.ones((depth, 1, dim), jnp.float32),
        "n2b": jnp.zeros((depth, 1, dim), jnp.float32),
        "c1": w(keys[4], (depth, dim, channel_dim)),
        "c2": w(keys[5], (depth, channel_dim, dim)),
        "norm_w": jnp.ones((1, dim), jnp.float32),
        "norm_b": jnp.zeros((1, dim), jnp.float32),
        "cls_w": w(keys[6], (dim, num_classes)),
        "cls_b": w(keys[7], (1, num_classes)),
    }


# --------------------- pure-JAX reference (bf16-matmul mirror) -----------------

def reference_forward(x, params, patch_size):
    """Same math as the kernel: bf16 matmul operands, f32 accumulation/LN/GELU."""
    f32, bf16 = jnp.float32, jnp.bfloat16

    def mm(a, b):
        return jnp.matmul(a.astype(bf16), b.astype(bf16),
                          preferred_element_type=f32)

    tokens = mm(extract_patches(x, patch_size), params["emb_w"]) + params["emb_b"]
    depth = params["t1"].shape[0]
    for l in range(depth):
        y = _ln(tokens, params["n1w"][l], params["n1b"][l])
        y = jnp.swapaxes(y, 1, 2)                              # (B, D, N)
        y = mm(_gelu(mm(y, params["t1"][l])), params["t2"][l])
        tokens = tokens + jnp.swapaxes(y, 1, 2)
        z = _ln(tokens, params["n2w"][l], params["n2b"][l])
        tokens = tokens + mm(_gelu(mm(z, params["c1"][l])), params["c2"][l])
    tokens = _ln(tokens, params["norm_w"], params["norm_b"])
    pooled = jnp.mean(tokens.astype(bf16).astype(f32), axis=1)
    return mm(pooled, params["cls_w"]) + params["cls_b"]


# ---------------------------------- main ---------------------------------------

if __name__ == "__main__":
    # Small config consistent with the module (C=1 so num_patches math matches):
    # image 16x16, patch 4 -> 16 patches of 16 pixels each.
    B, C, H, W = 8, 1, 16, 16
    patch_size = 4
    dim, depth, token_dim, channel_dim, num_classes = 32, 2, 16, 64, 10
    num_patches = (H // patch_size) * (W // patch_size)        # 16
    patch_dim = patch_size * patch_size                        # 16

    key = jax.random.PRNGKey(0)
    kx, kp = jax.random.split(key)
    x = jax.random.normal(kx, (B, C, H, W), jnp.float32)
    params = init_params(kp, patch_dim, num_patches, dim, depth,
                         token_dim, channel_dim, num_classes)

    # num_batch_blocks=1: single program on v5e/v6e (1 TC).  On v7x use 2 and
    # switch the batch grid axis to pltpu.CORE_PARALLEL to use both TensorCores.
    logits = mlp_mixer_forward(x, params, patch_size, 1)
    jax.block_until_ready(logits)
    assert logits.shape == (B, num_classes), logits.shape

    ref = reference_forward(x, params, patch_size)
    max_err = float(jnp.max(jnp.abs(logits - ref)))
    assert jnp.allclose(logits, ref, rtol=2e-2, atol=2e-3), (
        f"mismatch vs reference, max abs err = {max_err}")

    print("KERNEL_OK")
</pallas_src>

<mosaic_0001>
module attributes {stable_mosaic.version = 11 : i64} {
  func.func @mixer_fused_kernel(%arg0: i32, %arg1: i32, %arg2: memref<128x16xbf16, #tpu.memory_space<vmem>>, %arg3: memref<16x32xbf16, #tpu.memory_space<vmem>>, %arg4: memref<1x32xf32, #tpu.memory_space<vmem>>, %arg5: memref<1x1x32xf32, #tpu.memory_space<vmem>>, %arg6: memref<1x1x32xf32, #tpu.memory_space<vmem>>, %arg7: memref<1x128x128xbf16, #tpu.memory_space<vmem>>, %arg8: memref<1x128x128xbf16, #tpu.memory_space<vmem>>, %arg9: memref<1x1x32xf32, #tpu.memory_space<vmem>>, %arg10: memref<1x1x32xf32, #tpu.memory_space<vmem>>, %arg11: memref<1x32x64xbf16, #tpu.memory_space<vmem>>, %arg12: memref<1x64x32xbf16, #tpu.memory_space<vmem>>, %arg13: memref<1x32xf32, #tpu.memory_space<vmem>>, %arg14: memref<1x32xf32, #tpu.memory_space<vmem>>, %arg15: memref<8x128xbf16, #tpu.memory_space<vmem>>, %arg16: memref<32x128xbf16, #tpu.memory_space<vmem>>, %arg17: memref<1x128xf32, #tpu.memory_space<vmem>>, %arg18: memref<1x8x128xf32, #tpu.memory_space<vmem>>, %arg19: memref<128x32xf32, #tpu.memory_space<vmem>>) attributes {dimension_semantics = [#tpu.dimension_semantics<parallel>, #tpu.dimension_semantics<arbitrary>], iteration_bounds = array<i64: 1, 2>, scalar_prefetch = 0 : i64, scratch_operands = 1 : i64, tpu.core_type = #tpu.core_type<tc>, window_params = [{transform_indices = @transform_0, window_bounds = array<i64: 128, 16>}, {pipeline_mode = #tpu.pipeline_mode<synchronous>, transform_indices = @transform_1, window_bounds = array<i64: 16, 32>}, {pipeline_mode = #tpu.pipeline_mode<synchronous>, transform_indices = @transform_2, window_bounds = array<i64: 1, 32>}, {transform_indices = @transform_3, window_bounds = array<i64: 1, 1, 32>}, {transform_indices = @transform_4, window_bounds = array<i64: 1, 1, 32>}, {transform_indices = @transform_5, window_bounds = array<i64: 1, 128, 128>}, {transform_indices = @transform_6, window_bounds = array<i64: 1, 128, 128>}, {transform_indices = @transform_7, window_bounds = array<i64: 1, 1, 32>}, {transform_indices = @transform_8, window_bounds = array<i64: 1, 1, 32>}, {transform_indices = @transform_9, window_bounds = array<i64: 1, 32, 64>}, {transform_indices = @transform_10, window_bounds = array<i64: 1, 64, 32>}, {pipeline_mode = #tpu.pipeline_mode<synchronous>, transform_indices = @transform_11, window_bounds = array<i64: 1, 32>}, {pipeline_mode = #tpu.pipeline_mode<synchronous>, transform_indices = @transform_12, window_bounds = array<i64: 1, 32>}, {pipeline_mode = #tpu.pipeline_mode<synchronous>, transform_indices = @transform_13, window_bounds = array<i64: 8, 128>}, {pipeline_mode = #tpu.pipeline_mode<synchronous>, transform_indices = @transform_14, window_bounds = array<i64: 32, 128>}, {pipeline_mode = #tpu.pipeline_mode<synchronous>, transform_indices = @transform_15, window_bounds = array<i64: 1, 128>}, {transform_indices = @transform_16, window_bounds = array<i64: 1, 8, 128>}]} {
    %c0_i32 = arith.constant 0 : i32
    %0 = arith.cmpi eq, %arg1, %c0_i32 : i32
    %1 = arith.extui %0 : i1 to i32
    %c0_i32_0 = arith.constant 0 : i32
    %2 = arith.cmpi ne, %1, %c0_i32_0 : i32
    scf.if %2 {
      %c0_56 = arith.constant 0 : index
      %c0_57 = arith.constant 0 : index
      %98 = vector.load %arg2[%c0_56, %c0_57] : memref<128x16xbf16, #tpu.memory_space<vmem>>, vector<128x16xbf16>
      %c0_58 = arith.constant 0 : index
      %c0_59 = arith.constant 0 : index
      %99 = vector.load %arg3[%c0_58, %c0_59] : memref<16x32xbf16, #tpu.memory_space<vmem>>, vector<16x32xbf16>
      %cst_60 = arith.constant dense<0.000000e+00> : vector<128x32xf32>
      %100 = tpu.matmul %98, %99, %cst_60 {dimension_numbers = #tpu.dot_dimension_numbers<[1], [0], [0], [1], [0, 0, 1, 1], [], []>} : vector<128x16xbf16>, vector<16x32xbf16>, vector<128x32xf32> -> vector<128x32xf32>
      %c0_61 = arith.constant 0 : index
      %c0_62 = arith.constant 0 : index
      %101 = vector.load %arg4[%c0_61, %c0_62] : memref<1x32xf32, #tpu.memory_space<vmem>>, vector<1x32xf32>
      %102 = vector.broadcast %101 : vector<1x32xf32> to vector<128x32xf32>
      %103 = arith.addf %100, %102 : vector<128x32xf32>
      %c0_63 = arith.constant 0 : index
      %c0_64 = arith.constant 0 : index
      %104 = vector.load %arg19[%c0_63, %c0_64] : memref<128x32xf32, #tpu.memory_space<vmem>>, vector<128x32xf32>
      tpu.vector_store %arg19[%c0_63, %c0_64], %103 {strides = array<i32>} : memref<128x32xf32, #tpu.memory_space<vmem>>, vector<128x32xf32>,
    } else {
    }
    %c0 = arith.constant 0 : index
    %c0_1 = arith.constant 0 : index
    %3 = vector.load %arg19[%c0, %c0_1] : memref<128x32xf32, #tpu.memory_space<vmem>>, vector<128x32xf32>
    %c0_2 = arith.constant 0 : index
    %c0_3 = arith.constant 0 : index
    %c0_4 = arith.constant 0 : index
    %4 = vector.load %arg5[%c0_2, %c0_3, %c0_4] : memref<1x1x32xf32, #tpu.memory_space<vmem>>, vector<1x1x32xf32>
    %5 = vector.shape_cast %4 : vector<1x1x32xf32> to vector<1x32xf32>
    %c0_5 = arith.constant 0 : index
    %c0_6 = arith.constant 0 : index
    %c0_7 = arith.constant 0 : index
    %6 = vector.load %arg6[%c0_5, %c0_6, %c0_7] : memref<1x1x32xf32, #tpu.memory_space<vmem>>, vector<1x1x32xf32>
    %7 = vector.shape_cast %6 : vector<1x1x32xf32> to vector<1x32xf32>
    %cst = arith.constant dense<0.000000e+00> : vector<128xf32>
    %8 = vector.multi_reduction <add>, %3, %cst [1] : vector<128x32xf32> to vector<128xf32>
    %9 = vector.shape_cast %8 : vector<128xf32> to vector<128x1xf32>
    %cst_8 = arith.constant 3.200000e+01 : f32
    %10 = vector.broadcast %cst_8 : f32 to vector<128x1xf32>
    %11 = arith.divf %9, %10 : vector<128x1xf32>
    %12 = vector.broadcast %11 : vector<128x1xf32> to vector<128x32xf32>
    %13 = arith.subf %3, %12 : vector<128x32xf32>
    %14 = arith.mulf %13, %13 : vector<128x32xf32>
    %cst_9 = arith.constant dense<0.000000e+00> : vector<128xf32>
    %15 = vector.multi_reduction <add>, %14, %cst_9 [1] : vector<128x32xf32> to vector<128xf32>
    %16 = vector.shape_cast %15 : vector<128xf32> to vector<128x1xf32>
    %cst_10 = arith.constant 3.200000e+01 : f32
    %17 = vector.broadcast %cst_10 : f32 to vector<128x1xf32>
    %18 = arith.divf %16, %17 : vector<128x1xf32>
    %19 = vector.broadcast %11 : vector<128x1xf32> to vector<128x32xf32>
    %20 = arith.subf %3, %19 : vector<128x32xf32>
    %cst_11 = arith.constant 9.99999974E-6 : f32
    %21 = vector.broadcast %cst_11 : f32 to vector<128x1xf32>
    %22 = arith.addf %18, %21 : vector<128x1xf32>
    %23 = math.rsqrt %22 : vector<128x1xf32>
    %24 = vector.broadcast %23 : vector<128x1xf32> to vector<128x32xf32>
    %25 = arith.mulf %20, %24 : vector<128x32xf32>
    %26 = vector.broadcast %5 : vector<1x32xf32> to vector<128x32xf32>
    %27 = arith.mulf %25, %26 : vector<128x32xf32>
    %28 = vector.broadcast %7 : vector<1x32xf32> to vector<128x32xf32>
    %29 = arith.addf %27, %28 : vector<128x32xf32>
    %30 = arith.truncf %29 : vector<128x32xf32> to vector<128x32xbf16>
    %c0_12 = arith.constant 0 : index
    %c0_13 = arith.constant 0 : index
    %c0_14 = arith.constant 0 : index
    %31 = vector.load %arg7[%c0_12, %c0_13, %c0_14] : memref<1x128x128xbf16, #tpu.memory_space<vmem>>, vector<1x128x128xbf16>
    %32 = vector.shape_cast %31 : vector<1x128x128xbf16> to vector<128x128xbf16>
    %cst_15 = arith.constant dense<0.000000e+00> : vector<128x32xf32>
    %33 = tpu.matmul %32, %30, %cst_15 {dimension_numbers = #tpu.dot_dimension_numbers<[0], [0], [1], [1], [0, 1, 1, 1], [], []>} : vector<128x128xbf16>, vector<128x32xbf16>, vector<128x32xf32> -> vector<128x32xf32>
    %cst_16 = arith.constant 5.000000e-01 : f32
    %34 = vector.broadcast %cst_16 : f32 to vector<128x32xf32>
    %35 = arith.mulf %34, %33 : vector<128x32xf32>
    %cst_17 = arith.constant 0.707106769 : f32
    %36 = vector.broadcast %cst_17 : f32 to vector<128x32xf32>
    %37 = arith.mulf %33, %36 : vector<128x32xf32>
    %38 = math.erf %37 : vector<128x32xf32>
    %cst_18 = arith.constant 1.000000e+00 : f32
    %39 = vector.broadcast %cst_18 : f32 to vector<128x32xf32>
    %40 = arith.addf %39, %38 : vector<128x32xf32>
    %41 = arith.mulf %35, %40 : vector<128x32xf32>
    %42 = arith.truncf %41 : vector<128x32xf32> to vector<128x32xbf16>
    %c0_19 = arith.constant 0 : index
    %c0_20 = arith.constant 0 : index
    %43 = vector.load %arg19[%c0_19, %c0_20] : memref<128x32xf32, #tpu.memory_space<vmem>>, vector<128x32xf32>
    %c0_21 = arith.constant 0 : index
    %c0_22 = arith.constant 0 : index
    %c0_23 = arith.constant 0 : index
    %44 = vector.load %arg8[%c0_21, %c0_22, %c0_23] : memref<1x128x128xbf16, #tpu.memory_space<vmem>>, vector<1x128x128xbf16>
    %45 = vector.shape_cast %44 : vector<1x128x128xbf16> to vector<128x128xbf16>
    %cst_24 = arith.constant dense<0.000000e+00> : vector<128x32xf32>
    %46 = tpu.matmul %45, %42, %cst_24 {dimension_numbers = #tpu.dot_dimension_numbers<[0], [0], [1], [1], [0, 1, 1, 1], [], []>} : vector<128x128xbf16>, vector<128x32xbf16>, vector<128x32xf32> -> vector<128x32xf32>
    %47 = arith.addf %43, %46 : vector<128x32xf32>
    %c0_25 = arith.constant 0 : index
    %c0_26 = arith.constant 0 : index
    %48 = vector.load %arg19[%c0_25, %c0_26] : memref<128x32xf32, #tpu.memory_space<vmem>>, vector<128x32xf32>
    tpu.vector_store %arg19[%c0_25, %c0_26], %47 {strides = array<i32>} : memref<128x32xf32, #tpu.memory_space<vmem>>, vector<128x32xf32>,
    %c0_27 = arith.constant 0 : index
    %c0_28 = arith.constant 0 : index
    %49 = vector.load %arg19[%c0_27, %c0_28] : memref<128x32xf32, #tpu.memory_space<vmem>>, vector<128x32xf32>
    %c0_29 = arith.constant 0 : index
    %c0_30 = arith.constant 0 : index
    %c0_31 = arith.constant 0 : index
    %50 = vector.load %arg9[%c0_29, %c0_30, %c0_31] : memref<1x1x32xf32, #tpu.memory_space<vmem>>, vector<1x1x32xf32>
    %51 = vector.shape_cast %50 : vector<1x1x32xf32> to vector<1x32xf32>
    %c0_32 = arith.constant 0 : index
    %c0_33 = arith.constant 0 : index
    %c0_34 = arith.constant 0 : index
    %52 = vector.load %arg10[%c0_32, %c0_33, %c0_34] : memref<1x1x32xf32, #tpu.memory_space<vmem>>, vector<1x1x32xf32>
    %53 = vector.shape_cast %52 : vector<1x1x32xf32> to vector<1x32xf32>
    %cst_35 = arith.constant dense<0.000000e+00> : vector<128xf32>
    %54 = vector.multi_reduction <add>, %49, %cst_35 [1] : vector<128x32xf32> to vector<128xf32>
    %55 = vector.shape_cast %54 : vector<128xf32> to vector<128x1xf32>
    %cst_36 = arith.constant 3.200000e+01 : f32
    %56 = vector.broadcast %cst_36 : f32 to vector<128x1xf32>
    %57 = arith.divf %55, %56 : vector<128x1xf32>
    %58 = vector.broadcast %57 : vector<128x1xf32> to vector<128x32xf32>
    %59 = arith.subf %49, %58 : vector<128x32xf32>
    %60 = arith.mulf %59, %59 : vector<128x32xf32>
    %cst_37 = arith.constant dense<0.000000e+00> : vector<128xf32>
    %61 = vector.multi_reduction <add>, %60, %cst_37 [1] : vector<128x32xf32> to vector<128xf32>
    %62 = vector.shape_cast %61 : vector<128xf32> to vector<128x1xf32>
    %cst_38 = arith.constant 3.200000e+01 : f32
    %63 = vector.broadcast %cst_38 : f32 to vector<128x1xf32>
    %64 = arith.divf %62, %63 : vector<128x1xf32>
    %65 = vector.broadcast %57 : vector<128x1xf32> to vector<128x32xf32>
    %66 = arith.subf %49, %65 : vector<128x32xf32>
    %cst_39 = arith.constant 9.99999974E-6 : f32
    %67 = vector.broadcast %cst_39 : f32 to vector<128x1xf32>
    %68 = arith.addf %64, %67 : vector<128x1xf32>
    %69 = math.rsqrt %68 : vector<128x1xf32>
    %70 = vector.broadcast %69 : vector<128x1xf32> to vector<128x32xf32>
    %71 = arith.mulf %66, %70 : vector<128x32xf32>
    %72 = vector.broadcast %51 : vector<1x32xf32> to vector<128x32xf32>
    %73 = arith.mulf %71, %72 : vector<128x32xf32>
    %74 = vector.broadcast %53 : vector<1x32xf32> to vector<128x32xf32>
    %75 = arith.addf %73, %74 : vector<128x32xf32>
    %76 = arith.truncf %75 : vector<128x32xf32> to vector<128x32xbf16>
    %c0_40 = arith.constant 0 : index
    %c0_41 = arith.constant 0 : index
    %c0_42 = arith.constant 0 : index
    %77 = vector.load %arg11[%c0_40, %c0_41, %c0_42] : memref<1x32x64xbf16, #tpu.memory_space<vmem>>, vector<1x32x64xbf16>
    %78 = vector.shape_cast %77 : vector<1x32x64xbf16> to vector<32x64xbf16>
    %cst_43 = arith.constant dense<0.000000e+00> : vector<128x64xf32>
    %79 = tpu.matmul %76, %78, %cst_43 {dimension_numbers = #tpu.dot_dimension_numbers<[1], [0], [0], [1], [0, 0, 1, 1], [], []>} : vector<128x32xbf16>, vector<32x64xbf16>, vector<128x64xf32> -> vector<128x64xf32>
    %cst_44 = arith.constant 5.000000e-01 : f32
    %80 = vector.broadcast %cst_44 : f32 to vector<128x64xf32>
    %81 = arith.mulf %80, %79 : vector<128x64xf32>
    %cst_45 = arith.constant 0.707106769 : f32
    %82 = vector.broadcast %cst_45 : f32 to vector<128x64xf32>
    %83 = arith.mulf %79, %82 : vector<128x64xf32>
    %84 = math.erf %83 : vector<128x64xf32>
    %cst_46 = arith.constant 1.000000e+00 : f32
    %85 = vector.broadcast %cst_46 : f32 to vector<128x64xf32>
    %86 = arith.addf %85, %84 : vector<128x64xf32>
    %87 = arith.mulf %81, %86 : vector<128x64xf32>
    %88 = arith.truncf %87 : vector<128x64xf32> to vector<128x64xbf16>
    %c0_47 = arith.constant 0 : index
    %c0_48 = arith.constant 0 : index
    %89 = vector.load %arg19[%c0_47, %c0_48] : memref<128x32xf32, #tpu.memory_space<vmem>>, vector<128x32xf32>
    %c0_49 = arith.constant 0 : index
    %c0_50 = arith.constant 0 : index
    %c0_51 = arith.constant 0 : index
    %90 = vector.load %arg12[%c0_49, %c0_50, %c0_51] : memref<1x64x32xbf16, #tpu.memory_space<vmem>>, vector<1x64x32xbf16>
    %91 = vector.shape_cast %90 : vector<1x64x32xbf16> to vector<64x32xbf16>
    %cst_52 = arith.constant dense<0.000000e+00> : vector<128x32xf32>
    %92 = tpu.matmul %88, %91, %cst_52 {dimension_numbers = #tpu.dot_dimension_numbers<[1], [0], [0], [1], [0, 0, 1, 1], [], []>} : vector<128x64xbf16>, vector<64x32xbf16>, vector<128x32xf32> -> vector<128x32xf32>
    %93 = arith.addf %89, %92 : vector<128x32xf32>
    %c0_53 = arith.constant 0 : index
    %c0_54 = arith.constant 0 : index
    %94 = vector.load %arg19[%c0_53, %c0_54] : memref<128x32xf32, #tpu.memory_space<vmem>>, vector<128x32xf32>
    tpu.vector_store %arg19[%c0_53, %c0_54], %93 {strides = array<i32>} : memref<128x32xf32, #tpu.memory_space<vmem>>, vector<128x32xf32>,
    %c1_i32 = arith.constant 1 : i32
    %95 = arith.cmpi eq, %arg1, %c1_i32 : i32
    %96 = arith.extui %95 : i1 to i32
    %c0_i32_55 = arith.constant 0 : i32
    %97 = arith.cmpi ne, %96, %c0_i32_55 : i32
    scf.if %97 {
      %c0_56 = arith.constant 0 : index
      %c0_57 = arith.constant 0 : index
      %98 = vector.load %arg19[%c0_56, %c0_57] : memref<128x32xf32, #tpu.memory_space<vmem>>, vector<128x32xf32>
      %c0_58 = arith.constant 0 : index
      %c0_59 = arith.constant 0 : index
      %99 = vector.load %arg13[%c0_58, %c0_59] : memref<1x32xf32, #tpu.memory_space<vmem>>, vector<1x32xf32>
      %c0_60 = arith.constant 0 : index
      %c0_61 = arith.constant 0 : index
      %100 = vector.load %arg14[%c0_60, %c0_61] : memref<1x32xf32, #tpu.memory_space<vmem>>, vector<1x32xf32>
      %cst_62 = arith.constant dense<0.000000e+00> : vector<128xf32>
      %101 = vector.multi_reduction <add>, %98, %cst_62 [1] : vector<128x32xf32> to vector<128xf32>
      %102 = vector.shape_cast %101 : vector<128xf32> to vector<128x1xf32>
      %cst_63 = arith.constant 3.200000e+01 : f32
      %103 = vector.broadcast %cst_63 : f32 to vector<128x1xf32>
      %104 = arith.divf %102, %103 : vector<128x1xf32>
      %105 = vector.broadcast %104 : vector<128x1xf32> to vector<128x32xf32>
      %106 = arith.subf %98, %105 : vector<128x32xf32>
      %107 = arith.mulf %106, %106 : vector<128x32xf32>
      %cst_64 = arith.constant dense<0.000000e+00> : vector<128xf32>
      %108 = vector.multi_reduction <add>, %107, %cst_64 [1] : vector<128x32xf32> to vector<128xf32>
      %109 = vector.shape_cast %108 : vector<128xf32> to vector<128x1xf32>
      %cst_65 = arith.constant 3.200000e+01 : f32
      %110 = vector.broadcast %cst_65 : f32 to vector<128x1xf32>
      %111 = arith.divf %109, %110 : vector<128x1xf32>
      %112 = vector.broadcast %104 : vector<128x1xf32> to vector<128x32xf32>
      %113 = arith.subf %98, %112 : vector<128x32xf32>
      %cst_66 = arith.constant 9.99999974E-6 : f32
      %114 = vector.broadcast %cst_66 : f32 to vector<128x1xf32>
      %115 = arith.addf %111, %114 : vector<128x1xf32>
      %116 = math.rsqrt %115 : vector<128x1xf32>
      %117 = vector.broadcast %116 : vector<128x1xf32> to vector<128x32xf32>
      %118 = arith.mulf %113, %117 : vector<128x32xf32>
      %119 = vector.broadcast %99 : vector<1x32xf32> to vector<128x32xf32>
      %120 = arith.mulf %118, %119 : vector<128x32xf32>
      %121 = vector.broadcast %100 : vector<1x32xf32> to vector<128x32xf32>
      %122 = arith.addf %120, %121 : vector<128x32xf32>
      %123 = arith.truncf %122 : vector<128x32xf32> to vector<128x32xbf16>
      %c0_67 = arith.constant 0 : index
      %c0_68 = arith.constant 0 : index
      %124 = vector.load %arg15[%c0_67, %c0_68] : memref<8x128xbf16, #tpu.memory_space<vmem>>, vector<8x128xbf16>
      %cst_69 = arith.constant dense<0.000000e+00> : vector<8x32xf32>
      %125 = tpu.matmul %124, %123, %cst_69 {dimension_numbers = #tpu.dot_dimension_numbers<[1], [0], [0], [1], [0, 0, 1, 1], [], []>} : vector<8x128xbf16>, vector<128x32xbf16>, vector<8x32xf32> -> vector<8x32xf32>
      %126 = arith.truncf %125 : vector<8x32xf32> to vector<8x32xbf16>
      %c0_70 = arith.constant 0 : index
      %c0_71 = arith.constant 0 : index
      %127 = vector.load %arg16[%c0_70, %c0_71] : memref<32x128xbf16, #tpu.memory_space<vmem>>, vector<32x128xbf16>
      %cst_72 = arith.constant dense<0.000000e+00> : vector<8x128xf32>
      %128 = tpu.matmul %126, %127, %cst_72 {dimension_numbers = #tpu.dot_dimension_numbers<[1], [0], [0], [1], [0, 0, 1, 1], [], []>} : vector<8x32xbf16>, vector<32x128xbf16>, vector<8x128xf32> -> vector<8x128xf32>
      %c0_73 = arith.constant 0 : index
      %c0_74 = arith.constant 0 : index
      %129 = vector.load %arg17[%c0_73, %c0_74] : memref<1x128xf32, #tpu.memory_space<vmem>>, vector<1x128xf32>
      %130 = vector.broadcast %129 : vector<1x128xf32> to vector<8x128xf32>
      %131 = arith.addf %128, %130 : vector<8x128xf32>
      %c0_75 = arith.constant 0 : index
      %c0_76 = arith.constant 0 : index
      %c0_77 = arith.constant 0 : index
      %132 = vector.load %arg18[%c0_75, %c0_76, %c0_77] : memref<1x8x128xf32, #tpu.memory_space<vmem>>, vector<1x8x128xf32>
      %133 = vector.shape_cast %132 : vector<1x8x128xf32> to vector<8x128xf32>
      %134 = vector.shape_cast %131 : vector<8x128xf32> to vector<1x8x128xf32>
      tpu.vector_store %arg18[%c0_75, %c0_76, %c0_77], %134 {strides = array<i32>} : memref<1x8x128xf32, #tpu.memory_space<vmem>>, vector<1x8x128xf32>,
    } else {
    }
    return
  }
  func.func @transform_0(%arg0: i32, %arg1: i32) -> (i32, i32) {
    %c0_i32 = arith.constant 0 : i32
    %c0_i32_0 = arith.constant 0 : i32
    return %arg0, %c0_i32 : i32, i32
  }
  func.func @transform_1(%arg0: i32, %arg1: i32) -> (i32, i32) {
    %c0_i32 = arith.constant 0 : i32
    %c0_i32_0 = arith.constant 0 : i32
    %c0_i32_1 = arith.constant 0 : i32
    return %c0_i32, %c0_i32_0 : i32, i32
  }
  func.func @transform_2(%arg0: i32, %arg1: i32) -> (i32, i32) {
    %c0_i32 = arith.constant 0 : i32
    %c0_i32_0 = arith.constant 0 : i32
    %c0_i32_1 = arith.constant 0 : i32
    return %c0_i32, %c0_i32_0 : i32, i32
  }
  func.func @transform_3(%arg0: i32, %arg1: i32) -> (i32, i32, i32) {
    %c0_i32 = arith.constant 0 : i32
    %c0_i32_0 = arith.constant 0 : i32
    %c0_i32_1 = arith.constant 0 : i32
    return %arg1, %c0_i32, %c0_i32_0 : i32, i32, i32
  }
  func.func @transform_4(%arg0: i32, %arg1: i32) -> (i32, i32, i32) {
    %c0_i32 = arith.constant 0 : i32
    %c0_i32_0 = arith.constant 0 : i32
    %c0_i32_1 = arith.constant 0 : i32
    return %arg1, %c0_i32, %c0_i32_0 : i32, i32, i32
  }
  func.func @transform_5(%arg0: i32, %arg1: i32) -> (i32, i32, i32) {
    %c0_i32 = arith.constant 0 : i32
    %c0_i32_0 = arith.constant 0 : i32
    %c0_i32_1 = arith.constant 0 : i32
    return %arg1, %c0_i32, %c0_i32_0 : i32, i32, i32
  }
  func.func @transform_6(%arg0: i32, %arg1: i32) -> (i32, i32, i32) {
    %c0_i32 = arith.constant 0 : i32
    %c0_i32_0 = arith.constant 0 : i32
    %c0_i32_1 = arith.constant 0 : i32
    return %arg1, %c0_i32, %c0_i32_0 : i32, i32, i32
  }
  func.func @transform_7(%arg0: i32, %arg1: i32) -> (i32, i32, i32) {
    %c0_i32 = arith.constant 0 : i32
    %c0_i32_0 = arith.constant 0 : i32
    %c0_i32_1 = arith.constant 0 : i32
    return %arg1, %c0_i32, %c0_i32_0 : i32, i32, i32
  }
  func.func @transform_8(%arg0: i32, %arg1: i32) -> (i32, i32, i32) {
    %c0_i32 = arith.constant 0 : i32
    %c0_i32_0 = arith.constant 0 : i32
    %c0_i32_1 = arith.constant 0 : i32
    return %arg1, %c0_i32, %c0_i32_0 : i32, i32, i32
  }
  func.func @transform_9(%arg0: i32, %arg1: i32) -> (i32, i32, i32) {
    %c0_i32 = arith.constant 0 : i32
    %c0_i32_0 = arith.constant 0 : i32
    %c0_i32_1 = arith.constant 0 : i32
    return %arg1, %c0_i32, %c0_i32_0 : i32, i32, i32
  }
  func.func @transform_10(%arg0: i32, %arg1: i32) -> (i32, i32, i32) {
    %c0_i32 = arith.constant 0 : i32
    %c0_i32_0 = arith.constant 0 : i32
    %c0_i32_1 = arith.constant 0 : i32
    return %arg1, %c0_i32, %c0_i32_0 : i32, i32, i32
  }
  func.func @transform_11(%arg0: i32, %arg1: i32) -> (i32, i32) {
    %c0_i32 = arith.constant 0 : i32
    %c0_i32_0 = arith.constant 0 : i32
    %c0_i32_1 = arith.constant 0 : i32
    return %c0_i32, %c0_i32_0 : i32, i32
  }
  func.func @transform_12(%arg0: i32, %arg1: i32) -> (i32, i32) {
    %c0_i32 = arith.constant 0 : i32
    %c0_i32_0 = arith.constant 0 : i32
    %c0_i32_1 = arith.constant 0 : i32
    return %c0_i32, %c0_i32_0 : i32, i32
  }
  func.func @transform_13(%arg0: i32, %arg1: i32) -> (i32, i32) {
    %c0_i32 = arith.constant 0 : i32
    %c0_i32_0 = arith.constant 0 : i32
    %c0_i32_1 = arith.constant 0 : i32
    return %c0_i32, %c0_i32_0 : i32, i32
  }
  func.func @transform_14(%arg0: i32, %arg1: i32) -> (i32, i32) {
    %c0_i32 = arith.constant 0 : i32
    %c0_i32_0 = arith.constant 0 : i32
    %c0_i32_1 = arith.constant 0 : i32
    return %c0_i32, %c0_i32_0 : i32, i32
  }
  func.func @transform_15(%arg0: i32, %arg1: i32) -> (i32, i32) {
    %c0_i32 = arith.constant 0 : i32
    %c0_i32_0 = arith.constant 0 : i32
    %c0_i32_1 = arith.constant 0 : i32
    return %c0_i32, %c0_i32_0 : i32, i32
  }
  func.func @transform_16(%arg0: i32, %arg1: i32) -> (i32, i32, i32) {
    %c0_i32 = arith.constant 0 : i32
    %c0_i32_0 = arith.constant 0 : i32
    %c0_i32_1 = arith.constant 0 : i32
    return %arg0, %c0_i32, %c0_i32_0 : i32, i32, i32
  }
}

</mosaic_0001>

<llo_original>
// kernel: mlp_mixer_forward.1
$region0: #{mlp_mixer_forward.1}
  #allocation0 [shape = 'u32[]', space=smem, size = 0x4, offset = 0x4, fixed_abs, tag = 'smem constant byte address 0x4 - core index']
  #allocation1 [shape = 'u32[144,128]{1,0:T(1,128)}', space=vmem, size = 0x12000, scoped, tag = 'internal scratch']
  #allocation2 [shape = 'f32[128,32]{1,0:T(8,128)}', space=vmem, size = 0x10000, scoped, tag = 'scratch operand']
  %s0 = inlined_call_operand.vmem [shape: bf16[128,16], index: 0, kind: input, shape index: {}]
  %s1 = inlined_call_operand.vmem [shape: bf16[16,32], index: 1, kind: input, shape index: {}]
  %s2 = inlined_call_operand.vmem [shape: f32[1,32], index: 2, kind: input, shape index: {}]
  %s3 = inlined_call_operand.vmem [shape: f32[2,1,32], index: 3, kind: input, shape index: {}]
  %s4 = inlined_call_operand.vmem [shape: f32[2,1,32], index: 4, kind: input, shape index: {}]
  %s5 = inlined_call_operand.vmem [shape: bf16[2,128,128], index: 5, kind: input, shape index: {}]
  %s6 = inlined_call_operand.vmem [shape: bf16[2,128,128], index: 6, kind: input, shape index: {}]
  %s7 = inlined_call_operand.vmem [shape: f32[2,1,32], index: 7, kind: input, shape index: {}]
  %s8 = inlined_call_operand.vmem [shape: f32[2,1,32], index: 8, kind: input, shape index: {}]
  %s9 = inlined_call_operand.vmem [shape: bf16[2,32,64], index: 9, kind: input, shape index: {}]
  %s10 = inlined_call_operand.vmem [shape: bf16[2,64,32], index: 10, kind: input, shape index: {}]
  %s11 = inlined_call_operand.vmem [shape: f32[1,32], index: 11, kind: input, shape index: {}]
  %s12 = inlined_call_operand.vmem [shape: f32[1,32], index: 12, kind: input, shape index: {}]
  %s13 = inlined_call_operand.vmem [shape: bf16[8,128], index: 13, kind: input, shape index: {}]
  %s14 = inlined_call_operand.vmem [shape: bf16[32,128], index: 14, kind: input, shape index: {}]
  %s15 = inlined_call_operand.vmem [shape: f32[1,128], index: 15, kind: input, shape index: {}]
  %s16 = inlined_call_operand.hbm [shape: f32[1,8,128], index: 16, kind: output, shape index: {}]
  %s17 = sld [smem:[#allocation0]]
  $region105: #{mlp_mixer_forward.1} parent=0
    _
  %s19 = ssub.s32 1, %s17
  %s20 = scalar_select 0, %s19, %s17
  $region1: #{mlp_mixer_forward.1} parent=0
    #allocation3 [shape = 'u8[4096]{0}', space=vmem, size = 0x1000, scoped, tag = 'output window, operand 0, single buffered']
    #allocation4 [shape = 's32[2]{0}', space=sflag, size = 0x8, scoped, tag = 'scoped memory for mlp_mixer_forward.1']
    %21 = vsyncpa [#allocation4], 0
    loop: start=0, step=1, limit=4
    $region2: #{mlp_mixer_forward.1} parent=1 // loop_pre_header
      _
    $region3: #{mlp_mixer_forward.1} parent=1 // loop_header
      %s23 = sphi 0, %s27
      %p24 = scmp.ge.s32.totalorder %s23, 4
      %s30 = sphi 0, %s42
      %s31 = sphi 0, %s38
      %s32 = sphi 0, %s30
      %s33 = sphi 0, %s31
      %s34 = sphi 0, %s32
      %s35 = sphi 0, %s33
      %s45 = sphi 0, %s47
      %s48 = sphi 0, %s45
      %s49 = sphi 0, %s48
      %s65 = sphi 0, %s49
      %s69 = sphi 0, %s69
      %s71 = sphi 0, %s69
      %s72 = sphi 0, %s71
      %s86 = sphi 0, %s72
      %s90 = sphi 0, %s90
      %s92 = sphi 0, %s90
      %s93 = sphi 0, %s92
      %s107 = sphi 0, %s93
      %s113 = sphi 0, %s115
      %s116 = sphi 0, %s113
      %s117 = sphi 0, %s116
      %s133 = sphi 0, %s117
      %s139 = sphi 0, %s141
      %s142 = sphi 0, %s139
      %s143 = sphi 0, %s142
      %s159 = sphi 0, %s143
      %s165 = sphi 0, %s167
      %s168 = sphi 0, %s165
      %s169 = sphi 0, %s168
      %s185 = sphi 0, %s169
      %s191 = sphi 0, %s193
      %s194 = sphi 0, %s191
      %s195 = sphi 0, %s194
      %s211 = sphi 0, %s195
      %s217 = sphi 0, %s219
      %s220 = sphi 0, %s217
      %s221 = sphi 0, %s220
      %s237 = sphi 0, %s221
      %s243 = sphi 0, %s245
      %s246 = sphi 0, %s243
      %s247 = sphi 0, %s246
      %s263 = sphi 0, %s247
      %s269 = sphi 0, %s271
      %s272 = sphi 0, %s269
      %s273 = sphi 0, %s272
      %s289 = sphi 0, %s273
      %s295 = sphi 0, %s297
      %s298 = sphi 0, %s295
      %s299 = sphi 0, %s298
      %s315 = sphi 0, %s299
      %s319 = sphi 0, %s319
      %s321 = sphi 0, %s319
      %s322 = sphi 0, %s321
      %s336 = sphi 0, %s322
      %s340 = sphi 0, %s340
      %s342 = sphi 0, %s340
      %s343 = sphi 0, %s342
      %s357 = sphi 0, %s343
      %s361 = sphi 0, %s361
      %s363 = sphi 0, %s361
      %s364 = sphi 0, %s363
      %s378 = sphi 0, %s364
      %s382 = sphi 0, %s382
      %s384 = sphi 0, %s382
      %s385 = sphi 0, %s384
      %s399 = sphi 0, %s385
      %s403 = sphi 0, %s403
      %s405 = sphi 0, %s403
      %s406 = sphi 0, %s405
      %s420 = sphi 0, %s406
      %s426 = sphi 0, %s428
      %s429 = sphi 0, %s426
      %s430 = sphi 0, %s429
      %s446 = sphi 0, %s430
    $region4: #{mlp_mixer_forward.1} parent=1 // loop_header_branch
      %26 = sbr.rel (%p24) target = $region8
    $region5: #{mlp_mixer_forward.1} parent=1 // loop_body
      %s28 = ssub.s32 %s23, 1
      %s29 = ssub.s32 %s23, 2
      %s36 = sadd.s32 1, %s31
      %p37 = scmp.ge.s32.totalorder %s36, 2
      %s38 = scalar_select %p37, 0, %s36
      %s39 = sadd.s32 1, %s30
      %s40 = scalar_select %p37, %s39, %s30
      %p41 = scmp.ge.s32.totalorder %s40, 1
      %s42 = scalar_select %p41, 0, %s40
      %s43 = ssub.s32 %s30, %s42
      %p44 = scmp.eq.s32.totalorder %s43, 0
      %s46 = sadd.s32 %s45, 1
      %s47 = scalar_select %p44, %s45, %s46
      %p50 = pneg %p44
      %p51 = scmp.eq.s32.totalorder %s23, 1
      %p52 = por %p50, %p51
      %p53 = scmp.ne.s32.totalorder %s45, %s48
      %p54 = scmp.eq.s32.totalorder %s23, 0
      %p55 = por %p53, %p54
      %p56 = scmp.ne.s32.totalorder %s45, %s48
      %p57 = scmp.eq.s32.totalorder %s28, 1
      %p58 = por %p56, %p57
      %p59 = scmp.ne.s32.totalorder %s48, %s49
      %p60 = scmp.eq.s32.totalorder %s28, 0
      %p61 = por %p59, %p60
      %p62 = scmp.ne.s32.totalorder %s48, %s49
      %p63 = scmp.eq.s32.totalorder %s29, 1
      %p64 = por %p62, %p63
      %p66 = scmp.ne.s32.totalorder %s49, %s65
      %p67 = scmp.eq.s32.totalorder %s29, 0
      %p68 = por %p66, %p67
      %s70 = sadd.s32 %s69, 1
      %p73 = scmp.eq.s32.totalorder %s23, 1
      %p74 = scmp.ne.s32.totalorder %s69, %s71
      %p75 = scmp.eq.s32.totalorder %s23, 0
      %p76 = por %p74, %p75
      %p77 = scmp.ne.s32.totalorder %s69, %s71
      %p78 = scmp.eq.s32.totalorder %s28, 1
      %p79 = por %p77, %p78
      %p80 = scmp.ne.s32.totalorder %s71, %s72
      %p81 = scmp.eq.s32.totalorder %s28, 0
      %p82 = por %p80, %p81
      %p83 = scmp.ne.s32.totalorder %s71, %s72
      %p84 = scmp.eq.s32.totalorder %s29, 1
      %p85 = por %p83, %p84
      %p87 = scmp.ne.s32.totalorder %s72, %s86
      %p88 = scmp.eq.s32.totalorder %s29, 0
      %p89 = por %p87, %p88
      %s91 = sadd.s32 %s90, 1
      %p94 = scmp.eq.s32.totalorder %s23, 1
      %p95 = scmp.ne.s32.totalorder %s90, %s92
      %p96 = scmp.eq.s32.totalorder %s23, 0
      %p97 = por %p95, %p96
      %p98 = scmp.ne.s32.totalorder %s90, %s92
      %p99 = scmp.eq.s32.totalorder %s28, 1
      %p100 = por %p98, %p99
      %p101 = scmp.ne.s32.totalorder %s92, %s93
      %p102 = scmp.eq.s32.totalorder %s28, 0
      %p103 = por %p101, %p102
      %p104 = scmp.ne.s32.totalorder %s92, %s93
      %p105 = scmp.eq.s32.totalorder %s29, 1
      %p106 = por %p104, %p105
      %p108 = scmp.ne.s32.totalorder %s93, %s107
      %p109 = scmp.eq.s32.totalorder %s29, 0
      %p110 = por %p108, %p109
      %s111 = ssub.s32 %s31, %s38
      %p112 = scmp.eq.s32.totalorder %s111, 0
      %s114 = sadd.s32 %s113, 1
      %s115 = scalar_select %p112, %s113, %s114
      %p118 = pneg %p112
      %p119 = scmp.eq.s32.totalorder %s23, 1
      %p120 = por %p118, %p119
      %p121 = scmp.ne.s32.totalorder %s113, %s116
      %p122 = scmp.eq.s32.totalorder %s23, 0
      %p123 = por %p121, %p122
      %p124 = scmp.ne.s32.totalorder %s113, %s116
      %p125 = scmp.eq.s32.totalorder %s28, 1
      %p126 = por %p124, %p125
      %p127 = scmp.ne.s32.totalorder %s116, %s117
      %p128 = scmp.eq.s32.totalorder %s28, 0
      %p129 = por %p127, %p128
      %p130 = scmp.ne.s32.totalorder %s116, %s117
      %p131 = scmp.eq.s32.totalorder %s29, 1
      %p132 = por %p130, %p131
      %p134 = scmp.ne.s32.totalorder %s117, %s133
      %p135 = scmp.eq.s32.totalorder %s29, 0
      %p136 = por %p134, %p135
      %s137 = ssub.s32 %s31, %s38
      %p138 = scmp.eq.s32.totalorder %s137, 0
      %s140 = sadd.s32 %s139, 1
      %s141 = scalar_select %p138, %s139, %s140
      %p144 = pneg %p138
      %p145 = scmp.eq.s32.totalorder %s23, 1
      %p146 = por %p144, %p145
      %p147 = scmp.ne.s32.totalorder %s139, %s142
      %p148 = scmp.eq.s32.totalorder %s23, 0
      %p149 = por %p147, %p148
      %p150 = scmp.ne.s32.totalorder %s139, %s142
      %p151 = scmp.eq.s32.totalorder %s28, 1
      %p152 = por %p150, %p151
      %p153 = scmp.ne.s32.totalorder %s142, %s143
      %p154 = scmp.eq.s32.totalorder %s28, 0
      %p155 = por %p153, %p154
      %p156 = scmp.ne.s32.totalorder %s142, %s143
      %p157 = scmp.eq.s32.totalorder %s29, 1
      %p158 = por %p156, %p157
      %p160 = scmp.ne.s32.totalorder %s143, %s159
      %p161 = scmp.eq.s32.totalorder %s29, 0
      %p162 = por %p160, %p161
      %s163 = ssub.s32 %s31, %s38
      %p164 = scmp.eq.s32.totalorder %s163, 0
      %s166 = sadd.s32 %s165, 1
      %s167 = scalar_select %p164, %s165, %s166
      %p170 = pneg %p164
      %p171 = scmp.eq.s32.totalorder %s23, 1
      %p172 = por %p170, %p171
      %p173 = scmp.ne.s32.totalorder %s165, %s168
      %p174 = scmp.eq.s32.totalorder %s23, 0
      %p175 = por %p173, %p174
      %p176 = scmp.ne.s32.totalorder %s165, %s168
      %p177 = scmp.eq.s32.totalorder %s28, 1
      %p178 = por %p176, %p177
      %p179 = scmp.ne.s32.totalorder %s168, %s169
      %p180 = scmp.eq.s32.totalorder %s28, 0
      %p181 = por %p179, %p180
      %p182 = scmp.ne.s32.totalorder %s168, %s169
      %p183 = scmp.eq.s32.totalorder %s29, 1
      %p184 = por %p182, %p183
      %p186 = scmp.ne.s32.totalorder %s169, %s185
      %p187 = scmp.eq.s32.totalorder %s29, 0
      %p188 = por %p186, %p187
      %s189 = ssub.s32 %s31, %s38
      %p190 = scmp.eq.s32.totalorder %s189, 0
      %s192 = sadd.s32 %s191, 1
      %s193 = scalar_select %p190, %s191, %s192
      %p196 = pneg %p190
      %p197 = scmp.eq.s32.totalorder %s23, 1
      %p198 = por %p196, %p197
      %p199 = scmp.ne.s32.totalorder %s191, %s194
      %p200 = scmp.eq.s32.totalorder %s23, 0
      %p201 = por %p199, %p200
      %p202 = scmp.ne.s32.totalorder %s191, %s194
      %p203 = scmp.eq.s32.totalorder %s28, 1
      %p204 = por %p202, %p203
      %p205 = scmp.ne.s32.totalorder %s194, %s195
      %p206 = scmp.eq.s32.totalorder %s28, 0
      %p207 = por %p205, %p206
      %p208 = scmp.ne.s32.totalorder %s194, %s195
      %p209 = scmp.eq.s32.totalorder %s29, 1
      %p210 = por %p208, %p209
      %p212 = scmp.ne.s32.totalorder %s195, %s211
      %p213 = scmp.eq.s32.totalorder %s29, 0
      %p214 = por %p212, %p213
      %s215 = ssub.s32 %s31, %s38
      %p216 = scmp.eq.s32.totalorder %s215, 0
      %s218 = sadd.s32 %s217, 1
      %s219 = scalar_select %p216, %s217, %s218
      %p222 = pneg %p216
      %p223 = scmp.eq.s32.totalorder %s23, 1
      %p224 = por %p222, %p223
      %p225 = scmp.ne.s32.totalorder %s217, %s220
      %p226 = scmp.eq.s32.totalorder %s23, 0
      %p227 = por %p225, %p226
      %p228 = scmp.ne.s32.totalorder %s217, %s220
      %p229 = scmp.eq.s32.totalorder %s28, 1
      %p230 = por %p228, %p229
      %p231 = scmp.ne.s32.totalorder %s220, %s221
      %p232 = scmp.eq.s32.totalorder %s28, 0
      %p233 = por %p231, %p232
      %p234 = scmp.ne.s32.totalorder %s220, %s221
      %p235 = scmp.eq.s32.totalorder %s29, 1
      %p236 = por %p234, %p235
      %p238 = scmp.ne.s32.totalorder %s221, %s237
      %p239 = scmp.eq.s32.totalorder %s29, 0
      %p240 = por %p238, %p239
      %s241 = ssub.s32 %s31, %s38
      %p242 = scmp.eq.s32.totalorder %s241, 0
      %s244 = sadd.s32 %s243, 1
      %s245 = scalar_select %p242, %s243, %s244
      %p248 = pneg %p242
      %p249 = scmp.eq.s32.totalorder %s23, 1
      %p250 = por %p248, %p249
      %p251 = scmp.ne.s32.totalorder %s243, %s246
      %p252 = scmp.eq.s32.totalorder %s23, 0
      %p253 = por %p251, %p252
      %p254 = scmp.ne.s32.totalorder %s243, %s246
      %p255 = scmp.eq.s32.totalorder %s28, 1
      %p256 = por %p254, %p255
      %p257 = scmp.ne.s32.totalorder %s246, %s247
      %p258 = scmp.eq.s32.totalorder %s28, 0
      %p259 = por %p257, %p258
      %p260 = scmp.ne.s32.totalorder %s246, %s247
      %p261 = scmp.eq.s32.totalorder %s29, 1
      %p262 = por %p260, %p261
      %p264 = scmp.ne.s32.totalorder %s247, %s263
      %p265 = scmp.eq.s32.totalorder %s29, 0
      %p266 = por %p264, %p265
      %s267 = ssub.s32 %s31, %s38
      %p268 = scmp.eq.s32.totalorder %s267, 0
      %s270 = sadd.s32 %s269, 1
      %s271 = scalar_select %p268, %s269, %s270
      %p274 = pneg %p268
      %p275 = scmp.eq.s32.totalorder %s23, 1
      %p276 = por %p274, %p275
      %p277 = scmp.ne.s32.totalorder %s269, %s272
      %p278 = scmp.eq.s32.totalorder %s23, 0
      %p279 = por %p277, %p278
      %p280 = scmp.ne.s32.totalorder %s269, %s272
      %p281 = scmp.eq.s32.totalorder %s28, 1
      %p282 = por %p280, %p281
      %p283 = scmp.ne.s32.totalorder %s272, %s273
      %p284 = scmp.eq.s32.totalorder %s28, 0
      %p285 = por %p283, %p284
      %p286 = scmp.ne.s32.totalorder %s272, %s273
      %p287 = scmp.eq.s32.totalorder %s29, 1
      %p288 = por %p286, %p287
      %p290 = scmp.ne.s32.totalorder %s273, %s289
      %p291 = scmp.eq.s32.totalorder %s29, 0
      %p292 = por %p290, %p291
      %s293 = ssub.s32 %s31, %s38
      %p294 = scmp.eq.s32.totalorder %s293, 0
      %s296 = sadd.s32 %s295, 1
      %s297 = scalar_select %p294, %s295, %s296
      %p300 = pneg %p294
      %p301 = scmp.eq.s32.totalorder %s23, 1
      %p302 = por %p300, %p301
      %p303 = scmp.ne.s32.totalorder %s295, %s298
      %p304 = scmp.eq.s32.totalorder %s23, 0
      %p305 = por %p303, %p304
      %p306 = scmp.ne.s32.totalorder %s295, %s298
      %p307 = scmp.eq.s32.totalorder %s28, 1
      %p308 = por %p306, %p307
      %p309 = scmp.ne.s32.totalorder %s298, %s299
      %p310 = scmp.eq.s32.totalorder %s28, 0
      %p311 = por %p309, %p310
      %p312 = scmp.ne.s32.totalorder %s298, %s299
      %p313 = scmp.eq.s32.totalorder %s29, 1
      %p314 = por %p312, %p313
      %p316 = scmp.ne.s32.totalorder %s299, %s315
      %p317 = scmp.eq.s32.totalorder %s29, 0
      %p318 = por %p316, %p317
      %s320 = sadd.s32 %s319, 1
      %p323 = scmp.eq.s32.totalorder %s23, 1
      %p324 = scmp.ne.s32.totalorder %s319, %s321
      %p325 = scmp.eq.s32.totalorder %s23, 0
      %p326 = por %p324, %p325
      %p327 = scmp.ne.s32.totalorder %s319, %s321
      %p328 = scmp.eq.s32.totalorder %s28, 1
      %p329 = por %p327, %p328
      %p330 = scmp.ne.s32.totalorder %s321, %s322
      %p331 = scmp.eq.s32.totalorder %s28, 0
      %p332 = por %p330, %p331
      %p333 = scmp.ne.s32.totalorder %s321, %s322
      %p334 = scmp.eq.s32.totalorder %s29, 1
      %p335 = por %p333, %p334
      %p337 = scmp.ne.s32.totalorder %s322, %s336
      %p338 = scmp.eq.s32.totalorder %s29, 0
      %p339 = por %p337, %p338
      %s341 = sadd.s32 %s340, 1
      %p344 = scmp.eq.s32.totalorder %s23, 1
      %p345 = scmp.ne.s32.totalorder %s340, %s342
      %p346 = scmp.eq.s32.totalorder %s23, 0
      %p347 = por %p345, %p346
      %p348 = scmp.ne.s32.totalorder %s340, %s342
      %p349 = scmp.eq.s32.totalorder %s28, 1
      %p350 = por %p348, %p349
      %p351 = scmp.ne.s32.totalorder %s342, %s343
      %p352 = scmp.eq.s32.totalorder %s28, 0
      %p353 = por %p351, %p352
      %p354 = scmp.ne.s32.totalorder %s342, %s343
      %p355 = scmp.eq.s32.totalorder %s29, 1
      %p356 = por %p354, %p355
      %p358 = scmp.ne.s32.totalorder %s343, %s357
      %p359 = scmp.eq.s32.totalorder %s29, 0
      %p360 = por %p358, %p359
      %s362 = sadd.s32 %s361, 1
      %p365 = scmp.eq.s32.totalorder %s23, 1
      %p366 = scmp.ne.s32.totalorder %s361, %s363
      %p367 = scmp.eq.s32.totalorder %s23, 0
      %p368 = por %p366, %p367
      %p369 = scmp.ne.s32.totalorder %s361, %s363
      %p370 = scmp.eq.s32.totalorder %s28, 1
      %p371 = por %p369, %p370
      %p372 = scmp.ne.s32.totalorder %s363, %s364
      %p373 = scmp.eq.s32.totalorder %s28, 0
      %p374 = por %p372, %p373
      %p375 = scmp.ne.s32.totalorder %s363, %s364
      %p376 = scmp.eq.s32.totalorder %s29, 1
      %p377 = por %p375, %p376
      %p379 = scmp.ne.s32.totalorder %s364, %s378
      %p380 = scmp.eq.s32.totalorder %s29, 0
      %p381 = por %p379, %p380
      %s383 = sadd.s32 %s382, 1
      %p386 = scmp.eq.s32.totalorder %s23, 1
      %p387 = scmp.ne.s32.totalorder %s382, %s384
      %p388 = scmp.eq.s32.totalorder %s23, 0
      %p389 = por %p387, %p388
      %p390 = scmp.ne.s32.totalorder %s382, %s384
      %p391 = scmp.eq.s32.totalorder %s28, 1
      %p392 = por %p390, %p391
      %p393 = scmp.ne.s32.totalorder %s384, %s385
      %p394 = scmp.eq.s32.totalorder %s28, 0
      %p395 = por %p393, %p394
      %p396 = scmp.ne.s32.totalorder %s384, %s385
      %p397 = scmp.eq.s32.totalorder %s29, 1
      %p398 = por %p396, %p397
      %p400 = scmp.ne.s32.totalorder %s385, %s399
      %p401 = scmp.eq.s32.totalorder %s29, 0
      %p402 = por %p400, %p401
      %s404 = sadd.s32 %s403, 1
      %p407 = scmp.eq.s32.totalorder %s23, 1
      %p408 = scmp.ne.s32.totalorder %s403, %s405
      %p409 = scmp.eq.s32.totalorder %s23, 0
      %p410 = por %p408, %p409
      %p411 = scmp.ne.s32.totalorder %s403, %s405
      %p412 = scmp.eq.s32.totalorder %s28, 1
      %p413 = por %p411, %p412
      %p414 = scmp.ne.s32.totalorder %s405, %s406
      %p415 = scmp.eq.s32.totalorder %s28, 0
      %p416 = por %p414, %p415
      %p417 = scmp.ne.s32.totalorder %s405, %s406
      %p418 = scmp.eq.s32.totalorder %s29, 1
      %p419 = por %p417, %p418
      %p421 = scmp.ne.s32.totalorder %s406, %s420
      %p422 = scmp.eq.s32.totalorder %s29, 0
      %p423 = por %p421, %p422
      %s424 = ssub.s32 %s30, %s42
      %p425 = scmp.eq.s32.totalorder %s424, 0
      %s427 = sadd.s32 %s426, 1
      %s428 = scalar_select %p425, %s426, %s427
      %p431 = pneg %p425
      %p432 = scmp.eq.s32.totalorder %s23, 1
      %p433 = por %p431, %p432
      %p434 = scmp.ne.s32.totalorder %s426, %s429
      %p435 = scmp.eq.s32.totalorder %s23, 0
      %p436 = por %p434, %p435
      %p437 = scmp.ne.s32.totalorder %s426, %s429
      %p438 = scmp.eq.s32.totalorder %s28, 1
      %p439 = por %p437, %p438
      %p440 = scmp.ne.s32.totalorder %s429, %s430
      %p441 = scmp.eq.s32.totalorder %s28, 0
      %p442 = por %p440, %p441
      %p443 = scmp.ne.s32.totalorder %s429, %s430
      %p444 = scmp.eq.s32.totalorder %s29, 1
      %p445 = por %p443, %p444
      %p447 = scmp.ne.s32.totalorder %s430, %s446
      %p448 = scmp.eq.s32.totalorder %s29, 0
      %p449 = por %p447, %p448
      %p450 = scmp.le.s32.totalorder 1, %s23
      %p451 = scmp.lt.s32.totalorder %s23, 3
      %p452 = pnand %p450, %p451
      %p453 = pneg %p452
      // Predicated region
      $region9: #{mlp_mixer_forward.1} parent=5 // pred_check
        _
      $region10: #{mlp_mixer_forward.1} parent=5 // pred_check_branch
        %455 = sbr.rel (%p452) target = $region12
      $region11: #{mlp_mixer_forward.1} parent=5 // pred_region
        %s456 = ssub.s32 %s23, 1
        // Predicated region
        $region13: #{mlp_mixer_forward.1} parent=11 // pred_check
          %p457 = pneg %p61
        $region14: #{mlp_mixer_forward.1} parent=11 // pred_check_branch
          %459 = sbr.rel (%p457) target = $region16
        $region15: #{mlp_mixer_forward.1} parent=11 // pred_region
          %s460 = smul.u32 16, %s32
          %p461 = scmp.lt.s32.totalorder %s460, 15
          %s462 = scalar_select %p461, %s460, 15
          %s463 = smul.addr %s462, 4
          %s464 = scalar_lea.vmem %s0, %s463
          %s465 = smul.u32 16, %s32
        $region16: #{mlp_mixer_forward.1} parent=11 // pred_fallthru
          _
        // Predicated region
        $region17: #{mlp_mixer_forward.1} parent=11 // pred_check
          %p466 = pneg %p82
        $region18: #{mlp_mixer_forward.1} parent=11 // pred_check_branch
          %468 = sbr.rel (%p466) target = $region20
        $region19: #{mlp_mixer_forward.1} parent=11 // pred_region
          _
        $region20: #{mlp_mixer_forward.1} parent=11 // pred_fallthru
          _
        // Predicated region
        $region21: #{mlp_mixer_forward.1} parent=11 // pred_check
          %p469 = pneg %p103
        $region22: #{mlp_mixer_forward.1} parent=11 // pred_check_branch
          %471 = sbr.rel (%p469) target = $region24
        $region23: #{mlp_mixer_forward.1} parent=11 // pred_region
          _
        $region24: #{mlp_mixer_forward.1} parent=11 // pred_fallthru
          _
        // Predicated region
        $region25: #{mlp_mixer_forward.1} parent=11 // pred_check
          %p472 = pneg %p332
        $region26: #{mlp_mixer_forward.1} parent=11 // pred_check_branch
          %474 = sbr.rel (%p472) target = $region28
        $region27: #{mlp_mixer_forward.1} parent=11 // pred_region
          _
        $region28: #{mlp_mixer_forward.1} parent=11 // pred_fallthru
          _
        // Predicated region
        $region29: #{mlp_mixer_forward.1} parent=11 // pred_check
          %p475 = pneg %p353
        $region30: #{mlp_mixer_forward.1} parent=11 // pred_check_branch
          %477 = sbr.rel (%p475) target = $region32
        $region31: #{mlp_mixer_forward.1} parent=11 // pred_region
          _
        $region32: #{mlp_mixer_forward.1} parent=11 // pred_fallthru
          _
        // Predicated region
        $region33: #{mlp_mixer_forward.1} parent=11 // pred_check
          %p478 = pneg %p374
        $region34: #{mlp_mixer_forward.1} parent=11 // pred_check_branch
          %480 = sbr.rel (%p478) target = $region36
        $region35: #{mlp_mixer_forward.1} parent=11 // pred_region
          _
        $region36: #{mlp_mixer_forward.1} parent=11 // pred_fallthru
          _
        // Predicated region
        $region37: #{mlp_mixer_forward.1} parent=11 // pred_check
          %p481 = pneg %p395
        $region38: #{mlp_mixer_forward.1} parent=11 // pred_check_branch
          %483 = sbr.rel (%p481) target = $region40
        $region39: #{mlp_mixer_forward.1} parent=11 // pred_region
          _
        $region40: #{mlp_mixer_forward.1} parent=11 // pred_fallthru
          _
        // Predicated region
        $region41: #{mlp_mixer_forward.1} parent=11 // pred_check
          %p484 = pneg %p416
        $region42: #{mlp_mixer_forward.1} parent=11 // pred_check_branch
          %486 = sbr.rel (%p484) target = $region44
        $region43: #{mlp_mixer_forward.1} parent=11 // pred_region
          _
        $region44: #{mlp_mixer_forward.1} parent=11 // pred_fallthru
          _
      $region12: #{mlp_mixer_forward.1} parent=5 // pred_fallthru
        _
      %p487 = scmp.lt.s32.totalorder %s23, 2
      // Predicated region
      $region45: #{mlp_mixer_forward.1} parent=5 // pred_check
        %p488 = pneg %p487
      $region46: #{mlp_mixer_forward.1} parent=5 // pred_check_branch
        %490 = sbr.rel (%p488) target = $region48
      $region47: #{mlp_mixer_forward.1} parent=5 // pred_region
        // Predicated region
        $region49: #{mlp_mixer_forward.1} parent=47 // pred_check
          %p491 = pneg %p123
        $region50: #{mlp_mixer_forward.1} parent=47 // pred_check_branch
          %493 = sbr.rel (%p491) target = $region52
        $region51: #{mlp_mixer_forward.1} parent=47 // pred_region
          %p494 = scmp.lt.s32.totalorder %s31, 1
          %s495 = scalar_select %p494, %s31, 1
          %s496 = scalar_lea.vmem %s3, %s495
        $region52: #{mlp_mixer_forward.1} parent=47 // pred_fallthru
          _
        // Predicated region
        $region53: #{mlp_mixer_forward.1} parent=47 // pred_check
          %p497 = pneg %p149
        $region54: #{mlp_mixer_forward.1} parent=47 // pred_check_branch
          %499 = sbr.rel (%p497) target = $region56
        $region55: #{mlp_mixer_forward.1} parent=47 // pred_region
          %p500 = scmp.lt.s32.totalorder %s31, 1
          %s501 = scalar_select %p500, %s31, 1
          %s502 = scalar_lea.vmem %s4, %s501
        $region56: #{mlp_mixer_forward.1} parent=47 // pred_fallthru
          _
        // Predicated region
        $region57: #{mlp_mixer_forward.1} parent=47 // pred_check
          %p503 = pneg %p175
        $region58: #{mlp_mixer_forward.1} parent=47 // pred_check_branch
          %505 = sbr.rel (%p503) target = $region60
        $region59: #{mlp_mixer_forward.1} parent=47 // pred_region
          %p506 = scmp.lt.s32.totalorder %s31, 1
          %s507 = scalar_select %p506, %s31, 1
          %s508 = smul.addr %s507, 16
          %s509 = smul.addr %s508, 4
          %s510 = scalar_lea.vmem %s5, %s509
        $region60: #{mlp_mixer_forward.1} parent=47 // pred_fallthru
          _
        // Predicated region
        $region61: #{mlp_mixer_forward.1} parent=47 // pred_check
          %p511 = pneg %p201
        $region62: #{mlp_mixer_forward.1} parent=47 // pred_check_branch
          %513 = sbr.rel (%p511) target = $region64
        $region63: #{mlp_mixer_forward.1} parent=47 // pred_region
          %p514 = scmp.lt.s32.totalorder %s31, 1
          %s515 = scalar_select %p514, %s31, 1
          %s516 = smul.addr %s515, 16
          %s517 = smul.addr %s516, 4
          %s518 = scalar_lea.vmem %s6, %s517
        $region64: #{mlp_mixer_forward.1} parent=47 // pred_fallthru
          _
        // Predicated region
        $region65: #{mlp_mixer_forward.1} parent=47 // pred_check
          %p519 = pneg %p227
        $region66: #{mlp_mixer_forward.1} parent=47 // pred_check_branch
          %521 = sbr.rel (%p519) target = $region68
        $region67: #{mlp_mixer_forward.1} parent=47 // pred_region
          %p522 = scmp.lt.s32.totalorder %s31, 1
          %s523 = scalar_select %p522, %s31, 1
          %s524 = scalar_lea.vmem %s7, %s523
        $region68: #{mlp_mixer_forward.1} parent=47 // pred_fallthru
          _
        // Predicated region
        $region69: #{mlp_mixer_forward.1} parent=47 // pred_check
          %p525 = pneg %p253
        $region70: #{mlp_mixer_forward.1} parent=47 // pred_check_branch
          %527 = sbr.rel (%p525) target = $region72
        $region71: #{mlp_mixer_forward.1} parent=47 // pred_region
          %p528 = scmp.lt.s32.totalorder %s31, 1
          %s529 = scalar_select %p528, %s31, 1
          %s530 = scalar_lea.vmem %s8, %s529
        $region72: #{mlp_mixer_forward.1} parent=47 // pred_fallthru
          _
        // Predicated region
        $region73: #{mlp_mixer_forward.1} parent=47 // pred_check
          %p531 = pneg %p279
        $region74: #{mlp_mixer_forward.1} parent=47 // pred_check_branch
          %533 = sbr.rel (%p531) target = $region76
        $region75: #{mlp_mixer_forward.1} parent=47 // pred_region
          %p534 = scmp.lt.s32.totalorder %s31, 1
          %s535 = scalar_select %p534, %s31, 1
          %s536 = smul.addr %s535, 4
          %s537 = smul.addr %s536, 4
          %s538 = scalar_lea.vmem %s9, %s537
        $region76: #{mlp_mixer_forward.1} parent=47 // pred_fallthru
          _
        // Predicated region
        $region77: #{mlp_mixer_forward.1} parent=47 // pred_check
          %p539 = pneg %p305
        $region78: #{mlp_mixer_forward.1} parent=47 // pred_check_branch
          %541 = sbr.rel (%p539) target = $region80
        $region79: #{mlp_mixer_forward.1} parent=47 // pred_region
          %p542 = scmp.lt.s32.totalorder %s31, 1
          %s543 = scalar_select %p542, %s31, 1
          %s544 = smul.addr %s543, 8
          %s545 = smul.addr %s544, 4
          %s546 = scalar_lea.vmem %s10, %s545
        $region80: #{mlp_mixer_forward.1} parent=47 // pred_fallthru
          _
      $region48: #{mlp_mixer_forward.1} parent=5 // pred_fallthru
        _
      %p547 = scmp.le.s32.totalorder 1, %s23
      %p548 = scmp.lt.s32.totalorder %s23, 3
      %p549 = pnand %p547, %p548
      %p550 = pneg %p549
      // Predicated region
      $region81: #{mlp_mixer_forward.1} parent=5 // pred_check
        _
      $region82: #{mlp_mixer_forward.1} parent=5 // pred_check_branch
        %552 = sbr.rel (%p549) target = $region84
      $region83: #{mlp_mixer_forward.1} parent=5 // pred_region
        %s553 = ssub.s32 %s23, 1
        %s554 = smul.u32 16, %s32
        %p555 = scmp.lt.s32.totalorder %s554, 15
        %s556 = scalar_select %p555, %s554, 15
        %s557 = smul.addr %s556, 4
        %s558 = scalar_lea.vmem %s0, %s557
        %p559 = pneg %p61
        %p560 = pneg %p58
        %p561 = pneg %p82
        %p562 = pneg %p79
        %p563 = pneg %p103
        %p564 = pneg %p100
        %p565 = scmp.lt.s32.totalorder %s33, 1
        %s566 = scalar_select %p565, %s33, 1
        %s567 = scalar_lea.vmem %s3, %s566
        %p568 = pneg %p129
        %p569 = pneg %p126
        %p570 = scmp.lt.s32.totalorder %s33, 1
        %s571 = scalar_select %p570, %s33, 1
        %s572 = scalar_lea.vmem %s4, %s571
        %p573 = pneg %p155
        %p574 = pneg %p152
        %p575 = scmp.lt.s32.totalorder %s33, 1
        %s576 = scalar_select %p575, %s33, 1
        %s577 = smul.addr %s576, 16
        %s578 = smul.addr %s577, 4
        %s579 = scalar_lea.vmem %s5, %s578
        %p580 = pneg %p181
        %p581 = pneg %p178
        %p582 = scmp.lt.s32.totalorder %s33, 1
        %s583 = scalar_select %p582, %s33, 1
        %s584 = smul.addr %s583, 16
        %s585 = smul.addr %s584, 4
        %s586 = scalar_lea.vmem %s6, %s585
        %p587 = pneg %p207
        %p588 = pneg %p204
        %p589 = scmp.lt.s32.totalorder %s33, 1
        %s590 = scalar_select %p589, %s33, 1
        %s591 = scalar_lea.vmem %s7, %s590
        %p592 = pneg %p233
        %p593 = pneg %p230
        %p594 = scmp.lt.s32.totalorder %s33, 1
        %s595 = scalar_select %p594, %s33, 1
        %s596 = scalar_lea.vmem %s8, %s595
        %p597 = pneg %p259
        %p598 = pneg %p256
        %p599 = scmp.lt.s32.totalorder %s33, 1
        %s600 = scalar_select %p599, %s33, 1
        %s601 = smul.addr %s600, 4
        %s602 = smul.addr %s601, 4
        %s603 = scalar_lea.vmem %s9, %s602
        %p604 = pneg %p285
        %p605 = pneg %p282
        %p606 = scmp.lt.s32.totalorder %s33, 1
        %s607 = scalar_select %p606, %s33, 1
        %s608 = smul.addr %s607, 8
        %s609 = smul.addr %s608, 4
        %s610 = scalar_lea.vmem %s10, %s609
        %p611 = pneg %p311
        %p612 = pneg %p308
        %p613 = pneg %p332
        %p614 = pneg %p329
        %p615 = pneg %p353
        %p616 = pneg %p350
        %p617 = pneg %p374
        %p618 = pneg %p371
        %p619 = pneg %p395
        %p620 = pneg %p392
        %p621 = pneg %p416
        %p622 = pneg %p413
        %p623 = pneg %p442
        %p624 = pneg %p439
        %s625 = smul.u32 16, %s32
        %p626 = scmp.lt.s32.totalorder %s625, 15
        %s627 = scalar_select %p626, %s625, 15
        %s628 = smul.addr %s627, 4
        %s629 = scalar_lea.vmem %s0, %s628
        %s630 = smul.u32 16, %s32
        %p631 = scmp.lt.s32.totalorder %s33, 1
        %s632 = scalar_select %p631, %s33, 1
        %s633 = scalar_lea.vmem %s3, %s632
        %p634 = scmp.lt.s32.totalorder %s33, 1
        %s635 = scalar_select %p634, %s33, 1
        %s636 = scalar_lea.vmem %s4, %s635
        %p637 = scmp.lt.s32.totalorder %s33, 1
        %s638 = scalar_select %p637, %s33, 1
        %s639 = smul.addr %s638, 16
        %s640 = smul.addr %s639, 4
        %s641 = scalar_lea.vmem %s5, %s640
        %p642 = scmp.lt.s32.totalorder %s33, 1
        %s643 = scalar_select %p642, %s33, 1
        %s644 = smul.addr %s643, 16
        %s645 = smul.addr %s644, 4
        %s646 = scalar_lea.vmem %s6, %s645
        %p647 = scmp.lt.s32.totalorder %s33, 1
        %s648 = scalar_select %p647, %s33, 1
        %s649 = scalar_lea.vmem %s7, %s648
        %p650 = scmp.lt.s32.totalorder %s33, 1
        %s651 = scalar_select %p650, %s33, 1
        %s652 = scalar_lea.vmem %s8, %s651
        %p653 = scmp.lt.s32.totalorder %s33, 1
        %s654 = scalar_select %p653, %s33, 1
        %s655 = smul.addr %s654, 4
        %s656 = smul.addr %s655, 4
        %s657 = scalar_lea.vmem %s9, %s656
        %p658 = scmp.lt.s32.totalorder %s33, 1
        %s659 = scalar_select %p658, %s33, 1
        %s660 = smul.addr %s659, 8
        %s661 = smul.addr %s660, 4
        %s662 = scalar_lea.vmem %s10, %s661
        %p664 = scmp.eq.s32.totalorder %s33, 0
        // Predicated region
        $region85: #{mlp_mixer_forward.1} parent=83 // pred_check
          %p665 = pneg %p664
        $region86: #{mlp_mixer_forward.1} parent=83 // pred_check_branch
          %667 = sbr.rel (%p665) target = $region88
        $region87: #{mlp_mixer_forward.1} parent=83 // pred_region
          %v668 = vld [vmem:[%s629] sm:$0xf]
          %v669 = vld [vmem:[%s629 + $0x4] sm:$0xf]
          %v670 = vld [vmem:[%s629 + $0x8] sm:$0xf]
          %v671 = vld [vmem:[%s629 + $0xc] sm:$0xf]
          %v672 = vld [vmem:[%s629 + $0x10] sm:$0xf]
          %v673 = vld [vmem:[%s629 + $0x14] sm:$0xf]
          %v674 = vld [vmem:[%s629 + $0x18] sm:$0xf]
          %v675 = vld [vmem:[%s629 + $0x1c] sm:$0xf]
          %v676 = vld [vmem:[%s629 + $0x20] sm:$0xf]
          %v677 = vld [vmem:[%s629 + $0x24] sm:$0xf]
          %v678 = vld [vmem:[%s629 + $0x28] sm:$0xf]
          %v679 = vld [vmem:[%s629 + $0x2c] sm:$0xf]
          %v680 = vld [vmem:[%s629 + $0x30] sm:$0xf]
          %v681 = vld [vmem:[%s629 + $0x34] sm:$0xf]
          %v682 = vld [vmem:[%s629 + $0x38] sm:$0xf]
          %v683 = vld [vmem:[%s629 + $0x3c] sm:$0xf]
          %v684 = vld [vmem:[%s1] sm:$0xf]
          %v685 = vld [vmem:[%s1 + $0x4] sm:$0xf]
          %v686 = vld [vmem:[%s2] sm:$0x1]
          %v688 = vlaneseq
          %v689 = vshrl.u32 %v688, 7
          %v690 = vsub.s32 0, %v689
          %v691 = vrot.slane %v686, %v690
          %v709 = vunpack.c.l.b16 %v668
          %v710 = vunpack.c.l.b16 %v669
          %v711 = vunpack.c.l.b16 %v670
          %v712 = vunpack.c.l.b16 %v671
          %v713 = vunpack.c.l.b16 %v672
          %v714 = vunpack.c.l.b16 %v673
          %v715 = vunpack.c.l.b16 %v674
          %v716 = vunpack.c.l.b16 %v675
          %v717 = vunpack.c.l.b16 %v676
          %v718 = vunpack.c.l.b16 %v677
          %v719 = vunpack.c.l.b16 %v678
          %v720 = vunpack.c.l.b16 %v679
          %v721 = vunpack.c.l.b16 %v680
          %v722 = vunpack.c.l.b16 %v681
          %v723 = vunpack.c.l.b16 %v682
          %v724 = vunpack.c.l.b16 %v683
          %v725 = vpack.c.b16 %v710, %v709
          %v726 = vpack.c.b16 %v712, %v711
          %v727 = vpack.c.b16 %v714, %v713
          %v728 = vpack.c.b16 %v716, %v715
          %v729 = vpack.c.b16 %v718, %v717
          %v730 = vpack.c.b16 %v720, %v719
          %v731 = vpack.c.b16 %v722, %v721
          %v732 = vpack.c.b16 %v724, %v723
          %v735 = vunpack.c.l.b16 %v684
          %v736 = vunpack.c.l.b16 %v685
          %v737 = vpack.c.b16 %v736, %v735
          %vm739 = vcmask 130048
          %v741 = vsel %vm739, %v725, 0
          %v744 = vsel %vm739, %v726, 0
          %v747 = vsel %vm739, %v727, 0
          %v750 = vsel %vm739, %v728, 0
          %v753 = vsel %vm739, %v729, 0
          %v756 = vsel %vm739, %v730, 0
          %v759 = vsel %vm739, %v731, 0
          %v762 = vsel %vm739, %v732, 0
          %764 = vmatprep.subr.bf16.mxu0 0
          %765 = vmatpush1.bf16.msra.mxu0 %v737
          %766 = vmatprep.subr.bf16.mxu0 0
          %767 = vmatpush1.bf16.msra.mxu0 0
          %768 = vmatprep.subr.bf16.mxu0 0
          %769 = vmatpush1.bf16.msra.mxu0 0
          %770 = vmatprep.subr.bf16.mxu0 0
          %771 = vmatpush1.bf16.msra.mxu0 0
          %772 = vmatprep.subr.bf16.mxu0 0
          %773 = vmatpush1.bf16.msra.mxu0 0
          %774 = vmatprep.subr.bf16.mxu0 0
          %775 = vmatpush1.bf16.msra.mxu0 0
          %776 = vmatprep.subr.bf16.mxu0 0
          %777 = vmatpush1.bf16.msra.mxu0 0
          %778 = vmatprep.subr.bf16.mxu0 0
          %779 = vmatpush1.bf16.msra.mxu0 0
          %780 = vmatprep.subr.bf16.mxu0 0
          %781 = vmatpush1.bf16.msra.mxu0 0
          %782 = vmatprep.subr.bf16.mxu0 0
          %783 = vmatpush1.bf16.msra.mxu0 0
          %784 = vmatprep.subr.bf16.mxu0 0
          %785 = vmatpush1.bf16.msra.mxu0 0
          %786 = vmatprep.subr.bf16.mxu0 0
          %787 = vmatpush1.bf16.msra.mxu0 0
          %788 = vmatprep.subr.bf16.mxu0 0
          %789 = vmatpush1.bf16.msra.mxu0 0
          %790 = vmatprep.subr.bf16.mxu0 0
          %791 = vmatpush1.bf16.msra.mxu0 0
          %792 = vmatprep.subr.bf16.mxu0 0
          %793 = vmatpush1.bf16.msra.mxu0 0
          %794 = vmatprep.subr.bf16.mxu0 0
          %795 = vmatpush1.bf16.msra.mxu0 0
          %796 = vmatprep.mubr.bf16.mxu0 0
          %797 = vmatmul.mubr.bf16.gmra.mrb[0].mxu0 %v741
          %v798 = vpop.f32.mrb[0].mxu0
          %v799 = vadd.f32 %v691, %v798
          %v800 = vpop.f32.mrb[0].mxu0
          %v801 = vpop.f32.mrb[0].mxu0
          %v802 = vadd.f32 %v691, %v801
          %v803 = vpop.f32.mrb[0].mxu0
          %804 = vmatprep.mubr.bf16.mxu0 0
          %805 = vmatmul.mubr.bf16.gmra.mrb[0].mxu0 %v744
          %v806 = vpop.f32.mrb[0].mxu0
          %v807 = vadd.f32 %v691, %v806
          %v808 = vpop.f32.mrb[0].mxu0
          %v809 = vpop.f32.mrb[0].mxu0
          %v810 = vadd.f32 %v691, %v809
          %v811 = vpop.f32.mrb[0].mxu0
          %812 = vmatprep.mubr.bf16.mxu0 0
          %813 = vmatmul.mubr.bf16.gmra.mrb[0].mxu0 %v747
          %v814 = vpop.f32.mrb[0].mxu0
          %v815 = vadd.f32 %v691, %v814
          %v816 = vpop.f32.mrb[0].mxu0
          %v817 = vpop.f32.mrb[0].mxu0
          %v818 = vadd.f32 %v691, %v817
          %v819 = vpop.f32.mrb[0].mxu0
          %820 = vmatprep.mubr.bf16.mxu0 0
          %821 = vmatmul.mubr.bf16.gmra.mrb[0].mxu0 %v750
          %v822 = vpop.f32.mrb[0].mxu0
          %v823 = vadd.f32 %v691, %v822
          %v824 = vpop.f32.mrb[0].mxu0
          %v825 = vpop.f32.mrb[0].mxu0
          %v826 = vadd.f32 %v691, %v825
          %v827 = vpop.f32.mrb[0].mxu0
          %828 = vmatprep.mubr.bf16.mxu0 0
          %829 = vmatmul.mubr.bf16.gmra.mrb[0].mxu0 %v753
          %v830 = vpop.f32.mrb[0].mxu0
          %v831 = vadd.f32 %v691, %v830
          %v832 = vpop.f32.mrb[0].mxu0
          %v833 = vpop.f32.mrb[0].mxu0
          %v834 = vadd.f32 %v691, %v833
          %v835 = vpop.f32.mrb[0].mxu0
          %836 = vmatprep.mubr.bf16.mxu0 0
          %837 = vmatmul.mubr.bf16.gmra.mrb[0].mxu0 %v756
          %v838 = vpop.f32.mrb[0].mxu0
          %v839 = vadd.f32 %v691, %v838
          %v840 = vpop.f32.mrb[0].mxu0
          %v841 = vpop.f32.mrb[0].mxu0
          %v842 = vadd.f32 %v691, %v841
          %v843 = vpop.f32.mrb[0].mxu0
          %844 = vmatprep.mubr.bf16.mxu0 0
          %845 = vmatmul.mubr.bf16.gmra.mrb[0].mxu0 %v759
          %v846 = vpop.f32.mrb[0].mxu0
          %v847 = vadd.f32 %v691, %v846
          %v848 = vpop.f32.mrb[0].mxu0
          %v849 = vpop.f32.mrb[0].mxu0
          %v850 = vadd.f32 %v691, %v849
          %v851 = vpop.f32.mrb[0].mxu0
          %852 = vmatprep.mubr.bf16.mxu0 0
          %853 = vmatmul.mubr.bf16.gmra.mrb[0].mxu0 %v762
          %v854 = vpop.f32.mrb[0].mxu0
          %v855 = vadd.f32 %v691, %v854
          %v856 = vpop.f32.mrb[0].mxu0
          %v857 = vpop.f32.mrb[0].mxu0
          %v858 = vadd.f32 %v691, %v857
          %v859 = vpop.f32.mrb[0].mxu0
          %860 = vdwg.mxu0
          %vm861 = vcmask 261120
          %862 = vst.msk [vmem:[#allocation2] sm:$0xff] %vm861, %v799
          %863 = vst.msk [vmem:[#allocation2 + $0x8] sm:$0xff] %vm861, %v802
          %864 = vst.msk [vmem:[#allocation2 + $0x10] sm:$0xff] %vm861, %v807
          %865 = vst.msk [vmem:[#allocation2 + $0x18] sm:$0xff] %vm861, %v810
          %866 = vst.msk [vmem:[#allocation2 + $0x20] sm:$0xff] %vm861, %v815
          %867 = vst.msk [vmem:[#allocation2 + $0x28] sm:$0xff] %vm861, %v818
          %868 = vst.msk [vmem:[#allocation2 + $0x30] sm:$0xff] %vm861, %v823
          %869 = vst.msk [vmem:[#allocation2 + $0x38] sm:$0xff] %vm861, %v826
          %870 = vst.msk [vmem:[#allocation2 + $0x40] sm:$0xff] %vm861, %v831
          %871 = vst.msk [vmem:[#allocation2 + $0x48] sm:$0xff] %vm861, %v834
          %872 = vst.msk [vmem:[#allocation2 + $0x50] sm:$0xff] %vm861, %v839
          %873 = vst.msk [vmem:[#allocation2 + $0x58] sm:$0xff] %vm861, %v842
          %874 = vst.msk [vmem:[#allocation2 + $0x60] sm:$0xff] %vm861, %v847
          %875 = vst.msk [vmem:[#allocation2 + $0x68] sm:$0xff] %vm861, %v850
          %876 = vst.msk [vmem:[#allocation2 + $0x70] sm:$0xff] %vm861, %v855
          %877 = vst.msk [vmem:[#allocation2 + $0x78] sm:$0xff] %vm861, %v858
        $region88: #{mlp_mixer_forward.1} parent=83 // pred_fallthru
          _
        %v878 = vld [vmem:[#allocation2] sm:$0xff]
        %v879 = vld [vmem:[#allocation2 + $0x8] sm:$0xff]
        %v880 = vld [vmem:[#allocation2 + $0x10] sm:$0xff]
        %v881 = vld [vmem:[#allocation2 + $0x18] sm:$0xff]
        %v882 = vld [vmem:[#allocation2 + $0x20] sm:$0xff]
        %v883 = vld [vmem:[#allocation2 + $0x28] sm:$0xff]
        %v884 = vld [vmem:[#allocation2 + $0x30] sm:$0xff]
        %v885 = vld [vmem:[#allocation2 + $0x38] sm:$0xff]
        %v886 = vld [vmem:[#allocation2 + $0x40] sm:$0xff]
        %v887 = vld [vmem:[#allocation2 + $0x48] sm:$0xff]
        %v888 = vld [vmem:[#allocation2 + $0x50] sm:$0xff]
        %v889 = vld [vmem:[#allocation2 + $0x58] sm:$0xff]
        %v890 = vld [vmem:[#allocation2 + $0x60] sm:$0xff]
        %v891 = vld [vmem:[#allocation2 + $0x68] sm:$0xff]
        %v892 = vld [vmem:[#allocation2 + $0x70] sm:$0xff]
        %v893 = vld [vmem:[#allocation2 + $0x78] sm:$0xff]
        %v894 = vld [vmem:[%s633] sm:$0x1]
        %v895 = vld [vmem:[%s636] sm:$0x1]
        %vm896 = vcmask 261120
        %v897 = vsel %vm896, %v878, 0.0
        %898 = vadd.xlane.f32.xlu0 %v897
        %v899 = vpop.xlane.xlu0 %898
        %v900 = vsel %vm896, %v879, 0.0
        %901 = vadd.xlane.f32.xlu0 %v900
        %v902 = vpop.xlane.xlu0 %901
        %v903 = vsel %vm896, %v880, 0.0
        %904 = vadd.xlane.f32.xlu0 %v903
        %v905 = vpop.xlane.xlu0 %904
        %v906 = vsel %vm896, %v881, 0.0
        %907 = vadd.xlane.f32.xlu0 %v906
        %v908 = vpop.xlane.xlu0 %907
        %v909 = vsel %vm896, %v882, 0.0
        %910 = vadd.xlane.f32.xlu0 %v909
        %v911 = vpop.xlane.xlu0 %910
        %v912 = vsel %vm896, %v883, 0.0
        %913 = vadd.xlane.f32.xlu0 %v912
        %v914 = vpop.xlane.xlu0 %913
        %v915 = vsel %vm896, %v884, 0.0
        %916 = vadd.xlane.f32.xlu0 %v915
        %v917 = vpop.xlane.xlu0 %916
        %v918 = vsel %vm896, %v885, 0.0
        %919 = vadd.xlane.f32.xlu0 %v918
        %v920 = vpop.xlane.xlu0 %919
        %v921 = vsel %vm896, %v886, 0.0
        %922 = vadd.xlane.f32.xlu0 %v921
        %v923 = vpop.xlane.xlu0 %922
        %v924 = vsel %vm896, %v887, 0.0
        %925 = vadd.xlane.f32.xlu0 %v924
        %v926 = vpop.xlane.xlu0 %925
        %v927 = vsel %vm896, %v888, 0.0
        %928 = vadd.xlane.f32.xlu0 %v927
        %v929 = vpop.xlane.xlu0 %928
        %v930 = vsel %vm896, %v889, 0.0
        %931 = vadd.xlane.f32.xlu0 %v930
        %v932 = vpop.xlane.xlu0 %931
        %v933 = vsel %vm896, %v890, 0.0
        %934 = vadd.xlane.f32.xlu0 %v933
        %v935 = vpop.xlane.xlu0 %934
        %v936 = vsel %vm896, %v891, 0.0
        %937 = vadd.xlane.f32.xlu0 %v936
        %v938 = vpop.xlane.xlu0 %937
        %v939 = vsel %vm896, %v892, 0.0
        %940 = vadd.xlane.f32.xlu0 %v939
        %v941 = vpop.xlane.xlu0 %940
        %v942 = vsel %vm896, %v893, 0.0
        %943 = vadd.xlane.f32.xlu0 %v942
        %v944 = vpop.xlane.xlu0 %943
        %v945 = vrcp.pop 32.0
        %v946 = vmul.f32 %v899, %v945
        %v947 = vmul.f32 %v902, %v945
        %v948 = vmul.f32 %v905, %v945
        %v949 = vmul.f32 %v908, %v945
        %v950 = vmul.f32 %v911, %v945
        %v951 = vmul.f32 %v914, %v945
        %v952 = vmul.f32 %v917, %v945
        %v953 = vmul.f32 %v920, %v945
        %v954 = vmul.f32 %v923, %v945
        %v955 = vmul.f32 %v926, %v945
        %v956 = vmul.f32 %v929, %v945
        %v957 = vmul.f32 %v932, %v945
        %v958 = vmul.f32 %v935, %v945
        %v959 = vmul.f32 %v938, %v945
        %v960 = vmul.f32 %v941, %v945
        %v961 = vmul.f32 %v944, %v945
        %v962 = vsub.f32 %v878, %v946
        %v963 = vsub.f32 %v879, %v947
        %v964 = vsub.f32 %v880, %v948
        %v965 = vsub.f32 %v881, %v949
        %v966 = vsub.f32 %v882, %v950
        %v967 = vsub.f32 %v883, %v951
        %v968 = vsub.f32 %v884, %v952
        %v969 = vsub.f32 %v885, %v953
        %v970 = vsub.f32 %v886, %v954
        %v971 = vsub.f32 %v887, %v955
        %v972 = vsub.f32 %v888, %v956
        %v973 = vsub.f32 %v889, %v957
        %v974 = vsub.f32 %v890, %v958
        %v975 = vsub.f32 %v891, %v959
        %v976 = vsub.f32 %v892, %v960
        %v977 = vsub.f32 %v893, %v961
        %v978 = vmul.f32 %v962, %v962
        %v979 = vmul.f32 %v963, %v963
        %v980 = vmul.f32 %v964, %v964
        %v981 = vmul.f32 %v965, %v965
        %v982 = vmul.f32 %v966, %v966
        %v983 = vmul.f32 %v967, %v967
        %v984 = vmul.f32 %v968, %v968
        %v985 = vmul.f32 %v969, %v969
        %v986 = vmul.f32 %v970, %v970
        %v987 = vmul.f32 %v971, %v971
        %v988 = vmul.f32 %v972, %v972
        %v989 = vmul.f32 %v973, %v973
        %v990 = vmul.f32 %v974, %v974
        %v991 = vmul.f32 %v975, %v975
        %v992 = vmul.f32 %v976, %v976
        %v993 = vmul.f32 %v977, %v977
        %v994 = vsel %vm896, %v978, 0.0
        %995 = vadd.xlane.f32.xlu0 %v994
        %v996 = vpop.xlane.xlu0 %995
        %v997 = vsel %vm896, %v979, 0.0
        %998 = vadd.xlane.f32.xlu0 %v997
        %v999 = vpop.xlane.xlu0 %998
        %v1000 = vsel %vm896, %v980, 0.0
        %1001 = vadd.xlane.f32.xlu0 %v1000
        %v1002 = vpop.xlane.xlu0 %1001
        %v1003 = vsel %vm896, %v981, 0.0
        %1004 = vadd.xlane.f32.xlu0 %v1003
        %v1005 = vpop.xlane.xlu0 %1004
        %v1006 = vsel %vm896, %v982, 0.0
        %1007 = vadd.xlane.f32.xlu0 %v1006
        %v1008 = vpop.xlane.xlu0 %1007
        %v1009 = vsel %vm896, %v983, 0.0
        %1010 = vadd.xlane.f32.xlu0 %v1009
        %v1011 = vpop.xlane.xlu0 %1010
        %v1012 = vsel %vm896, %v984, 0.0
        %1013 = vadd.xlane.f32.xlu0 %v1012
        %v1014 = vpop.xlane.xlu0 %1013
        %v1015 = vsel %vm896, %v985, 0.0
        %1016 = vadd.xlane.f32.xlu0 %v1015
        %v1017 = vpop.xlane.xlu0 %1016
        %v1018 = vsel %vm896, %v986, 0.0
        %1019 = vadd.xlane.f32.xlu0 %v1018
        %v1020 = vpop.xlane.xlu0 %1019
        %v1021 = vsel %vm896, %v987, 0.0
        %1022 = vadd.xlane.f32.xlu0 %v1021
        %v1023 = vpop.xlane.xlu0 %1022
        %v1024 = vsel %vm896, %v988, 0.0
        %1025 = vadd.xlane.f32.xlu0 %v1024
        %v1026 = vpop.xlane.xlu0 %1025
        %v1027 = vsel %vm896, %v989, 0.0
        %1028 = vadd.xlane.f32.xlu0 %v1027
        %v1029 = vpop.xlane.xlu0 %1028
        %v1030 = vsel %vm896, %v990, 0.0
        %1031 = vadd.xlane.f32.xlu0 %v1030
        %v1032 = vpop.xlane.xlu0 %1031
        %v1033 = vsel %vm896, %v991, 0.0
        %1034 = vadd.xlane.f32.xlu0 %v1033
        %v1035 = vpop.xlane.xlu0 %1034
        %v1036 = vsel %vm896, %v992, 0.0
        %1037 = vadd.xlane.f32.xlu0 %v1036
        %v1038 = vpop.xlane.xlu0 %1037
        %v1039 = vsel %vm896, %v993, 0.0
        %1040 = vadd.xlane.f32.xlu0 %v1039
        %v1041 = vpop.xlane.xlu0 %1040
        %v1042 = vmul.f32 %v996, %v945
        %v1043 = vmul.f32 %v999, %v945
        %v1044 = vmul.f32 %v1002, %v945
        %v1045 = vmul.f32 %v1005, %v945
        %v1046 = vmul.f32 %v1008, %v945
        %v1047 = vmul.f32 %v1011, %v945
        %v1048 = vmul.f32 %v1014, %v945
        %v1049 = vmul.f32 %v1017, %v945
        %v1050 = vmul.f32 %v1020, %v945
        %v1051 = vmul.f32 %v1023, %v945
        %v1052 = vmul.f32 %v1026, %v945
        %v1053 = vmul.f32 %v1029, %v945
        %v1054 = vmul.f32 %v1032, %v945
        %v1055 = vmul.f32 %v1035, %v945
        %v1056 = vmul.f32 %v1038, %v945
        %v1057 = vmul.f32 %v1041, %v945
        %v1058 = vadd.f32 %v1042, 1e-05
        %v1059 = vadd.f32 %v1043, 1e-05
        %v1060 = vadd.f32 %v1044, 1e-05
        %v1061 = vadd.f32 %v1045, 1e-05
        %v1062 = vadd.f32 %v1046, 1e-05
        %v1063 = vadd.f32 %v1047, 1e-05
        %v1064 = vadd.f32 %v1048, 1e-05
        %v1065 = vadd.f32 %v1049, 1e-05
        %v1066 = vadd.f32 %v1050, 1e-05
        %v1067 = vadd.f32 %v1051, 1e-05
        %v1068 = vadd.f32 %v1052, 1e-05
        %v1069 = vadd.f32 %v1053, 1e-05
        %v1070 = vadd.f32 %v1054, 1e-05
        %v1071 = vadd.f32 %v1055, 1e-05
        %v1072 = vadd.f32 %v1056, 1e-05
        %v1073 = vadd.f32 %v1057, 1e-05
        %v1074 = vrsqrt.pop %v1058
        %v1075 = vrsqrt.pop %v1059
        %v1076 = vrsqrt.pop %v1060
        %v1077 = vrsqrt.pop %v1061
        %v1078 = vrsqrt.pop %v1062
        %v1079 = vrsqrt.pop %v1063
        %v1080 = vrsqrt.pop %v1064
        %v1081 = vrsqrt.pop %v1065
        %v1082 = vrsqrt.pop %v1066
        %v1083 = vrsqrt.pop %v1067
        %v1084 = vrsqrt.pop %v1068
        %v1085 = vrsqrt.pop %v1069
        %v1086 = vrsqrt.pop %v1070
        %v1087 = vrsqrt.pop %v1071
        %v1088 = vrsqrt.pop %v1072
        %v1089 = vrsqrt.pop %v1073
        %v1090 = vmul.f32 %v962, %v1074
        %v1091 = vmul.f32 %v963, %v1075
        %v1092 = vmul.f32 %v964, %v1076
        %v1093 = vmul.f32 %v965, %v1077
        %v1094 = vmul.f32 %v966, %v1078
        %v1095 = vmul.f32 %v967, %v1079
        %v1096 = vmul.f32 %v968, %v1080
        %v1097 = vmul.f32 %v969, %v1081
        %v1098 = vmul.f32 %v970, %v1082
        %v1099 = vmul.f32 %v971, %v1083
        %v1100 = vmul.f32 %v972, %v1084
        %v1101 = vmul.f32 %v973, %v1085
        %v1102 = vmul.f32 %v974, %v1086
        %v1103 = vmul.f32 %v975, %v1087
        %v1104 = vmul.f32 %v976, %v1088
        %v1105 = vmul.f32 %v977, %v1089
        %v1107 = vlaneseq
        %v1108 = vshrl.u32 %v1107, 7
        %v1109 = vsub.s32 0, %v1108
        %v1110 = vrot.slane %v894, %v1109
        %v1112 = vmul.f32 %v1090, %v1110
        %v1113 = vmul.f32 %v1091, %v1110
        %v1114 = vmul.f32 %v1092, %v1110
        %v1115 = vmul.f32 %v1093, %v1110
        %v1116 = vmul.f32 %v1094, %v1110
        %v1117 = vmul.f32 %v1095, %v1110
        %v1118 = vmul.f32 %v1096, %v1110
        %v1119 = vmul.f32 %v1097, %v1110
        %v1120 = vmul.f32 %v1098, %v1110
        %v1121 = vmul.f32 %v1099, %v1110
        %v1122 = vmul.f32 %v1100, %v1110
        %v1123 = vmul.f32 %v1101, %v1110
        %v1124 = vmul.f32 %v1102, %v1110
        %v1125 = vmul.f32 %v1103, %v1110
        %v1126 = vmul.f32 %v1104, %v1110
        %v1127 = vmul.f32 %v1105, %v1110
        %v1129 = vlaneseq
        %v1130 = vshrl.u32 %v1129, 7
        %v1131 = vsub.s32 0, %v1130
        %v1132 = vrot.slane %v895, %v1131
        %v1134 = vadd.f32 %v1112, %v1132
        %v1135 = vadd.f32 %v1113, %v1132
        %v1136 = vadd.f32 %v1114, %v1132
        %v1137 = vadd.f32 %v1115, %v1132
        %v1138 = vadd.f32 %v1116, %v1132
        %v1139 = vadd.f32 %v1117, %v1132
        %v1140 = vadd.f32 %v1118, %v1132
        %v1141 = vadd.f32 %v1119, %v1132
        %v1142 = vadd.f32 %v1120, %v1132
        %v1143 = vadd.f32 %v1121, %v1132
        %v1144 = vadd.f32 %v1122, %v1132
        %v1145 = vadd.f32 %v1123, %v1132
        %v1146 = vadd.f32 %v1124, %v1132
        %v1147 = vadd.f32 %v1125, %v1132
        %v1148 = vadd.f32 %v1126, %v1132
        %v1149 = vadd.f32 %v1127, %v1132
        %v1150 = vpack.c.bf16 %v1135, %v1134
        %v1151 = vpack.c.bf16 %v1137, %v1136
        %v1152 = vpack.c.bf16 %v1139, %v1138
        %v1153 = vpack.c.bf16 %v1141, %v1140
        %v1154 = vpack.c.bf16 %v1143, %v1142
        %v1155 = vpack.c.bf16 %v1145, %v1144
        %v1156 = vpack.c.bf16 %v1147, %v1146
        %v1157 = vpack.c.bf16 %v1149, %v1148
        %v1158 = vld [vmem:[%s641] sm:$0xf]
        %v1159 = vld [vmem:[%s641 + $0x4] sm:$0xf]
        %v1160 = vld [vmem:[%s641 + $0x8] sm:$0xf]
        %v1161 = vld [vmem:[%s641 + $0xc] sm:$0xf]
        %v1162 = vld [vmem:[%s641 + $0x10] sm:$0xf]
        %v1163 = vld [vmem:[%s641 + $0x14] sm:$0xf]
        %v1164 = vld [vmem:[%s641 + $0x18] sm:$0xf]
        %v1165 = vld [vmem:[%s641 + $0x1c] sm:$0xf]
        %v1166 = vld [vmem:[%s641 + $0x20] sm:$0xf]
        %v1167 = vld [vmem:[%s641 + $0x24] sm:$0xf]
        %v1168 = vld [vmem:[%s641 + $0x28] sm:$0xf]
        %v1169 = vld [vmem:[%s641 + $0x2c] sm:$0xf]
        %v1170 = vld [vmem:[%s641 + $0x30] sm:$0xf]
        %v1171 = vld [vmem:[%s641 + $0x34] sm:$0xf]
        %v1172 = vld [vmem:[%s641 + $0x38] sm:$0xf]
        %v1173 = vld [vmem:[%s641 + $0x3c] sm:$0xf]
        %v1190 = vunpack.c.l.b16 %v1158
        %v1191 = vunpack.c.l.b16 %v1159
        %v1192 = vunpack.c.l.b16 %v1160
        %v1193 = vunpack.c.l.b16 %v1161
        %v1194 = vunpack.c.l.b16 %v1162
        %v1195 = vunpack.c.l.b16 %v1163
        %v1196 = vunpack.c.l.b16 %v1164
        %v1197 = vunpack.c.l.b16 %v1165
        %v1198 = vunpack.c.l.b16 %v1166
        %v1199 = vunpack.c.l.b16 %v1167
        %v1200 = vunpack.c.l.b16 %v1168
        %v1201 = vunpack.c.l.b16 %v1169
        %v1202 = vunpack.c.l.b16 %v1170
        %v1203 = vunpack.c.l.b16 %v1171
        %v1204 = vunpack.c.l.b16 %v1172
        %v1205 = vunpack.c.l.b16 %v1173
        %v1206 = vpack.c.b16 %v1191, %v1190
        %v1207 = vpack.c.b16 %v1193, %v1192
        %v1208 = vpack.c.b16 %v1195, %v1194
        %v1209 = vpack.c.b16 %v1197, %v1196
        %v1210 = vpack.c.b16 %v1199, %v1198
        %v1211 = vpack.c.b16 %v1201, %v1200
        %v1212 = vpack.c.b16 %v1203, %v1202
        %v1213 = vpack.c.b16 %v1205, %v1204
        %1222 = vxpose.xlu0.c.b16.start [1/8] %v1206, 128
        %1223 = vxpose.xlu0.c.b16.cont [2/8] %v1207, 128
        %1224 = vxpose.xlu0.c.b16.cont [3/8] %v1208, 128
        %1225 = vxpose.xlu0.c.b16.cont [4/8] %v1209, 128
        %1226 = vxpose.xlu0.c.b16.cont [5/8] %v1210, 128
        %1227 = vxpose.xlu0.c.b16.cont [6/8] %v1211, 128
        %1228 = vxpose.xlu0.c.b16.cont [7/8] %v1212, 128
        %1229 = vxpose.xlu0.c.b16.end [8/8] %v1213, 128
        %v1230 = vpop.trf.xlu0
        %v1231 = vpop.trf.xlu0
        %v1232 = vpop.trf.xlu0
        %v1233 = vpop.trf.xlu0
        %v1234 = vpop.trf.xlu0
        %v1235 = vpop.trf.xlu0
        %v1236 = vpop.trf.xlu0
        %v1237 = vpop.trf.xlu0
        %1238 = vmatprep.subr.bf16.mxu0 0
        %1239 = vmatpush1.bf16.msra.mxu0 %v1150
        %1240 = vmatprep.subr.bf16.mxu0 0
        %1241 = vmatpush1.bf16.msra.mxu0 %v1151
        %1242 = vmatprep.subr.bf16.mxu0 0
        %1243 = vmatpush1.bf16.msra.mxu0 %v1152
        %1244 = vmatprep.subr.bf16.mxu0 0
        %1245 = vmatpush1.bf16.msra.mxu0 %v1153
        %1246 = vmatprep.subr.bf16.mxu0 0
        %1247 = vmatpush1.bf16.msra.mxu0 %v1154
        %1248 = vmatprep.subr.bf16.mxu0 0
        %1249 = vmatpush1.bf16.msra.mxu0 %v1155
        %1250 = vmatprep.subr.bf16.mxu0 0
        %1251 = vmatpush1.bf16.msra.mxu0 %v1156
        %1252 = vmatprep.subr.bf16.mxu0 0
        %1253 = vmatpush1.bf16.msra.mxu0 %v1157
        %1254 = vmatprep.subr.bf16.mxu0 0
        %1255 = vmatpush1.bf16.msra.mxu0 0
        %1256 = vmatprep.subr.bf16.mxu0 0
        %1257 = vmatpush1.bf16.msra.mxu0 0
        %1258 = vmatprep.subr.bf16.mxu0 0
        %1259 = vmatpush1.bf16.msra.mxu0 0
        %1260 = vmatprep.subr.bf16.mxu0 0
        %1261 = vmatpush1.bf16.msra.mxu0 0
        %1262 = vmatprep.subr.bf16.mxu0 0
        %1263 = vmatpush1.bf16.msra.mxu0 0
        %1264 = vmatprep.subr.bf16.mxu0 0
        %1265 = vmatpush1.bf16.msra.mxu0 0
        %1266 = vmatprep.subr.bf16.mxu0 0
        %1267 = vmatpush1.bf16.msra.mxu0 0
        %1268 = vmatprep.subr.bf16.mxu0 0
        %1269 = vmatpush1.bf16.msra.mxu0 0
        %1270 = vmatprep.mubr.bf16.mxu0 0
        %1271 = vmatmul.mubr.bf16.gmra.mrb[0].mxu0 %v1230
        %v1272 = vpop.f32.mrb[0].mxu0
        %v1273 = vadd.f32 0.0, %v1272
        %v1274 = vpop.f32.mrb[0].mxu0
        %v1275 = vpop.f32.mrb[0].mxu0
        %v1276 = vadd.f32 0.0, %v1275
        %v1277 = vpop.f32.mrb[0].mxu0
        %1278 = vmatprep.mubr.bf16.mxu0 0
        %1279 = vmatmul.mubr.bf16.gmra.mrb[0].mxu0 %v1231
        %v1280 = vpop.f32.mrb[0].mxu0
        %v1281 = vadd.f32 0.0, %v1280
        %v1282 = vpop.f32.mrb[0].mxu0
        %v1283 = vpop.f32.mrb[0].mxu0
        %v1284 = vadd.f32 0.0, %v1283
        %v1285 = vpop.f32.mrb[0].mxu0
        %1286 = vmatprep.mubr.bf16.mxu0 0
        %1287 = vmatmul.mubr.bf16.gmra.mrb[0].mxu0 %v1232
        %v1288 = vpop.f32.mrb[0].mxu0
        %v1289 = vadd.f32 0.0, %v1288
        %v1290 = vpop.f32.mrb[0].mxu0
        %v1291 = vpop.f32.mrb[0].mxu0
        %v1292 = vadd.f32 0.0, %v1291
        %v1293 = vpop.f32.mrb[0].mxu0
        %1294 = vmatprep.mubr.bf16.mxu0 0
        %1295 = vmatmul.mubr.bf16.gmra.mrb[0].mxu0 %v1233
        %v1296 = vpop.f32.mrb[0].mxu0
        %v1297 = vadd.f32 0.0, %v1296
        %v1298 = vpop.f32.mrb[0].mxu0
        %v1299 = vpop.f32.mrb[0].mxu0
        %v1300 = vadd.f32 0.0, %v1299
        %v1301 = vpop.f32.mrb[0].mxu0
        %1302 = vmatprep.mubr.bf16.mxu0 0
        %1303 = vmatmul.mubr.bf16.gmra.mrb[0].mxu0 %v1234
        %v1304 = vpop.f32.mrb[0].mxu0
        %v1305 = vadd.f32 0.0, %v1304
        %v1306 = vpop.f32.mrb[0].mxu0
        %v1307 = vpop.f32.mrb[0].mxu0
        %v1308 = vadd.f32 0.0, %v1307
        %v1309 = vpop.f32.mrb[0].mxu0
        %1310 = vmatprep.mubr.bf16.mxu0 0
        %1311 = vmatmul.mubr.bf16.gmra.mrb[0].mxu0 %v1235
        %v1312 = vpop.f32.mrb[0].mxu0
        %v1313 = vadd.f32 0.0, %v1312
        %v1314 = vpop.f32.mrb[0].mxu0
        %v1315 = vpop.f32.mrb[0].mxu0
        %v1316 = vadd.f32 0.0, %v1315
        %v1317 = vpop.f32.mrb[0].mxu0
        %1318 = vmatprep.mubr.bf16.mxu0 0
        %1319 = vmatmul.mubr.bf16.gmra.mrb[0].mxu0 %v1236
        %v1320 = vpop.f32.mrb[0].mxu0
        %v1321 = vadd.f32 0.0, %v1320
        %v1322 = vpop.f32.mrb[0].mxu0
        %v1323 = vpop.f32.mrb[0].mxu0
        %v1324 = vadd.f32 0.0, %v1323
        %v1325 = vpop.f32.mrb[0].mxu0
        %1326 = vmatprep.mubr.bf16.mxu0 0
        %1327 = vmatmul.mubr.bf16.gmra.mrb[0].mxu0 %v1237
        %v1328 = vpop.f32.mrb[0].mxu0
        %v1329 = vadd.f32 0.0, %v1328
        %v1330 = vpop.f32.mrb[0].mxu0
        %v1331 = vpop.f32.mrb[0].mxu0
        %v1332 = vadd.f32 0.0, %v1331
        %v1333 = vpop.f32.mrb[0].mxu0
        %1334 = vdwg.mxu0
        %v1335 = vmul.f32 %v1273, 0.5
        %v1336 = vmul.f32 %v1276, 0.5
        %v1337 = vmul.f32 %v1281, 0.5
        %v1338 = vmul.f32 %v1284, 0.5
        %v1339 = vmul.f32 %v1289, 0.5
        %v1340 = vmul.f32 %v1292, 0.5
        %v1341 = vmul.f32 %v1297, 0.5
        %v1342 = vmul.f32 %v1300, 0.5
        %v1343 = vmul.f32 %v1305, 0.5
        %v1344 = vmul.f32 %v1308, 0.5
        %v1345 = vmul.f32 %v1313, 0.5
        %v1346 = vmul.f32 %v1316, 0.5
        %v1347 = vmul.f32 %v1321, 0.5
        %v1348 = vmul.f32 %v1324, 0.5
        %v1349 = vmul.f32 %v1329, 0.5
        %v1350 = vmul.f32 %v1332, 0.5
        %v1351 = vmul.f32 %v1273, 0.70710677
        %v1352 = vmul.f32 %v1276, 0.70710677
        %v1353 = vmul.f32 %v1281, 0.70710677
        %v1354 = vmul.f32 %v1284, 0.70710677
        %v1355 = vmul.f32 %v1289, 0.70710677
        %v1356 = vmul.f32 %v1292, 0.70710677
        %v1357 = vmul.f32 %v1297, 0.70710677
        %v1358 = vmul.f32 %v1300, 0.70710677
        %v1359 = vmul.f32 %v1305, 0.70710677
        %v1360 = vmul.f32 %v1308, 0.70710677
        %v1361 = vmul.f32 %v1313, 0.70710677
        %v1362 = vmul.f32 %v1316, 0.70710677
        %v1363 = vmul.f32 %v1321, 0.70710677
        %v1364 = vmul.f32 %v1324, 0.70710677
        %v1365 = vmul.f32 %v1329, 0.70710677
        %v1366 = vmul.f32 %v1332, 0.70710677
        %v1367 = verf.f32.pop %v1351
        %v1368 = verf.f32.pop %v1352
        %v1369 = verf.f32.pop %v1353
        %v1370 = verf.f32.pop %v1354
        %v1371 = verf.f32.pop %v1355
        %v1372 = verf.f32.pop %v1356
        %v1373 = verf.f32.pop %v1357
        %v1374 = verf.f32.pop %v1358
        %v1375 = verf.f32.pop %v1359
        %v1376 = verf.f32.pop %v1360
        %v1377 = verf.f32.pop %v1361
        %v1378 = verf.f32.pop %v1362
        %v1379 = verf.f32.pop %v1363
        %v1380 = verf.f32.pop %v1364
        %v1381 = verf.f32.pop %v1365
        %v1382 = verf.f32.pop %v1366
        %v1383 = vadd.f32 %v1367, 1.0
        %v1384 = vadd.f32 %v1368, 1.0
        %v1385 = vadd.f32 %v1369, 1.0
        %v1386 = vadd.f32 %v1370, 1.0
        %v1387 = vadd.f32 %v1371, 1.0
        %v1388 = vadd.f32 %v1372, 1.0
        %v1389 = vadd.f32 %v1373, 1.0
        %v1390 = vadd.f32 %v1374, 1.0
        %v1391 = vadd.f32 %v1375, 1.0
        %v1392 = vadd.f32 %v1376, 1.0
        %v1393 = vadd.f32 %v1377, 1.0
        %v1394 = vadd.f32 %v1378, 1.0
        %v1395 = vadd.f32 %v1379, 1.0
        %v1396 = vadd.f32 %v1380, 1.0
        %v1397 = vadd.f32 %v1381, 1.0
        %v1398 = vadd.f32 %v1382, 1.0
        %v1399 = vmul.f32 %v1335, %v1383
        %v1400 = vmul.f32 %v1336, %v1384
        %v1401 = vmul.f32 %v1337, %v1385
        %v1402 = vmul.f32 %v1338, %v1386
        %v1403 = vmul.f32 %v1339, %v1387
        %v1404 = vmul.f32 %v1340, %v1388
        %v1405 = vmul.f32 %v1341, %v1389
        %v1406 = vmul.f32 %v1342, %v1390
        %v1407 = vmul.f32 %v1343, %v1391
        %v1408 = vmul.f32 %v1344, %v1392
        %v1409 = vmul.f32 %v1345, %v1393
        %v1410 = vmul.f32 %v1346, %v1394
        %v1411 = vmul.f32 %v1347, %v1395
        %v1412 = vmul.f32 %v1348, %v1396
        %v1413 = vmul.f32 %v1349, %v1397
        %v1414 = vmul.f32 %v1350, %v1398
        %v1415 = vpack.c.bf16 %v1400, %v1399
        %v1416 = vpack.c.bf16 %v1402, %v1401
        %v1417 = vpack.c.bf16 %v1404, %v1403
        %v1418 = vpack.c.bf16 %v1406, %v1405
        %v1419 = vpack.c.bf16 %v1408, %v1407
        %v1420 = vpack.c.bf16 %v1410, %v1409
        %v1421 = vpack.c.bf16 %v1412, %v1411
        %v1422 = vpack.c.bf16 %v1414, %v1413
        %v1423 = vld [vmem:[%s646] sm:$0xf]
        %v1424 = vld [vmem:[%s646 + $0x4] sm:$0xf]
        %v1425 = vld [vmem:[%s646 + $0x8] sm:$0xf]
        %v1426 = vld [vmem:[%s646 + $0xc] sm:$0xf]
        %v1427 = vld [vmem:[%s646 + $0x10] sm:$0xf]
        %v1428 = vld [vmem:[%s646 + $0x14] sm:$0xf]
        %v1429 = vld [vmem:[%s646 + $0x18] sm:$0xf]
        %v1430 = vld [vmem:[%s646 + $0x1c] sm:$0xf]
        %v1431 = vld [vmem:[%s646 + $0x20] sm:$0xf]
        %v1432 = vld [vmem:[%s646 + $0x24] sm:$0xf]
        %v1433 = vld [vmem:[%s646 + $0x28] sm:$0xf]
        %v1434 = vld [vmem:[%s646 + $0x2c] sm:$0xf]
        %v1435 = vld [vmem:[%s646 + $0x30] sm:$0xf]
        %v1436 = vld [vmem:[%s646 + $0x34] sm:$0xf]
        %v1437 = vld [vmem:[%s646 + $0x38] sm:$0xf]
        %v1438 = vld [vmem:[%s646 + $0x3c] sm:$0xf]
        %v1455 = vunpack.c.l.b16 %v1423
        %v1456 = vunpack.c.l.b16 %v1424
        %v1457 = vunpack.c.l.b16 %v1425
        %v1458 = vunpack.c.l.b16 %v1426
        %v1459 = vunpack.c.l.b16 %v1427
        %v1460 = vunpack.c.l.b16 %v1428
        %v1461 = vunpack.c.l.b16 %v1429
        %v1462 = vunpack.c.l.b16 %v1430
        %v1463 = vunpack.c.l.b16 %v1431
        %v1464 = vunpack.c.l.b16 %v1432
        %v1465 = vunpack.c.l.b16 %v1433
        %v1466 = vunpack.c.l.b16 %v1434
        %v1467 = vunpack.c.l.b16 %v1435
        %v1468 = vunpack.c.l.b16 %v1436
        %v1469 = vunpack.c.l.b16 %v1437
        %v1470 = vunpack.c.l.b16 %v1438
        %v1471 = vpack.c.b16 %v1456, %v1455
        %v1472 = vpack.c.b16 %v1458, %v1457
        %v1473 = vpack.c.b16 %v1460, %v1459
        %v1474 = vpack.c.b16 %v1462, %v1461
        %v1475 = vpack.c.b16 %v1464, %v1463
        %v1476 = vpack.c.b16 %v1466, %v1465
        %v1477 = vpack.c.b16 %v1468, %v1467
        %v1478 = vpack.c.b16 %v1470, %v1469
        %1487 = vxpose.xlu0.c.b16.start [1/8] %v1471, 128
        %1488 = vxpose.xlu0.c.b16.cont [2/8] %v1472, 128
        %1489 = vxpose.xlu0.c.b16.cont [3/8] %v1473, 128
        %1490 = vxpose.xlu0.c.b16.cont [4/8] %v1474, 128
        %1491 = vxpose.xlu0.c.b16.cont [5/8] %v1475, 128
        %1492 = vxpose.xlu0.c.b16.cont [6/8] %v1476, 128
        %1493 = vxpose.xlu0.c.b16.cont [7/8] %v1477, 128
        %1494 = vxpose.xlu0.c.b16.end [8/8] %v1478, 128
        %v1495 = vpop.trf.xlu0
        %v1496 = vpop.trf.xlu0
        %v1497 = vpop.trf.xlu0
        %v1498 = vpop.trf.xlu0
        %v1499 = vpop.trf.xlu0
        %v1500 = vpop.trf.xlu0
        %v1501 = vpop.trf.xlu0
        %v1502 = vpop.trf.xlu0
        %1503 = vmatprep.subr.bf16.mxu0 0
        %1504 = vmatpush1.bf16.msra.mxu0 %v1415
        %1505 = vmatprep.subr.bf16.mxu0 0
        %1506 = vmatpush1.bf16.msra.mxu0 %v1416
        %1507 = vmatprep.subr.bf16.mxu0 0
        %1508 = vmatpush1.bf16.msra.mxu0 %v1417
        %1509 = vmatprep.subr.bf16.mxu0 0
        %1510 = vmatpush1.bf16.msra.mxu0 %v1418
        %1511 = vmatprep.subr.bf16.mxu0 0
        %1512 = vmatpush1.bf16.msra.mxu0 %v1419
        %1513 = vmatprep.subr.bf16.mxu0 0
        %1514 = vmatpush1.bf16.msra.mxu0 %v1420
        %1515 = vmatprep.subr.bf16.mxu0 0
        %1516 = vmatpush1.bf16.msra.mxu0 %v1421
        %1517 = vmatprep.subr.bf16.mxu0 0
        %1518 = vmatpush1.bf16.msra.mxu0 %v1422
        %1519 = vmatprep.subr.bf16.mxu0 0
        %1520 = vmatpush1.bf16.msra.mxu0 0
        %1521 = vmatprep.subr.bf16.mxu0 0
        %1522 = vmatpush1.bf16.msra.mxu0 0
        %1523 = vmatprep.subr.bf16.mxu0 0
        %1524 = vmatpush1.bf16.msra.mxu0 0
        %1525 = vmatprep.subr.bf16.mxu0 0
        %1526 = vmatpush1.bf16.msra.mxu0 0
        %1527 = vmatprep.subr.bf16.mxu0 0
        %1528 = vmatpush1.bf16.msra.mxu0 0
        %1529 = vmatprep.subr.bf16.mxu0 0
        %1530 = vmatpush1.bf16.msra.mxu0 0
        %1531 = vmatprep.subr.bf16.mxu0 0
        %1532 = vmatpush1.bf16.msra.mxu0 0
        %1533 = vmatprep.subr.bf16.mxu0 0
        %1534 = vmatpush1.bf16.msra.mxu0 0
        %1535 = vmatprep.mubr.bf16.mxu0 0
        %1536 = vmatmul.mubr.bf16.gmra.mrb[0].mxu0 %v1495
        %v1537 = vpop.f32.mrb[0].mxu0
        %v1538 = vadd.f32 0.0, %v1537
        %v1539 = vpop.f32.mrb[0].mxu0
        %v1540 = vpop.f32.mrb[0].mxu0
        %v1541 = vadd.f32 0.0, %v1540
        %v1542 = vpop.f32.mrb[0].mxu0
        %1543 = vmatprep.mubr.bf16.mxu0 0
        %1544 = vmatmul.mubr.bf16.gmra.mrb[0].mxu0 %v1496
        %v1545 = vpop.f32.mrb[0].mxu0
        %v1546 = vadd.f32 0.0, %v1545
        %v1547 = vpop.f32.mrb[0].mxu0
        %v1548 = vpop.f32.mrb[0].mxu0
        %v1549 = vadd.f32 0.0, %v1548
        %v1550 = vpop.f32.mrb[0].mxu0
        %1551 = vmatprep.mubr.bf16.mxu0 0
        %1552 = vmatmul.mubr.bf16.gmra.mrb[0].mxu0 %v1497
        %v1553 = vpop.f32.mrb[0].mxu0
        %v1554 = vadd.f32 0.0, %v1553
        %v1555 = vpop.f32.mrb[0].mxu0
        %v1556 = vpop.f32.mrb[0].mxu0
        %v1557 = vadd.f32 0.0, %v1556
        %v1558 = vpop.f32.mrb[0].mxu0
        %1559 = vmatprep.mubr.bf16.mxu0 0
        %1560 = vmatmul.mubr.bf16.gmra.mrb[0].mxu0 %v1498
        %v1561 = vpop.f32.mrb[0].mxu0
        %v1562 = vadd.f32 0.0, %v1561
        %v1563 = vpop.f32.mrb[0].mxu0
        %v1564 = vpop.f32.mrb[0].mxu0
        %v1565 = vadd.f32 0.0, %v1564
        %v1566 = vpop.f32.mrb[0].mxu0
        %1567 = vmatprep.mubr.bf16.mxu0 0
        %1568 = vmatmul.mubr.bf16.gmra.mrb[0].mxu0 %v1499
        %v1569 = vpop.f32.mrb[0].mxu0
        %v1570 = vadd.f32 0.0, %v1569
        %v1571 = vpop.f32.mrb[0].mxu0
        %v1572 = vpop.f32.mrb[0].mxu0
        %v1573 = vadd.f32 0.0, %v1572
        %v1574 = vpop.f32.mrb[0].mxu0
        %1575 = vmatprep.mubr.bf16.mxu0 0
        %1576 = vmatmul.mubr.bf16.gmra.mrb[0].mxu0 %v1500
        %v1577 = vpop.f32.mrb[0].mxu0
        %v1578 = vadd.f32 0.0, %v1577
        %v1579 = vpop.f32.mrb[0].mxu0
        %v1580 = vpop.f32.mrb[0].mxu0
        %v1581 = vadd.f32 0.0, %v1580
        %v1582 = vpop.f32.mrb[0].mxu0
        %1583 = vmatprep.mubr.bf16.mxu0 0
        %1584 = vmatmul.mubr.bf16.gmra.mrb[0].mxu0 %v1501
        %v1585 = vpop.f32.mrb[0].mxu0
        %v1586 = vadd.f32 0.0, %v1585
        %v1587 = vpop.f32.mrb[0].mxu0
        %v1588 = vpop.f32.mrb[0].mxu0
        %v1589 = vadd.f32 0.0, %v1588
        %v1590 = vpop.f32.mrb[0].mxu0
        %1591 = vmatprep.mubr.bf16.mxu0 0
        %1592 = vmatmul.mubr.bf16.gmra.mrb[0].mxu0 %v1502
        %v1593 = vpop.f32.mrb[0].mxu0
        %v1594 = vadd.f32 0.0, %v1593
        %v1595 = vpop.f32.mrb[0].mxu0
        %v1596 = vpop.f32.mrb[0].mxu0
        %v1597 = vadd.f32 0.0, %v1596
        %v1598 = vpop.f32.mrb[0].mxu0
        %1599 = vdwg.mxu0
        %v1600 = vadd.f32 %v878, %v1538
        %v1601 = vadd.f32 %v879, %v1541
        %v1602 = vadd.f32 %v880, %v1546
        %v1603 = vadd.f32 %v881, %v1549
        %v1604 = vadd.f32 %v882, %v1554
        %v1605 = vadd.f32 %v883, %v1557
        %v1606 = vadd.f32 %v884, %v1562
        %v1607 = vadd.f32 %v885, %v1565
        %v1608 = vadd.f32 %v886, %v1570
        %v1609 = vadd.f32 %v887, %v1573
        %v1610 = vadd.f32 %v888, %v1578
        %v1611 = vadd.f32 %v889, %v1581
        %v1612 = vadd.f32 %v890, %v1586
        %v1613 = vadd.f32 %v891, %v1589
        %v1614 = vadd.f32 %v892, %v1594
        %v1615 = vadd.f32 %v893, %v1597
        %1616 = vst.msk [vmem:[#allocation2] sm:$0xff] %vm896, %v1600
        %1617 = vst.msk [vmem:[#allocation2 + $0x8] sm:$0xff] %vm896, %v1601
        %1618 = vst.msk [vmem:[#allocation2 + $0x10] sm:$0xff] %vm896, %v1602
        %1619 = vst.msk [vmem:[#allocation2 + $0x18] sm:$0xff] %vm896, %v1603
        %1620 = vst.msk [vmem:[#allocation2 + $0x20] sm:$0xff] %vm896, %v1604
        %1621 = vst.msk [vmem:[#allocation2 + $0x28] sm:$0xff] %vm896, %v1605
        %1622 = vst.msk [vmem:[#allocation2 + $0x30] sm:$0xff] %vm896, %v1606
        %1623 = vst.msk [vmem:[#allocation2 + $0x38] sm:$0xff] %vm896, %v1607
        %1624 = vst.msk [vmem:[#allocation2 + $0x40] sm:$0xff] %vm896, %v1608
        %1625 = vst.msk [vmem:[#allocation2 + $0x48] sm:$0xff] %vm896, %v1609
        %1626 = vst.msk [vmem:[#allocation2 + $0x50] sm:$0xff] %vm896, %v1610
        %1627 = vst.msk [vmem:[#allocation2 + $0x58] sm:$0xff] %vm896, %v1611
        %1628 = vst.msk [vmem:[#allocation2 + $0x60] sm:$0xff] %vm896, %v1612
        %1629 = vst.msk [vmem:[#allocation2 + $0x68] sm:$0xff] %vm896, %v1613
        %1630 = vst.msk [vmem:[#allocation2 + $0x70] sm:$0xff] %vm896, %v1614
        %1631 = vst.msk [vmem:[#allocation2 + $0x78] sm:$0xff] %vm896, %v1615
        %v1632 = vld [vmem:[#allocation2] sm:$0xff]
        %v1633 = vld [vmem:[#allocation2 + $0x8] sm:$0xff]
        %v1634 = vld [vmem:[#allocation2 + $0x10] sm:$0xff]
        %v1635 = vld [vmem:[#allocation2 + $0x18] sm:$0xff]
        %v1636 = vld [vmem:[#allocation2 + $0x20] sm:$0xff]
        %v1637 = vld [vmem:[#allocation2 + $0x28] sm:$0xff]
        %v1638 = vld [vmem:[#allocation2 + $0x30] sm:$0xff]
        %v1639 = vld [vmem:[#allocation2 + $0x38] sm:$0xff]
        %v1640 = vld [vmem:[#allocation2 + $0x40] sm:$0xff]
        %v1641 = vld [vmem:[#allocation2 + $0x48] sm:$0xff]
        %v1642 = vld [vmem:[#allocation2 + $0x50] sm:$0xff]
        %v1643 = vld [vmem:[#allocation2 + $0x58] sm:$0xff]
        %v1644 = vld [vmem:[#allocation2 + $0x60] sm:$0xff]
        %v1645 = vld [vmem:[#allocation2 + $0x68] sm:$0xff]
        %v1646 = vld [vmem:[#allocation2 + $0x70] sm:$0xff]
        %v1647 = vld [vmem:[#allocation2 + $0x78] sm:$0xff]
        %v1648 = vld [vmem:[%s649] sm:$0x1]
        %v1649 = vld [vmem:[%s652] sm:$0x1]
        %v1650 = vsel %vm896, %v1632, 0.0
        %1651 = vadd.xlane.f32.xlu0 %v1650
        %v1652 = vpop.xlane.xlu0 %1651
        %v1653 = vsel %vm896, %v1633, 0.0
        %1654 = vadd.xlane.f32.xlu0 %v1653
        %v1655 = vpop.xlane.xlu0 %1654
        %v1656 = vsel %vm896, %v1634, 0.0
        %1657 = vadd.xlane.f32.xlu0 %v1656
        %v1658 = vpop.xlane.xlu0 %1657
        %v1659 = vsel %vm896, %v1635, 0.0
        %1660 = vadd.xlane.f32.xlu0 %v1659
        %v1661 = vpop.xlane.xlu0 %1660
        %v1662 = vsel %vm896, %v1636, 0.0
        %1663 = vadd.xlane.f32.xlu0 %v1662
        %v1664 = vpop.xlane.xlu0 %1663
        %v1665 = vsel %vm896, %v1637, 0.0
        %1666 = vadd.xlane.f32.xlu0 %v1665
        %v1667 = vpop.xlane.xlu0 %1666
        %v1668 = vsel %vm896, %v1638, 0.0
        %1669 = vadd.xlane.f32.xlu0 %v1668
        %v1670 = vpop.xlane.xlu0 %1669
        %v1671 = vsel %vm896, %v1639, 0.0
        %1672 = vadd.xlane.f32.xlu0 %v1671
        %v1673 = vpop.xlane.xlu0 %1672
        %v1674 = vsel %vm896, %v1640, 0.0
        %1675 = vadd.xlane.f32.xlu0 %v1674
        %v1676 = vpop.xlane.xlu0 %1675
        %v1677 = vsel %vm896, %v1641, 0.0
        %1678 = vadd.xlane.f32.xlu0 %v1677
        %v1679 = vpop.xlane.xlu0 %1678
        %v1680 = vsel %vm896, %v1642, 0.0
        %1681 = vadd.xlane.f32.xlu0 %v1680
        %v1682 = vpop.xlane.xlu0 %1681
        %v1683 = vsel %vm896, %v1643, 0.0
        %1684 = vadd.xlane.f32.xlu0 %v1683
        %v1685 = vpop.xlane.xlu0 %1684
        %v1686 = vsel %vm896, %v1644, 0.0
        %1687 = vadd.xlane.f32.xlu0 %v1686
        %v1688 = vpop.xlane.xlu0 %1687
        %v1689 = vsel %vm896, %v1645, 0.0
        %1690 = vadd.xlane.f32.xlu0 %v1689
        %v1691 = vpop.xlane.xlu0 %1690
        %v1692 = vsel %vm896, %v1646, 0.0
        %1693 = vadd.xlane.f32.xlu0 %v1692
        %v1694 = vpop.xlane.xlu0 %1693
        %v1695 = vsel %vm896, %v1647, 0.0
        %1696 = vadd.xlane.f32.xlu0 %v1695
        %v1697 = vpop.xlane.xlu0 %1696
        %v1698 = vmul.f32 %v1652, %v945
        %v1699 = vmul.f32 %v1655, %v945
        %v1700 = vmul.f32 %v1658, %v945
        %v1701 = vmul.f32 %v1661, %v945
        %v1702 = vmul.f32 %v1664, %v945
        %v1703 = vmul.f32 %v1667, %v945
        %v1704 = vmul.f32 %v1670, %v945
        %v1705 = vmul.f32 %v1673, %v945
        %v1706 = vmul.f32 %v1676, %v945
        %v1707 = vmul.f32 %v1679, %v945
        %v1708 = vmul.f32 %v1682, %v945
        %v1709 = vmul.f32 %v1685, %v945
        %v1710 = vmul.f32 %v1688, %v945
        %v1711 = vmul.f32 %v1691, %v945
        %v1712 = vmul.f32 %v1694, %v945
        %v1713 = vmul.f32 %v1697, %v945
        %v1714 = vsub.f32 %v1632, %v1698
        %v1715 = vsub.f32 %v1633, %v1699
        %v1716 = vsub.f32 %v1634, %v1700
        %v1717 = vsub.f32 %v1635, %v1701
        %v1718 = vsub.f32 %v1636, %v1702
        %v1719 = vsub.f32 %v1637, %v1703
        %v1720 = vsub.f32 %v1638, %v1704
        %v1721 = vsub.f32 %v1639, %v1705
        %v1722 = vsub.f32 %v1640, %v1706
        %v1723 = vsub.f32 %v1641, %v1707
        %v1724 = vsub.f32 %v1642, %v1708
        %v1725 = vsub.f32 %v1643, %v1709
        %v1726 = vsub.f32 %v1644, %v1710
        %v1727 = vsub.f32 %v1645, %v1711
        %v1728 = vsub.f32 %v1646, %v1712
        %v1729 = vsub.f32 %v1647, %v1713
        %v1730 = vmul.f32 %v1714, %v1714
        %v1731 = vmul.f32 %v1715, %v1715
        %v1732 = vmul.f32 %v1716, %v1716
        %v1733 = vmul.f32 %v1717, %v1717
        %v1734 = vmul.f32 %v1718, %v1718
        %v1735 = vmul.f32 %v1719, %v1719
        %v1736 = vmul.f32 %v1720, %v1720
        %v1737 = vmul.f32 %v1721, %v1721
        %v1738 = vmul.f32 %v1722, %v1722
        %v1739 = vmul.f32 %v1723, %v1723
        %v1740 = vmul.f32 %v1724, %v1724
        %v1741 = vmul.f32 %v1725, %v1725
        %v1742 = vmul.f32 %v1726, %v1726
        %v1743 = vmul.f32 %v1727, %v1727
        %v1744 = vmul.f32 %v1728, %v1728
        %v1745 = vmul.f32 %v1729, %v1729
        %v1746 = vsel %vm896, %v1730, 0.0
        %1747 = vadd.xlane.f32.xlu0 %v1746
        %v1748 = vpop.xlane.xlu0 %1747
        %v1749 = vsel %vm896, %v1731, 0.0
        %1750 = vadd.xlane.f32.xlu0 %v1749
        %v1751 = vpop.xlane.xlu0 %1750
        %v1752 = vsel %vm896, %v1732, 0.0
        %1753 = vadd.xlane.f32.xlu0 %v1752
        %v1754 = vpop.xlane.xlu0 %1753
        %v1755 = vsel %vm896, %v1733, 0.0
        %1756 = vadd.xlane.f32.xlu0 %v1755
        %v1757 = vpop.xlane.xlu0 %1756
        %v1758 = vsel %vm896, %v1734, 0.0
        %1759 = vadd.xlane.f32.xlu0 %v1758
        %v1760 = vpop.xlane.xlu0 %1759
        %v1761 = vsel %vm896, %v1735, 0.0
        %1762 = vadd.xlane.f32.xlu0 %v1761
        %v1763 = vpop.xlane.xlu0 %1762
        %v1764 = vsel %vm896, %v1736, 0.0
        %1765 = vadd.xlane.f32.xlu0 %v1764
        %v1766 = vpop.xlane.xlu0 %1765
        %v1767 = vsel %vm896, %v1737, 0.0
        %1768 = vadd.xlane.f32.xlu0 %v1767
        %v1769 = vpop.xlane.xlu0 %1768
        %v1770 = vsel %vm896, %v1738, 0.0
        %1771 = vadd.xlane.f32.xlu0 %v1770
        %v1772 = vpop.xlane.xlu0 %1771
        %v1773 = vsel %vm896, %v1739, 0.0
        %1774 = vadd.xlane.f32.xlu0 %v1773
        %v1775 = vpop.xlane.xlu0 %1774
        %v1776 = vsel %vm896, %v1740, 0.0
        %1777 = vadd.xlane.f32.xlu0 %v1776
        %v1778 = vpop.xlane.xlu0 %1777
        %v1779 = vsel %vm896, %v1741, 0.0
        %1780 = vadd.xlane.f32.xlu0 %v1779
        %v1781 = vpop.xlane.xlu0 %1780
        %v1782 = vsel %vm896, %v1742, 0.0
        %1783 = vadd.xlane.f32.xlu0 %v1782
        %v1784 = vpop.xlane.xlu0 %1783
        %v1785 = vsel %vm896, %v1743, 0.0
        %1786 = vadd.xlane.f32.xlu0 %v1785
        %v1787 = vpop.xlane.xlu0 %1786
        %v1788 = vsel %vm896, %v1744, 0.0
        %1789 = vadd.xlane.f32.xlu0 %v1788
        %v1790 = vpop.xlane.xlu0 %1789
        %v1791 = vsel %vm896, %v1745, 0.0
        %1792 = vadd.xlane.f32.xlu0 %v1791
        %v1793 = vpop.xlane.xlu0 %1792
        %v1794 = vmul.f32 %v1748, %v945
        %v1795 = vmul.f32 %v1751, %v945
        %v1796 = vmul.f32 %v1754, %v945
        %v1797 = vmul.f32 %v1757, %v945
        %v1798 = vmul.f32 %v1760, %v945
        %v1799 = vmul.f32 %v1763, %v945
        %v1800 = vmul.f32 %v1766, %v945
        %v1801 = vmul.f32 %v1769, %v945
        %v1802 = vmul.f32 %v1772, %v945
        %v1803 = vmul.f32 %v1775, %v945
        %v1804 = vmul.f32 %v1778, %v945
        %v1805 = vmul.f32 %v1781, %v945
        %v1806 = vmul.f32 %v1784, %v945
        %v1807 = vmul.f32 %v1787, %v945
        %v1808 = vmul.f32 %v1790, %v945
        %v1809 = vmul.f32 %v1793, %v945
        %v1810 = vadd.f32 %v1794, 1e-05
        %v1811 = vadd.f32 %v1795, 1e-05
        %v1812 = vadd.f32 %v1796, 1e-05
        %v1813 = vadd.f32 %v1797, 1e-05
        %v1814 = vadd.f32 %v1798, 1e-05
        %v1815 = vadd.f32 %v1799, 1e-05
        %v1816 = vadd.f32 %v1800, 1e-05
        %v1817 = vadd.f32 %v1801, 1e-05
        %v1818 = vadd.f32 %v1802, 1e-05
        %v1819 = vadd.f32 %v1803, 1e-05
        %v1820 = vadd.f32 %v1804, 1e-05
        %v1821 = vadd.f32 %v1805, 1e-05
        %v1822 = vadd.f32 %v1806, 1e-05
        %v1823 = vadd.f32 %v1807, 1e-05
        %v1824 = vadd.f32 %v1808, 1e-05
        %v1825 = vadd.f32 %v1809, 1e-05
        %v1826 = vrsqrt.pop %v1810
        %v1827 = vrsqrt.pop %v1811
        %v1828 = vrsqrt.pop %v1812
        %v1829 = vrsqrt.pop %v1813
        %v1830 = vrsqrt.pop %v1814
        %v1831 = vrsqrt.pop %v1815
        %v1832 = vrsqrt.pop %v1816
        %v1833 = vrsqrt.pop %v1817
        %v1834 = vrsqrt.pop %v1818
        %v1835 = vrsqrt.pop %v1819
        %v1836 = vrsqrt.pop %v1820
        %v1837 = vrsqrt.pop %v1821
        %v1838 = vrsqrt.pop %v1822
        %v1839 = vrsqrt.pop %v1823
        %v1840 = vrsqrt.pop %v1824
        %v1841 = vrsqrt.pop %v1825
        %v1842 = vmul.f32 %v1714, %v1826
        %v1843 = vmul.f32 %v1715, %v1827
        %v1844 = vmul.f32 %v1716, %v1828
        %v1845 = vmul.f32 %v1717, %v1829
        %v1846 = vmul.f32 %v1718, %v1830
        %v1847 = vmul.f32 %v1719, %v1831
        %v1848 = vmul.f32 %v1720, %v1832
        %v1849 = vmul.f32 %v1721, %v1833
        %v1850 = vmul.f32 %v1722, %v1834
        %v1851 = vmul.f32 %v1723, %v1835
        %v1852 = vmul.f32 %v1724, %v1836
        %v1853 = vmul.f32 %v1725, %v1837
        %v1854 = vmul.f32 %v1726, %v1838
        %v1855 = vmul.f32 %v1727, %v1839
        %v1856 = vmul.f32 %v1728, %v1840
        %v1857 = vmul.f32 %v1729, %v1841
        %v1859 = vlaneseq
        %v1860 = vshrl.u32 %v1859, 7
        %v1861 = vsub.s32 0, %v1860
        %v1862 = vrot.slane %v1648, %v1861
        %v1864 = vmul.f32 %v1842, %v1862
        %v1865 = vmul.f32 %v1843, %v1862
        %v1866 = vmul.f32 %v1844, %v1862
        %v1867 = vmul.f32 %v1845, %v1862
        %v1868 = vmul.f32 %v1846, %v1862
        %v1869 = vmul.f32 %v1847, %v1862
        %v1870 = vmul.f32 %v1848, %v1862
        %v1871 = vmul.f32 %v1849, %v1862
        %v1872 = vmul.f32 %v1850, %v1862
        %v1873 = vmul.f32 %v1851, %v1862
        %v1874 = vmul.f32 %v1852, %v1862
        %v1875 = vmul.f32 %v1853, %v1862
        %v1876 = vmul.f32 %v1854, %v1862
        %v1877 = vmul.f32 %v1855, %v1862
        %v1878 = vmul.f32 %v1856, %v1862
        %v1879 = vmul.f32 %v1857, %v1862
        %v1881 = vlaneseq
        %v1882 = vshrl.u32 %v1881, 7
        %v1883 = vsub.s32 0, %v1882
        %v1884 = vrot.slane %v1649, %v1883
        %v1886 = vadd.f32 %v1864, %v1884
        %v1887 = vadd.f32 %v1865, %v1884
        %v1888 = vadd.f32 %v1866, %v1884
        %v1889 = vadd.f32 %v1867, %v1884
        %v1890 = vadd.f32 %v1868, %v1884
        %v1891 = vadd.f32 %v1869, %v1884
        %v1892 = vadd.f32 %v1870, %v1884
        %v1893 = vadd.f32 %v1871, %v1884
        %v1894 = vadd.f32 %v1872, %v1884
        %v1895 = vadd.f32 %v1873, %v1884
        %v1896 = vadd.f32 %v1874, %v1884
        %v1897 = vadd.f32 %v1875, %v1884
        %v1898 = vadd.f32 %v1876, %v1884
        %v1899 = vadd.f32 %v1877, %v1884
        %v1900 = vadd.f32 %v1878, %v1884
        %v1901 = vadd.f32 %v1879, %v1884
        %v1902 = vpack.c.bf16 %v1887, %v1886
        %v1903 = vpack.c.bf16 %v1889, %v1888
        %v1904 = vpack.c.bf16 %v1891, %v1890
        %v1905 = vpack.c.bf16 %v1893, %v1892
        %v1906 = vpack.c.bf16 %v1895, %v1894
        %v1907 = vpack.c.bf16 %v1897, %v1896
        %v1908 = vpack.c.bf16 %v1899, %v1898
        %v1909 = vpack.c.bf16 %v1901, %v1900
        %v1910 = vld [vmem:[%s657] sm:$0xf]
        %v1911 = vld [vmem:[%s657 + $0x4] sm:$0xf]
        %v1912 = vld [vmem:[%s657 + $0x8] sm:$0xf]
        %v1913 = vld [vmem:[%s657 + $0xc] sm:$0xf]
        %v1918 = vunpack.c.l.b16 %v1910
        %v1919 = vunpack.c.l.b16 %v1911
        %v1920 = vunpack.c.l.b16 %v1912
        %v1921 = vunpack.c.l.b16 %v1913
        %v1922 = vpack.c.b16 %v1919, %v1918
        %v1923 = vpack.c.b16 %v1921, %v1920
        %v1927 = vsel %vm896, %v1902, 0
        %v1930 = vsel %vm896, %v1903, 0
        %v1933 = vsel %vm896, %v1904, 0
        %v1936 = vsel %vm896, %v1905, 0
        %v1939 = vsel %vm896, %v1906, 0
        %v1942 = vsel %vm896, %v1907, 0
        %v1945 = vsel %vm896, %v1908, 0
        %v1948 = vsel %vm896, %v1909, 0
        %1950 = vmatprep.subr.bf16.mxu0 0
        %1951 = vmatpush1.bf16.msra.mxu0 %v1922
        %1952 = vmatprep.subr.bf16.mxu0 0
        %1953 = vmatpush1.bf16.msra.mxu0 %v1923
        %1954 = vmatprep.subr.bf16.mxu0 0
        %1955 = vmatpush1.bf16.msra.mxu0 0
        %1956 = vmatprep.subr.bf16.mxu0 0
        %1957 = vmatpush1.bf16.msra.mxu0 0
        %1958 = vmatprep.subr.bf16.mxu0 0
        %1959 = vmatpush1.bf16.msra.mxu0 0
        %1960 = vmatprep.subr.bf16.mxu0 0
        %1961 = vmatpush1.bf16.msra.mxu0 0
        %1962 = vmatprep.subr.bf16.mxu0 0
        %1963 = vmatpush1.bf16.msra.mxu0 0
        %1964 = vmatprep.subr.bf16.mxu0 0
        %1965 = vmatpush1.bf16.msra.mxu0 0
        %1966 = vmatprep.subr.bf16.mxu0 0
        %1967 = vmatpush1.bf16.msra.mxu0 0
        %1968 = vmatprep.subr.bf16.mxu0 0
        %1969 = vmatpush1.bf16.msra.mxu0 0
        %1970 = vmatprep.subr.bf16.mxu0 0
        %1971 = vmatpush1.bf16.msra.mxu0 0
        %1972 = vmatprep.subr.bf16.mxu0 0
        %1973 = vmatpush1.bf16.msra.mxu0 0
        %1974 = vmatprep.subr.bf16.mxu0 0
        %1975 = vmatpush1.bf16.msra.mxu0 0
        %1976 = vmatprep.subr.bf16.mxu0 0
        %1977 = vmatpush1.bf16.msra.mxu0 0
        %1978 = vmatprep.subr.bf16.mxu0 0
        %1979 = vmatpush1.bf16.msra.mxu0 0
        %1980 = vmatprep.subr.bf16.mxu0 0
        %1981 = vmatpush1.bf16.msra.mxu0 0
        %1982 = vmatprep.mubr.bf16.mxu0 0
        %1983 = vmatmul.mubr.bf16.gmra.mrb[0].mxu0 %v1927
        %v1984 = vpop.f32.mrb[0].mxu0
        %v1985 = vadd.f32 0.0, %v1984
        %v1986 = vpop.f32.mrb[0].mxu0
        %v1987 = vpop.f32.mrb[0].mxu0
        %v1988 = vadd.f32 0.0, %v1987
        %v1989 = vpop.f32.mrb[0].mxu0
        %1990 = vmatprep.mubr.bf16.mxu0 0
        %1991 = vmatmul.mubr.bf16.gmra.mrb[0].mxu0 %v1930
        %v1992 = vpop.f32.mrb[0].mxu0
        %v1993 = vadd.f32 0.0, %v1992
        %v1994 = vpop.f32.mrb[0].mxu0
        %v1995 = vpop.f32.mrb[0].mxu0
        %v1996 = vadd.f32 0.0, %v1995
        %v1997 = vpop.f32.mrb[0].mxu0
        %1998 = vmatprep.mubr.bf16.mxu0 0
        %1999 = vmatmul.mubr.bf16.gmra.mrb[0].mxu0 %v1933
        %v2000 = vpop.f32.mrb[0].mxu0
        %v2001 = vadd.f32 0.0, %v2000
        %v2002 = vpop.f32.mrb[0].mxu0
        %v2003 = vpop.f32.mrb[0].mxu0
        %v2004 = vadd.f32 0.0, %v2003
        %v2005 = vpop.f32.mrb[0].mxu0
        %2006 = vmatprep.mubr.bf16.mxu0 0
        %2007 = vmatmul.mubr.bf16.gmra.mrb[0].mxu0 %v1936
        %v2008 = vpop.f32.mrb[0].mxu0
        %v2009 = vadd.f32 0.0, %v2008
        %v2010 = vpop.f32.mrb[0].mxu0
        %v2011 = vpop.f32.mrb[0].mxu0
        %v2012 = vadd.f32 0.0, %v2011
        %v2013 = vpop.f32.mrb[0].mxu0
        %2014 = vmatprep.mubr.bf16.mxu0 0
        %2015 = vmatmul.mubr.bf16.gmra.mrb[0].mxu0 %v1939
        %v2016 = vpop.f32.mrb[0].mxu0
        %v2017 = vadd.f32 0.0, %v2016
        %v2018 = vpop.f32.mrb[0].mxu0
        %v2019 = vpop.f32.mrb[0].mxu0
        %v2020 = vadd.f32 0.0, %v2019
        %v2021 = vpop.f32.mrb[0].mxu0
        %2022 = vmatprep.mubr.bf16.mxu0 0
        %2023 = vmatmul.mubr.bf16.gmra.mrb[0].mxu0 %v1942
        %v2024 = vpop.f32.mrb[0].mxu0
        %v2025 = vadd.f32 0.0, %v2024
        %v2026 = vpop.f32.mrb[0].mxu0
        %v2027 = vpop.f32.mrb[0].mxu0
        %v2028 = vadd.f32 0.0, %v2027
        %v2029 = vpop.f32.mrb[0].mxu0
        %2030 = vmatprep.mubr.bf16.mxu0 0
        %2031 = vmatmul.mubr.bf16.gmra.mrb[0].mxu0 %v1945
        %v2032 = vpop.f32.mrb[0].mxu0
        %v2033 = vadd.f32 0.0, %v2032
        %v2034 = vpop.f32.mrb[0].mxu0
        %v2035 = vpop.f32.mrb[0].mxu0
        %v2036 = vadd.f32 0.0, %v2035
        %v2037 = vpop.f32.mrb[0].mxu0
        %2038 = vmatprep.mubr.bf16.mxu0 0
        %2039 = vmatmul.mubr.bf16.gmra.mrb[0].mxu0 %v1948
        %v2040 = vpop.f32.mrb[0].mxu0
        %v2041 = vadd.f32 0.0, %v2040
        %v2042 = vpop.f32.mrb[0].mxu0
        %v2043 = vpop.f32.mrb[0].mxu0
        %v2044 = vadd.f32 0.0, %v2043
        %v2045 = vpop.f32.mrb[0].mxu0
        %2046 = vdwg.mxu0
        %v2047 = vmul.f32 %v1985, 0.5
        %v2048 = vmul.f32 %v1988, 0.5
        %v2049 = vmul.f32 %v1993, 0.5
        %v2050 = vmul.f32 %v1996, 0.5
        %v2051 = vmul.f32 %v2001, 0.5
        %v2052 = vmul.f32 %v2004, 0.5
        %v2053 = vmul.f32 %v2009, 0.5
        %v2054 = vmul.f32 %v2012, 0.5
        %v2055 = vmul.f32 %v2017, 0.5
        %v2056 = vmul.f32 %v2020, 0.5
        %v2057 = vmul.f32 %v2025, 0.5
        %v2058 = vmul.f32 %v2028, 0.5
        %v2059 = vmul.f32 %v2033, 0.5
        %v2060 = vmul.f32 %v2036, 0.5
        %v2061 = vmul.f32 %v2041, 0.5
        %v2062 = vmul.f32 %v2044, 0.5
        %v2063 = vmul.f32 %v1985, 0.70710677
        %v2064 = vmul.f32 %v1988, 0.70710677
        %v2065 = vmul.f32 %v1993, 0.70710677
        %v2066 = vmul.f32 %v1996, 0.70710677
        %v2067 = vmul.f32 %v2001, 0.70710677
        %v2068 = vmul.f32 %v2004, 0.70710677
        %v2069 = vmul.f32 %v2009, 0.70710677
        %v2070 = vmul.f32 %v2012, 0.70710677
        %v2071 = vmul.f32 %v2017, 0.70710677
        %v2072 = vmul.f32 %v2020, 0.70710677
        %v2073 = vmul.f32 %v2025, 0.70710677
        %v2074 = vmul.f32 %v2028, 0.70710677
        %v2075 = vmul.f32 %v2033, 0.70710677
        %v2076 = vmul.f32 %v2036, 0.70710677
        %v2077 = vmul.f32 %v2041, 0.70710677
        %v2078 = vmul.f32 %v2044, 0.70710677
        %v2079 = verf.f32.pop %v2063
        %v2080 = verf.f32.pop %v2064
        %v2081 = verf.f32.pop %v2065
        %v2082 = verf.f32.pop %v2066
        %v2083 = verf.f32.pop %v2067
        %v2084 = verf.f32.pop %v2068
        %v2085 = verf.f32.pop %v2069
        %v2086 = verf.f32.pop %v2070
        %v2087 = verf.f32.pop %v2071
        %v2088 = verf.f32.pop %v2072
        %v2089 = verf.f32.pop %v2073
        %v2090 = verf.f32.pop %v2074
        %v2091 = verf.f32.pop %v2075
        %v2092 = verf.f32.pop %v2076
        %v2093 = verf.f32.pop %v2077
        %v2094 = verf.f32.pop %v2078
        %v2095 = vadd.f32 %v2079, 1.0
        %v2096 = vadd.f32 %v2080, 1.0
        %v2097 = vadd.f32 %v2081, 1.0
        %v2098 = vadd.f32 %v2082, 1.0
        %v2099 = vadd.f32 %v2083, 1.0
        %v2100 = vadd.f32 %v2084, 1.0
        %v2101 = vadd.f32 %v2085, 1.0
        %v2102 = vadd.f32 %v2086, 1.0
        %v2103 = vadd.f32 %v2087, 1.0
        %v2104 = vadd.f32 %v2088, 1.0
        %v2105 = vadd.f32 %v2089, 1.0
        %v2106 = vadd.f32 %v2090, 1.0
        %v2107 = vadd.f32 %v2091, 1.0
        %v2108 = vadd.f32 %v2092, 1.0
        %v2109 = vadd.f32 %v2093, 1.0
        %v2110 = vadd.f32 %v2094, 1.0
        %v2111 = vmul.f32 %v2047, %v2095
        %v2112 = vmul.f32 %v2048, %v2096
        %v2113 = vmul.f32 %v2049, %v2097
        %v2114 = vmul.f32 %v2050, %v2098
        %v2115 = vmul.f32 %v2051, %v2099
        %v2116 = vmul.f32 %v2052, %v2100
        %v2117 = vmul.f32 %v2053, %v2101
        %v2118 = vmul.f32 %v2054, %v2102
        %v2119 = vmul.f32 %v2055, %v2103
        %v2120 = vmul.f32 %v2056, %v2104
        %v2121 = vmul.f32 %v2057, %v2105
        %v2122 = vmul.f32 %v2058, %v2106
        %v2123 = vmul.f32 %v2059, %v2107
        %v2124 = vmul.f32 %v2060, %v2108
        %v2125 = vmul.f32 %v2061, %v2109
        %v2126 = vmul.f32 %v2062, %v2110
        %v2127 = vpack.c.bf16 %v2112, %v2111
        %v2128 = vpack.c.bf16 %v2114, %v2113
        %v2129 = vpack.c.bf16 %v2116, %v2115
        %v2130 = vpack.c.bf16 %v2118, %v2117
        %v2131 = vpack.c.bf16 %v2120, %v2119
        %v2132 = vpack.c.bf16 %v2122, %v2121
        %v2133 = vpack.c.bf16 %v2124, %v2123
        %v2134 = vpack.c.bf16 %v2126, %v2125
        %v2135 = vld [vmem:[%s662] sm:$0xf]
        %v2136 = vld [vmem:[%s662 + $0x4] sm:$0xf]
        %v2137 = vld [vmem:[%s662 + $0x8] sm:$0xf]
        %v2138 = vld [vmem:[%s662 + $0xc] sm:$0xf]
        %v2139 = vld [vmem:[%s662 + $0x10] sm:$0xf]
        %v2140 = vld [vmem:[%s662 + $0x14] sm:$0xf]
        %v2141 = vld [vmem:[%s662 + $0x18] sm:$0xf]
        %v2142 = vld [vmem:[%s662 + $0x1c] sm:$0xf]
        %v2151 = vunpack.c.l.b16 %v2135
        %v2152 = vunpack.c.l.b16 %v2136
        %v2153 = vunpack.c.l.b16 %v2137
        %v2154 = vunpack.c.l.b16 %v2138
        %v2155 = vunpack.c.l.b16 %v2139
        %v2156 = vunpack.c.l.b16 %v2140
        %v2157 = vunpack.c.l.b16 %v2141
        %v2158 = vunpack.c.l.b16 %v2142
        %v2159 = vpack.c.b16 %v2152, %v2151
        %v2160 = vpack.c.b16 %v2154, %v2153
        %v2161 = vpack.c.b16 %v2156, %v2155
        %v2162 = vpack.c.b16 %v2158, %v2157
        %vm2167 = vcmask 523264
        %v2169 = vsel %vm2167, %v2127, 0
        %v2172 = vsel %vm2167, %v2128, 0
        %v2175 = vsel %vm2167, %v2129, 0
        %v2178 = vsel %vm2167, %v2130, 0
        %v2181 = vsel %vm2167, %v2131, 0
        %v2184 = vsel %vm2167, %v2132, 0
        %v2187 = vsel %vm2167, %v2133, 0
        %v2190 = vsel %vm2167, %v2134, 0
        %2192 = vmatprep.subr.bf16.mxu0 0
        %2193 = vmatpush1.bf16.msra.mxu0 %v2159
        %2194 = vmatprep.subr.bf16.mxu0 0
        %2195 = vmatpush1.bf16.msra.mxu0 %v2160
        %2196 = vmatprep.subr.bf16.mxu0 0
        %2197 = vmatpush1.bf16.msra.mxu0 %v2161
        %2198 = vmatprep.subr.bf16.mxu0 0
        %2199 = vmatpush1.bf16.msra.mxu0 %v2162
        %2200 = vmatprep.subr.bf16.mxu0 0
        %2201 = vmatpush1.bf16.msra.mxu0 0
        %2202 = vmatprep.subr.bf16.mxu0 0
        %2203 = vmatpush1.bf16.msra.mxu0 0
        %2204 = vmatprep.subr.bf16.mxu0 0
        %2205 = vmatpush1.bf16.msra.mxu0 0
        %2206 = vmatprep.subr.bf16.mxu0 0
        %2207 = vmatpush1.bf16.msra.mxu0 0
        %2208 = vmatprep.subr.bf16.mxu0 0
        %2209 = vmatpush1.bf16.msra.mxu0 0
        %2210 = vmatprep.subr.bf16.mxu0 0
        %2211 = vmatpush1.bf16.msra.mxu0 0
        %2212 = vmatprep.subr.bf16.mxu0 0
        %2213 = vmatpush1.bf16.msra.mxu0 0
        %2214 = vmatprep.subr.bf16.mxu0 0
        %2215 = vmatpush1.bf16.msra.mxu0 0
        %2216 = vmatprep.subr.bf16.mxu0 0
        %2217 = vmatpush1.bf16.msra.mxu0 0
        %2218 = vmatprep.subr.bf16.mxu0 0
        %2219 = vmatpush1.bf16.msra.mxu0 0
        %2220 = vmatprep.subr.bf16.mxu0 0
        %2221 = vmatpush1.bf16.msra.mxu0 0
        %2222 = vmatprep.subr.bf16.mxu0 0
        %2223 = vmatpush1.bf16.msra.mxu0 0
        %2224 = vmatprep.mubr.bf16.mxu0 0
        %2225 = vmatmul.mubr.bf16.gmra.mrb[0].mxu0 %v2169
        %v2226 = vpop.f32.mrb[0].mxu0
        %v2227 = vadd.f32 0.0, %v2226
        %v2228 = vpop.f32.mrb[0].mxu0
        %v2229 = vpop.f32.mrb[0].mxu0
        %v2230 = vadd.f32 0.0, %v2229
        %v2231 = vpop.f32.mrb[0].mxu0
        %2232 = vmatprep.mubr.bf16.mxu0 0
        %2233 = vmatmul.mubr.bf16.gmra.mrb[0].mxu0 %v2172
        %v2234 = vpop.f32.mrb[0].mxu0
        %v2235 = vadd.f32 0.0, %v2234
        %v2236 = vpop.f32.mrb[0].mxu0
        %v2237 = vpop.f32.mrb[0].mxu0
        %v2238 = vadd.f32 0.0, %v2237
        %v2239 = vpop.f32.mrb[0].mxu0
        %2240 = vmatprep.mubr.bf16.mxu0 0
        %2241 = vmatmul.mubr.bf16.gmra.mrb[0].mxu0 %v2175
        %v2242 = vpop.f32.mrb[0].mxu0
        %v2243 = vadd.f32 0.0, %v2242
        %v2244 = vpop.f32.mrb[0].mxu0
        %v2245 = vpop.f32.mrb[0].mxu0
        %v2246 = vadd.f32 0.0, %v2245
        %v2247 = vpop.f32.mrb[0].mxu0
        %2248 = vmatprep.mubr.bf16.mxu0 0
        %2249 = vmatmul.mubr.bf16.gmra.mrb[0].mxu0 %v2178
        %v2250 = vpop.f32.mrb[0].mxu0
        %v2251 = vadd.f32 0.0, %v2250
        %v2252 = vpop.f32.mrb[0].mxu0
        %v2253 = vpop.f32.mrb[0].mxu0
        %v2254 = vadd.f32 0.0, %v2253
        %v2255 = vpop.f32.mrb[0].mxu0
        %2256 = vmatprep.mubr.bf16.mxu0 0
        %2257 = vmatmul.mubr.bf16.gmra.mrb[0].mxu0 %v2181
        %v2258 = vpop.f32.mrb[0].mxu0
        %v2259 = vadd.f32 0.0, %v2258
        %v2260 = vpop.f32.mrb[0].mxu0
        %v2261 = vpop.f32.mrb[0].mxu0
        %v2262 = vadd.f32 0.0, %v2261
        %v2263 = vpop.f32.mrb[0].mxu0
        %2264 = vmatprep.mubr.bf16.mxu0 0
        %2265 = vmatmul.mubr.bf16.gmra.mrb[0].mxu0 %v2184
        %v2266 = vpop.f32.mrb[0].mxu0
        %v2267 = vadd.f32 0.0, %v2266
        %v2268 = vpop.f32.mrb[0].mxu0
        %v2269 = vpop.f32.mrb[0].mxu0
        %v2270 = vadd.f32 0.0, %v2269
        %v2271 = vpop.f32.mrb[0].mxu0
        %2272 = vmatprep.mubr.bf16.mxu0 0
        %2273 = vmatmul.mubr.bf16.gmra.mrb[0].mxu0 %v2187
        %v2274 = vpop.f32.mrb[0].mxu0
        %v2275 = vadd.f32 0.0, %v2274
        %v2276 = vpop.f32.mrb[0].mxu0
        %v2277 = vpop.f32.mrb[0].mxu0
        %v2278 = vadd.f32 0.0, %v2277
        %v2279 = vpop.f32.mrb[0].mxu0
        %2280 = vmatprep.mubr.bf16.mxu0 0
        %2281 = vmatmul.mubr.bf16.gmra.mrb[0].mxu0 %v2190
        %v2282 = vpop.f32.mrb[0].mxu0
        %v2283 = vadd.f32 0.0, %v2282
        %v2284 = vpop.f32.mrb[0].mxu0
        %v2285 = vpop.f32.mrb[0].mxu0
        %v2286 = vadd.f32 0.0, %v2285
        %v2287 = vpop.f32.mrb[0].mxu0
        %2288 = vdwg.mxu0
        %v2289 = vadd.f32 %v1632, %v2227
        %v2290 = vadd.f32 %v1633, %v2230
        %v2291 = vadd.f32 %v1634, %v2235
        %v2292 = vadd.f32 %v1635, %v2238
        %v2293 = vadd.f32 %v1636, %v2243
        %v2294 = vadd.f32 %v1637, %v2246
        %v2295 = vadd.f32 %v1638, %v2251
        %v2296 = vadd.f32 %v1639, %v2254
        %v2297 = vadd.f32 %v1640, %v2259
        %v2298 = vadd.f32 %v1641, %v2262
        %v2299 = vadd.f32 %v1642, %v2267
        %v2300 = vadd.f32 %v1643, %v2270
        %v2301 = vadd.f32 %v1644, %v2275
        %v2302 = vadd.f32 %v1645, %v2278
        %v2303 = vadd.f32 %v1646, %v2283
        %v2304 = vadd.f32 %v1647, %v2286
        %2305 = vst.msk [vmem:[#allocation2] sm:$0xff] %vm896, %v2289
        %2306 = vst.msk [vmem:[#allocation2 + $0x8] sm:$0xff] %vm896, %v2290
        %2307 = vst.msk [vmem:[#allocation2 + $0x10] sm:$0xff] %vm896, %v2291
        %2308 = vst.msk [vmem:[#allocation2 + $0x18] sm:$0xff] %vm896, %v2292
        %2309 = vst.msk [vmem:[#allocation2 + $0x20] sm:$0xff] %vm896, %v2293
        %2310 = vst.msk [vmem:[#allocation2 + $0x28] sm:$0xff] %vm896, %v2294
        %2311 = vst.msk [vmem:[#allocation2 + $0x30] sm:$0xff] %vm896, %v2295
        %2312 = vst.msk [vmem:[#allocation2 + $0x38] sm:$0xff] %vm896, %v2296
        %2313 = vst.msk [vmem:[#allocation2 + $0x40] sm:$0xff] %vm896, %v2297
        %2314 = vst.msk [vmem:[#allocation2 + $0x48] sm:$0xff] %vm896, %v2298
        %2315 = vst.msk [vmem:[#allocation2 + $0x50] sm:$0xff] %vm896, %v2299
        %2316 = vst.msk [vmem:[#allocation2 + $0x58] sm:$0xff] %vm896, %v2300
        %2317 = vst.msk [vmem:[#allocation2 + $0x60] sm:$0xff] %vm896, %v2301
        %2318 = vst.msk [vmem:[#allocation2 + $0x68] sm:$0xff] %vm896, %v2302
        %2319 = vst.msk [vmem:[#allocation2 + $0x70] sm:$0xff] %vm896, %v2303
        %2320 = vst.msk [vmem:[#allocation2 + $0x78] sm:$0xff] %vm896, %v2304
        %p2321 = scmp.eq.s32.totalorder %s33, 1
        // Predicated region
        $region89: #{mlp_mixer_forward.1} parent=83 // pred_check
          %p2322 = pneg %p2321
        $region90: #{mlp_mixer_forward.1} parent=83 // pred_check_branch
          %2324 = sbr.rel (%p2322) target = $region92
        $region91: #{mlp_mixer_forward.1} parent=83 // pred_region
          %v2325 = vld [vmem:[#allocation2] sm:$0xff]
          %v2326 = vld [vmem:[#allocation2 + $0x8] sm:$0xff]
          %v2327 = vld [vmem:[#allocation2 + $0x10] sm:$0xff]
          %v2328 = vld [vmem:[#allocation2 + $0x18] sm:$0xff]
          %v2329 = vld [vmem:[#allocation2 + $0x20] sm:$0xff]
          %v2330 = vld [vmem:[#allocation2 + $0x28] sm:$0xff]
          %v2331 = vld [vmem:[#allocation2 + $0x30] sm:$0xff]
          %v2332 = vld [vmem:[#allocation2 + $0x38] sm:$0xff]
          %v2333 = vld [vmem:[#allocation2 + $0x40] sm:$0xff]
          %v2334 = vld [vmem:[#allocation2 + $0x48] sm:$0xff]
          %v2335 = vld [vmem:[#allocation2 + $0x50] sm:$0xff]
          %v2336 = vld [vmem:[#allocation2 + $0x58] sm:$0xff]
          %v2337 = vld [vmem:[#allocation2 + $0x60] sm:$0xff]
          %v2338 = vld [vmem:[#allocation2 + $0x68] sm:$0xff]
          %v2339 = vld [vmem:[#allocation2 + $0x70] sm:$0xff]
          %v2340 = vld [vmem:[#allocation2 + $0x78] sm:$0xff]
          %v2341 = vld [vmem:[%s11] sm:$0x1]
          %v2342 = vld [vmem:[%s12] sm:$0x1]
          %v2343 = vsel %vm896, %v2325, 0.0
          %2344 = vadd.xlane.f32.xlu0 %v2343
          %v2345 = vpop.xlane.xlu0 %2344
          %v2346 = vsel %vm896, %v2326, 0.0
          %2347 = vadd.xlane.f32.xlu0 %v2346
          %v2348 = vpop.xlane.xlu0 %2347
          %v2349 = vsel %vm896, %v2327, 0.0
          %2350 = vadd.xlane.f32.xlu0 %v2349
          %v2351 = vpop.xlane.xlu0 %2350
          %v2352 = vsel %vm896, %v2328, 0.0
          %2353 = vadd.xlane.f32.xlu0 %v2352
          %v2354 = vpop.xlane.xlu0 %2353
          %v2355 = vsel %vm896, %v2329, 0.0
          %2356 = vadd.xlane.f32.xlu0 %v2355
          %v2357 = vpop.xlane.xlu0 %2356
          %v2358 = vsel %vm896, %v2330, 0.0
          %2359 = vadd.xlane.f32.xlu0 %v2358
          %v2360 = vpop.xlane.xlu0 %2359
          %v2361 = vsel %vm896, %v2331, 0.0
          %2362 = vadd.xlane.f32.xlu0 %v2361
          %v2363 = vpop.xlane.xlu0 %2362
          %v2364 = vsel %vm896, %v2332, 0.0
          %2365 = vadd.xlane.f32.xlu0 %v2364
          %v2366 = vpop.xlane.xlu0 %2365
          %v2367 = vsel %vm896, %v2333, 0.0
          %2368 = vadd.xlane.f32.xlu0 %v2367
          %v2369 = vpop.xlane.xlu0 %2368
          %v2370 = vsel %vm896, %v2334, 0.0
          %2371 = vadd.xlane.f32.xlu0 %v2370
          %v2372 = vpop.xlane.xlu0 %2371
          %v2373 = vsel %vm896, %v2335, 0.0
          %2374 = vadd.xlane.f32.xlu0 %v2373
          %v2375 = vpop.xlane.xlu0 %2374
          %v2376 = vsel %vm896, %v2336, 0.0
          %2377 = vadd.xlane.f32.xlu0 %v2376
          %v2378 = vpop.xlane.xlu0 %2377
          %v2379 = vsel %vm896, %v2337, 0.0
          %2380 = vadd.xlane.f32.xlu0 %v2379
          %v2381 = vpop.xlane.xlu0 %2380
          %v2382 = vsel %vm896, %v2338, 0.0
          %2383 = vadd.xlane.f32.xlu0 %v2382
          %v2384 = vpop.xlane.xlu0 %2383
          %v2385 = vsel %vm896, %v2339, 0.0
          %2386 = vadd.xlane.f32.xlu0 %v2385
          %v2387 = vpop.xlane.xlu0 %2386
          %v2388 = vsel %vm896, %v2340, 0.0
          %2389 = vadd.xlane.f32.xlu0 %v2388
          %v2390 = vpop.xlane.xlu0 %2389
          %v2391 = vmul.f32 %v2345, %v945
          %v2392 = vmul.f32 %v2348, %v945
          %v2393 = vmul.f32 %v2351, %v945
          %v2394 = vmul.f32 %v2354, %v945
          %v2395 = vmul.f32 %v2357, %v945
          %v2396 = vmul.f32 %v2360, %v945
          %v2397 = vmul.f32 %v2363, %v945
          %v2398 = vmul.f32 %v2366, %v945
          %v2399 = vmul.f32 %v2369, %v945
          %v2400 = vmul.f32 %v2372, %v945
          %v2401 = vmul.f32 %v2375, %v945
          %v2402 = vmul.f32 %v2378, %v945
          %v2403 = vmul.f32 %v2381, %v945
          %v2404 = vmul.f32 %v2384, %v945
          %v2405 = vmul.f32 %v2387, %v945
          %v2406 = vmul.f32 %v2390, %v945
          %v2407 = vsub.f32 %v2325, %v2391
          %v2408 = vsub.f32 %v2326, %v2392
          %v2409 = vsub.f32 %v2327, %v2393
          %v2410 = vsub.f32 %v2328, %v2394
          %v2411 = vsub.f32 %v2329, %v2395
          %v2412 = vsub.f32 %v2330, %v2396
          %v2413 = vsub.f32 %v2331, %v2397
          %v2414 = vsub.f32 %v2332, %v2398
          %v2415 = vsub.f32 %v2333, %v2399
          %v2416 = vsub.f32 %v2334, %v2400
          %v2417 = vsub.f32 %v2335, %v2401
          %v2418 = vsub.f32 %v2336, %v2402
          %v2419 = vsub.f32 %v2337, %v2403
          %v2420 = vsub.f32 %v2338, %v2404
          %v2421 = vsub.f32 %v2339, %v2405
          %v2422 = vsub.f32 %v2340, %v2406
          %v2423 = vmul.f32 %v2407, %v2407
          %v2424 = vmul.f32 %v2408, %v2408
          %v2425 = vmul.f32 %v2409, %v2409
          %v2426 = vmul.f32 %v2410, %v2410
          %v2427 = vmul.f32 %v2411, %v2411
          %v2428 = vmul.f32 %v2412, %v2412
          %v2429 = vmul.f32 %v2413, %v2413
          %v2430 = vmul.f32 %v2414, %v2414
          %v2431 = vmul.f32 %v2415, %v2415
          %v2432 = vmul.f32 %v2416, %v2416
          %v2433 = vmul.f32 %v2417, %v2417
          %v2434 = vmul.f32 %v2418, %v2418
          %v2435 = vmul.f32 %v2419, %v2419
          %v2436 = vmul.f32 %v2420, %v2420
          %v2437 = vmul.f32 %v2421, %v2421
          %v2438 = vmul.f32 %v2422, %v2422
          %v2439 = vsel %vm896, %v2423, 0.0
          %2440 = vadd.xlane.f32.xlu0 %v2439
          %v2441 = vpop.xlane.xlu0 %2440
          %v2442 = vsel %vm896, %v2424, 0.0
          %2443 = vadd.xlane.f32.xlu0 %v2442
          %v2444 = vpop.xlane.xlu0 %2443
          %v2445 = vsel %vm896, %v2425, 0.0
          %2446 = vadd.xlane.f32.xlu0 %v2445
          %v2447 = vpop.xlane.xlu0 %2446
          %v2448 = vsel %vm896, %v2426, 0.0
          %2449 = vadd.xlane.f32.xlu0 %v2448
          %v2450 = vpop.xlane.xlu0 %2449
          %v2451 = vsel %vm896, %v2427, 0.0
          %2452 = vadd.xlane.f32.xlu0 %v2451
          %v2453 = vpop.xlane.xlu0 %2452
          %v2454 = vsel %vm896, %v2428, 0.0
          %2455 = vadd.xlane.f32.xlu0 %v2454
          %v2456 = vpop.xlane.xlu0 %2455
          %v2457 = vsel %vm896, %v2429, 0.0
          %2458 = vadd.xlane.f32.xlu0 %v2457
          %v2459 = vpop.xlane.xlu0 %2458
          %v2460 = vsel %vm896, %v2430, 0.0
          %2461 = vadd.xlane.f32.xlu0 %v2460
          %v2462 = vpop.xlane.xlu0 %2461
          %v2463 = vsel %vm896, %v2431, 0.0
          %2464 = vadd.xlane.f32.xlu0 %v2463
          %v2465 = vpop.xlane.xlu0 %2464
          %v2466 = vsel %vm896, %v2432, 0.0
          %2467 = vadd.xlane.f32.xlu0 %v2466
          %v2468 = vpop.xlane.xlu0 %2467
          %v2469 = vsel %vm896, %v2433, 0.0
          %2470 = vadd.xlane.f32.xlu0 %v2469
          %v2471 = vpop.xlane.xlu0 %2470
          %v2472 = vsel %vm896, %v2434, 0.0
          %2473 = vadd.xlane.f32.xlu0 %v2472
          %v2474 = vpop.xlane.xlu0 %2473
          %v2475 = vsel %vm896, %v2435, 0.0
          %2476 = vadd.xlane.f32.xlu0 %v2475
          %v2477 = vpop.xlane.xlu0 %2476
          %v2478 = vsel %vm896, %v2436, 0.0
          %2479 = vadd.xlane.f32.xlu0 %v2478
          %v2480 = vpop.xlane.xlu0 %2479
          %v2481 = vsel %vm896, %v2437, 0.0
          %2482 = vadd.xlane.f32.xlu0 %v2481
          %v2483 = vpop.xlane.xlu0 %2482
          %v2484 = vsel %vm896, %v2438, 0.0
          %2485 = vadd.xlane.f32.xlu0 %v2484
          %v2486 = vpop.xlane.xlu0 %2485
          %v2487 = vmul.f32 %v2441, %v945
          %v2488 = vmul.f32 %v2444, %v945
          %v2489 = vmul.f32 %v2447, %v945
          %v2490 = vmul.f32 %v2450, %v945
          %v2491 = vmul.f32 %v2453, %v945
          %v2492 = vmul.f32 %v2456, %v945
          %v2493 = vmul.f32 %v2459, %v945
          %v2494 = vmul.f32 %v2462, %v945
          %v2495 = vmul.f32 %v2465, %v945
          %v2496 = vmul.f32 %v2468, %v945
          %v2497 = vmul.f32 %v2471, %v945
          %v2498 = vmul.f32 %v2474, %v945
          %v2499 = vmul.f32 %v2477, %v945
          %v2500 = vmul.f32 %v2480, %v945
          %v2501 = vmul.f32 %v2483, %v945
          %v2502 = vmul.f32 %v2486, %v945
          %v2503 = vadd.f32 %v2487, 1e-05
          %v2504 = vadd.f32 %v2488, 1e-05
          %v2505 = vadd.f32 %v2489, 1e-05
          %v2506 = vadd.f32 %v2490, 1e-05
          %v2507 = vadd.f32 %v2491, 1e-05
          %v2508 = vadd.f32 %v2492, 1e-05
          %v2509 = vadd.f32 %v2493, 1e-05
          %v2510 = vadd.f32 %v2494, 1e-05
          %v2511 = vadd.f32 %v2495, 1e-05
          %v2512 = vadd.f32 %v2496, 1e-05
          %v2513 = vadd.f32 %v2497, 1e-05
          %v2514 = vadd.f32 %v2498, 1e-05
          %v2515 = vadd.f32 %v2499, 1e-05
          %v2516 = vadd.f32 %v2500, 1e-05
          %v2517 = vadd.f32 %v2501, 1e-05
          %v2518 = vadd.f32 %v2502, 1e-05
          %v2519 = vrsqrt.pop %v2503
          %v2520 = vrsqrt.pop %v2504
          %v2521 = vrsqrt.pop %v2505
          %v2522 = vrsqrt.pop %v2506
          %v2523 = vrsqrt.pop %v2507
          %v2524 = vrsqrt.pop %v2508
          %v2525 = vrsqrt.pop %v2509
          %v2526 = vrsqrt.pop %v2510
          %v2527 = vrsqrt.pop %v2511
          %v2528 = vrsqrt.pop %v2512
          %v2529 = vrsqrt.pop %v2513
          %v2530 = vrsqrt.pop %v2514
          %v2531 = vrsqrt.pop %v2515
          %v2532 = vrsqrt.pop %v2516
          %v2533 = vrsqrt.pop %v2517
          %v2534 = vrsqrt.pop %v2518
          %v2535 = vmul.f32 %v2407, %v2519
          %v2536 = vmul.f32 %v2408, %v2520
          %v2537 = vmul.f32 %v2409, %v2521
          %v2538 = vmul.f32 %v2410, %v2522
          %v2539 = vmul.f32 %v2411, %v2523
          %v2540 = vmul.f32 %v2412, %v2524
          %v2541 = vmul.f32 %v2413, %v2525
          %v2542 = vmul.f32 %v2414, %v2526
          %v2543 = vmul.f32 %v2415, %v2527
          %v2544 = vmul.f32 %v2416, %v2528
          %v2545 = vmul.f32 %v2417, %v2529
          %v2546 = vmul.f32 %v2418, %v2530
          %v2547 = vmul.f32 %v2419, %v2531
          %v2548 = vmul.f32 %v2420, %v2532
          %v2549 = vmul.f32 %v2421, %v2533
          %v2550 = vmul.f32 %v2422, %v2534
          %v2552 = vlaneseq
          %v2553 = vshrl.u32 %v2552, 7
          %v2554 = vsub.s32 0, %v2553
          %v2555 = vrot.slane %v2341, %v2554
          %v2557 = vmul.f32 %v2535, %v2555
          %v2558 = vmul.f32 %v2536, %v2555
          %v2559 = vmul.f32 %v2537, %v2555
          %v2560 = vmul.f32 %v2538, %v2555
          %v2561 = vmul.f32 %v2539, %v2555
          %v2562 = vmul.f32 %v2540, %v2555
          %v2563 = vmul.f32 %v2541, %v2555
          %v2564 = vmul.f32 %v2542, %v2555
          %v2565 = vmul.f32 %v2543, %v2555
          %v2566 = vmul.f32 %v2544, %v2555
          %v2567 = vmul.f32 %v2545, %v2555
          %v2568 = vmul.f32 %v2546, %v2555
          %v2569 = vmul.f32 %v2547, %v2555
          %v2570 = vmul.f32 %v2548, %v2555
          %v2571 = vmul.f32 %v2549, %v2555
          %v2572 = vmul.f32 %v2550, %v2555
          %v2574 = vlaneseq
          %v2575 = vshrl.u32 %v2574, 7
          %v2576 = vsub.s32 0, %v2575
          %v2577 = vrot.slane %v2342, %v2576
          %v2579 = vadd.f32 %v2557, %v2577
          %v2580 = vadd.f32 %v2558, %v2577
          %v2581 = vadd.f32 %v2559, %v2577
          %v2582 = vadd.f32 %v2560, %v2577
          %v2583 = vadd.f32 %v2561, %v2577
          %v2584 = vadd.f32 %v2562, %v2577
          %v2585 = vadd.f32 %v2563, %v2577
          %v2586 = vadd.f32 %v2564, %v2577
          %v2587 = vadd.f32 %v2565, %v2577
          %v2588 = vadd.f32 %v2566, %v2577
          %v2589 = vadd.f32 %v2567, %v2577
          %v2590 = vadd.f32 %v2568, %v2577
          %v2591 = vadd.f32 %v2569, %v2577
          %v2592 = vadd.f32 %v2570, %v2577
          %v2593 = vadd.f32 %v2571, %v2577
          %v2594 = vadd.f32 %v2572, %v2577
          %v2595 = vpack.c.bf16 %v2580, %v2579
          %v2596 = vpack.c.bf16 %v2582, %v2581
          %v2597 = vpack.c.bf16 %v2584, %v2583
          %v2598 = vpack.c.bf16 %v2586, %v2585
          %v2599 = vpack.c.bf16 %v2588, %v2587
          %v2600 = vpack.c.bf16 %v2590, %v2589
          %v2601 = vpack.c.bf16 %v2592, %v2591
          %v2602 = vpack.c.bf16 %v2594, %v2593
          %v2603 = vld [vmem:[%s13] sm:$0xf]
          %2604 = vmatprep.subr.bf16.mxu0 0
          %2605 = vmatpush1.bf16.msra.mxu0 %v2595
          %2606 = vmatprep.subr.bf16.mxu0 0
          %2607 = vmatpush1.bf16.msra.mxu0 %v2596
          %2608 = vmatprep.subr.bf16.mxu0 0
          %2609 = vmatpush1.bf16.msra.mxu0 %v2597
          %2610 = vmatprep.subr.bf16.mxu0 0
          %2611 = vmatpush1.bf16.msra.mxu0 %v2598
          %2612 = vmatprep.subr.bf16.mxu0 0
          %2613 = vmatpush1.bf16.msra.mxu0 %v2599
          %2614 = vmatprep.subr.bf16.mxu0 0
          %2615 = vmatpush1.bf16.msra.mxu0 %v2600
          %2616 = vmatprep.subr.bf16.mxu0 0
          %2617 = vmatpush1.bf16.msra.mxu0 %v2601
          %2618 = vmatprep.subr.bf16.mxu0 0
          %2619 = vmatpush1.bf16.msra.mxu0 %v2602
          %2620 = vmatprep.subr.bf16.mxu0 0
          %2621 = vmatpush1.bf16.msra.mxu0 0
          %2622 = vmatprep.subr.bf16.mxu0 0
          %2623 = vmatpush1.bf16.msra.mxu0 0
          %2624 = vmatprep.subr.bf16.mxu0 0
          %2625 = vmatpush1.bf16.msra.mxu0 0
          %2626 = vmatprep.subr.bf16.mxu0 0
          %2627 = vmatpush1.bf16.msra.mxu0 0
          %2628 = vmatprep.subr.bf16.mxu0 0
          %2629 = vmatpush1.bf16.msra.mxu0 0
          %2630 = vmatprep.subr.bf16.mxu0 0
          %2631 = vmatpush1.bf16.msra.mxu0 0
          %2632 = vmatprep.subr.bf16.mxu0 0
          %2633 = vmatpush1.bf16.msra.mxu0 0
          %2634 = vmatprep.subr.bf16.mxu0 0
          %2635 = vmatpush1.bf16.msra.mxu0 0
          %2636 = vmatprep.mubr.bf16.mxu0 0
          %2637 = vmatmul.mubr.bf16.gmra.mrb[0].mxu0 %v2603
          %v2638 = vpop.f32.mrb[0].mxu0
          %v2639 = vadd.f32 0.0, %v2638
          %v2640 = vpop.f32.mrb[0].mxu0
          %v2641 = vpop.f32.mrb[0].mxu0
          %v2642 = vpop.f32.mrb[0].mxu0
          %2643 = vdwg.mxu0
          %v2644 = vpack.c.bf16 %v2639, %v2639
          %v2645 = vld [vmem:[%s14] sm:$0xf]
          %v2646 = vld [vmem:[%s14 + $0x4] sm:$0xf]
          %v2647 = vld [vmem:[%s14 + $0x8] sm:$0xf]
          %v2648 = vld [vmem:[%s14 + $0xc] sm:$0xf]
          %v2649 = vld [vmem:[%s15] sm:$0x1]
          %v2651 = vlaneseq
          %v2652 = vshrl.u32 %v2651, 7
          %v2653 = vsub.s32 0, %v2652
          %v2654 = vrot.slane %v2649, %v2653
          %v2660 = vunpack.c.l.b16 %v2645
          %v2661 = vunpack.c.l.b16 %v2646
          %v2662 = vunpack.c.l.b16 %v2647
          %v2663 = vunpack.c.l.b16 %v2648
          %v2664 = vpack.c.b16 %v2661, %v2660
          %v2665 = vpack.c.b16 %v2663, %v2662
          %v2669 = vsel %vm896, %v2644, 0
          %2671 = vmatprep.subr.bf16.mxu0 0
          %2672 = vmatpush1.bf16.msra.mxu0 %v2664
          %2673 = vmatprep.subr.bf16.mxu0 0
          %2674 = vmatpush1.bf16.msra.mxu0 %v2665
          %2675 = vmatprep.subr.bf16.mxu0 0
          %2676 = vmatpush1.bf16.msra.mxu0 0
          %2677 = vmatprep.subr.bf16.mxu0 0
          %2678 = vmatpush1.bf16.msra.mxu0 0
          %2679 = vmatprep.subr.bf16.mxu0 0
          %2680 = vmatpush1.bf16.msra.mxu0 0
          %2681 = vmatprep.subr.bf16.mxu0 0
          %2682 = vmatpush1.bf16.msra.mxu0 0
          %2683 = vmatprep.subr.bf16.mxu0 0
          %2684 = vmatpush1.bf16.msra.mxu0 0
          %2685 = vmatprep.subr.bf16.mxu0 0
          %2686 = vmatpush1.bf16.msra.mxu0 0
          %2687 = vmatprep.subr.bf16.mxu0 0
          %2688 = vmatpush1.bf16.msra.mxu0 0
          %2689 = vmatprep.subr.bf16.mxu0 0
          %2690 = vmatpush1.bf16.msra.mxu0 0
          %2691 = vmatprep.subr.bf16.mxu0 0
          %2692 = vmatpush1.bf16.msra.mxu0 0
          %2693 = vmatprep.subr.bf16.mxu0 0
          %2694 = vmatpush1.bf16.msra.mxu0 0
          %2695 = vmatprep.subr.bf16.mxu0 0
          %2696 = vmatpush1.bf16.msra.mxu0 0
          %2697 = vmatprep.subr.bf16.mxu0 0
          %2698 = vmatpush1.bf16.msra.mxu0 0
          %2699 = vmatprep.subr.bf16.mxu0 0
          %2700 = vmatpush1.bf16.msra.mxu0 0
          %2701 = vmatprep.subr.bf16.mxu0 0
          %2702 = vmatpush1.bf16.msra.mxu0 0
          %2703 = vmatprep.mubr.bf16.mxu0 0
          %2704 = vmatmul.mubr.bf16.gmra.mrb[0].mxu0 %v2669
          %v2705 = vpop.f32.mrb[0].mxu0
          %v2706 = vadd.f32 %v2654, %v2705
          %v2707 = vpop.f32.mrb[0].mxu0
          %v2708 = vpop.f32.mrb[0].mxu0
          %v2709 = vpop.f32.mrb[0].mxu0
          %2710 = vdwg.mxu0
          %2711 = vst [vmem:[#allocation3] sm:$0xff] %v2706
        $region92: #{mlp_mixer_forward.1} parent=83 // pred_fallthru
          _
        // Predicated region
        $region93: #{mlp_mixer_forward.1} parent=83 // pred_check
          %p2712 = pneg %p439
        $region94: #{mlp_mixer_forward.1} parent=83 // pred_check_branch
          %2714 = sbr.rel (%p2712) target = $region96
        $region95: #{mlp_mixer_forward.1} parent=83 // pred_region
          %s2716 = ssub.s32 128, 128
          %2717 = vsyncadd [#allocation4], %s2716
          %s2718 = smul.addr %s32, 128
          %s2719 = scalar_lea.hbm %s16, %s2718
          %s2721 = sshll.u32 [#allocation3], 4
          %s2722 = int_to_ptr.vmem [resolvable:$true] %s2721
          %2724 = dma.vmem_to_hbm [thread:$0]  %s2722, 128, %s2719, [#allocation4]
        $region96: #{mlp_mixer_forward.1} parent=83 // pred_fallthru
          _
        // Predicated region
        $region97: #{mlp_mixer_forward.1} parent=83 // pred_check
          %p2725 = pneg %p439
        $region98: #{mlp_mixer_forward.1} parent=83 // pred_check_branch
          %2727 = sbr.rel (%p2725) target = $region100
        $region99: #{mlp_mixer_forward.1} parent=83 // pred_region
          %2728 = dma.done [#allocation4], 128
        $region100: #{mlp_mixer_forward.1} parent=83 // pred_fallthru
          _
      $region84: #{mlp_mixer_forward.1} parent=5 // pred_fallthru
        _
      %p2729 = scmp.le.s32.totalorder 2, %s23
      // Predicated region
      $region101: #{mlp_mixer_forward.1} parent=5 // pred_check
        %p2730 = pneg %p2729
      $region102: #{mlp_mixer_forward.1} parent=5 // pred_check_branch
        %2732 = sbr.rel (%p2730) target = $region104
      $region103: #{mlp_mixer_forward.1} parent=5 // pred_region
        %s2733 = ssub.s32 %s23, 2
      $region104: #{mlp_mixer_forward.1} parent=5 // pred_fallthru
        _
    $region6: #{mlp_mixer_forward.1} parent=1 // loop_footer
      %s27 = sadd.s32 1, %s23
    $region7: #{mlp_mixer_forward.1} parent=1 // loop_footer_branch
      %22 = sbr.rel target = $region3
    $region8: #{mlp_mixer_forward.1} parent=1 // loop_exit
      _
    %2734 = vsyncpa [#allocation4], 1
    %s2735 = scalar_lea.sflag [#allocation4], 1
    %2736 = vsyncpa %s2735, 1

</llo_original>
